<compile_context>
chip_gen: v5e
topology: v5e:2x2
jax: 0.10.0
libtpu: 0.0.40
codegen_flags: <defaults>
</compile_context>

<pallas_src>
import functools

import jax
import jax.numpy as jnp
from jax.experimental import pallas as pl
from jax.experimental.pallas import tpu as pltpu


# --------------------------- gating Pallas kernel --------------------------- #
def gating_kernel(xe_ref, w1_ref, w2_ref, p_ref):
    """p = softmax(relu(relu(x @ W1) @ W2), axis=1); dropout is identity (eval)."""
    h = jnp.maximum(
        jnp.dot(xe_ref[...], w1_ref[...], preferred_element_type=jnp.float32), 0.0)
    g = jnp.maximum(
        jnp.dot(h, w2_ref[...], preferred_element_type=jnp.float32), 0.0)
    m = jnp.max(g, axis=1, keepdims=True)
    e = jnp.exp(g - m)
    p_ref[...] = e / jnp.sum(e, axis=1, keepdims=True)


# --------------------------- mixture Pallas kernel -------------------------- #
def moe_mix_kernel(xe_ref, pt_ref, wse_ref, out_ref, *, eg):
    """Grid = (NG,): one expert group (EG experts) per step.

    xe_ref : (B, D)       bf16, resident across the grid
    pt_ref : (EG, B, 1)   f32 gating probability columns for this group
    wse_ref: (EG, D, 2L)  bf16, streamed (contiguous HBM block per group)
    out_ref: (B, 2L)      f32, resident accumulator (cols [:L]=start, [L:]=end)
    """
    @pl.when(pl.program_id(0) == 0)
    def _():
        out_ref[...] = jnp.zeros_like(out_ref)

    xe = xe_ref[...]                                        # (B, D) bf16
    acc = jnp.zeros(out_ref.shape, jnp.float32)
    for j in range(eg):                                     # static unroll
        y = jnp.dot(xe, wse_ref[j],
                    preferred_element_type=jnp.float32)     # (B, 2L) f32 acc
        acc += pt_ref[j] * y                                # (B,1) * (B,2L)
    out_ref[...] += acc


# ------------------------------- wrapper ------------------------------------ #
def prepare_expert_weights(ws, we):
    """Stack start/end QA heads along the logit axis and cast to bf16 once.
    ws, we: (E, D, L) f32 -> (E, D, 2L) bf16 (columns [:L]=start, [L:]=end)."""
    return jnp.concatenate([ws, we], axis=2).astype(jnp.bfloat16)


def _largest_divisor_at_most(n, k):
    k = max(1, min(n, k))
    while n % k:
        k -= 1
    return int(k)


@jax.jit
def moe_forward_pallas(x_embed, w1, w2, w_se):
    B0, D = x_embed.shape
    H = w1.shape[1]
    E, _, L2 = w_se.shape
    L = L2 // 2

    # Pad batch rows to a multiple of 16 (bf16 packs 16 sublanes per vreg);
    # padded rows are zero and sliced off below.
    B = ((max(B0, 1) + 15) // 16) * 16
    x_pad = x_embed if B == B0 else jnp.pad(x_embed, ((0, B - B0), (0, 0)))

    # ---- gating: tiny dedicated kernel (computed exactly once) -------------
    p = pl.pallas_call(
        gating_kernel,
        grid_spec=pltpu.PrefetchScalarGridSpec(
            num_scalar_prefetch=0,
            grid=(1,),
            in_specs=[
                pl.BlockSpec((B, D), lambda i: (0, 0)),
                pl.BlockSpec((D, H), lambda i: (0, 0)),
                pl.BlockSpec((H, E), lambda i: (0, 0)),
            ],
            out_specs=pl.BlockSpec((B, E), lambda i: (0, 0)),
        ),
        out_shape=jax.ShapeDtypeStruct((B, E), jnp.float32),
        compiler_params=pltpu.CompilerParams(
            dimension_semantics=("arbitrary",)),
    )(x_pad, w1, w2)

    # glue: p -> (E, B, 1) so the mix kernel reads p[j] as a (B, 1) column
    p_t = jnp.transpose(p)[:, :, None]

    # bf16 cast hoisted out of the kernel (done once here)
    x_bf = x_pad.astype(jnp.bfloat16)

    # ---- expert group size from a VMEM budget (EG divides E) ---------------
    per_expert_bytes = D * L2 * 2                      # bf16 (D, 2L) slab
    eg_budget = (4 << 20) // per_expert_bytes          # ~4 MiB per streamed buffer
    EG = _largest_divisor_at_most(E, eg_budget)
    NG = E // EG

    # explicit VMEM budget: 2x-buffered weights + resident x / output / p
    wse_block_bytes = EG * per_expert_bytes
    vmem_needed = (2 * wse_block_bytes + B * D * 2 + B * L2 * 4 + 2 * EG * B * 4)
    vmem_limit = int(min(max(2 * vmem_needed, 16 << 20), 48 << 20))

    out = pl.pallas_call(
        functools.partial(moe_mix_kernel, eg=EG),
        grid_spec=pltpu.PrefetchScalarGridSpec(
            num_scalar_prefetch=0,
            grid=(NG,),
            in_specs=[
                pl.BlockSpec((B, D), lambda g: (0, 0)),          # x bf16 (resident)
                pl.BlockSpec((EG, B, 1), lambda g: (g, 0, 0)),   # p columns
                pl.BlockSpec((EG, D, L2), lambda g: (g, 0, 0)),  # weights (contig.)
            ],
            out_specs=pl.BlockSpec((B, L2), lambda g: (0, 0)),   # resident accum
        ),
        out_shape=jax.ShapeDtypeStruct((B, L2), jnp.float32),
        compiler_params=pltpu.CompilerParams(
            dimension_semantics=("arbitrary",),
            vmem_limit_bytes=vmem_limit),
    )(x_bf, p_t, w_se)

    start_logits_ave = out[:B0, :L]
    end_logits_ave = out[:B0, L:]
    return start_logits_ave, end_logits_ave


# ------------------------------- glue (JAX) --------------------------------- #
def embedding_lookup(input_ids, word_emb, pos_emb, tok_emb, ln_g, ln_b,
                     eps=1e-12):
    """BERT-style Embeddings: word + position + token-type, then LayerNorm,
    flattened to (B, seq*embed) — matches MoEModel.embedding_lookup."""
    emb = word_emb[input_ids] + pos_emb[None, :, :] + tok_emb[0][None, None, :]
    mean = jnp.mean(emb, axis=-1, keepdims=True)
    var = jnp.mean((emb - mean) ** 2, axis=-1, keepdims=True)
    emb = (emb - mean) / jnp.sqrt(var + eps) * ln_g + ln_b
    return emb.reshape(input_ids.shape[0], -1).astype(jnp.float32)


def xavier_uniform(key, shape):
    fan_in, fan_out = shape[-2], shape[-1]
    bound = (6.0 / (fan_in + fan_out)) ** 0.5
    return jax.random.uniform(key, shape, jnp.float32, -bound, bound)


# ------------------------------- reference ---------------------------------- #
def moe_forward_ref(x_embed, w1, w2, ws, we):
    """Plain-JAX reference matching the kernel's numerics (bf16 expert path)."""
    h = jnp.maximum(x_embed @ w1, 0.0)
    g = jnp.maximum(h @ w2, 0.0)
    p = jax.nn.softmax(g, axis=1)
    xe_bf = x_embed.astype(jnp.bfloat16).astype(jnp.float32)
    ws_bf = ws.astype(jnp.bfloat16).astype(jnp.float32)
    we_bf = we.astype(jnp.bfloat16).astype(jnp.float32)
    s = jnp.einsum("be,bd,edl->bl", p, xe_bf, ws_bf)
    e = jnp.einsum("be,bd,edl->bl", p, xe_bf, we_bf)
    return p, s, e


if __name__ == "__main__":
    # small, forward-consistent shapes
    B = 2            # batch
    SEQ = 16         # seq_len
    EMBED = 32       # embed_size
    VOCAB = 100
    NUM_EXPERTS = 4
    L = 384          # QA logit length (hard-coded 384 in the original module)
    D = SEQ * EMBED
    HIDDEN = SEQ * 2 // 3 + 4   # = seq_len*2//3 + 4, as in __init__

    key = jax.random.PRNGKey(0)
    keys = jax.random.split(key, 10)

    # deterministic parameter init
    word_emb = 0.02 * jax.random.normal(keys[0], (VOCAB, EMBED), jnp.float32)
    pos_emb = 0.02 * jax.random.normal(keys[1], (SEQ, EMBED), jnp.float32)
    tok_emb = 0.02 * jax.random.normal(keys[2], (2, EMBED), jnp.float32)
    ln_g = jnp.ones((EMBED,), jnp.float32)
    ln_b = jnp.zeros((EMBED,), jnp.float32)

    w1 = xavier_uniform(keys[3], (D, HIDDEN))
    w2 = xavier_uniform(keys[4], (HIDDEN, NUM_EXPERTS))
    ws = xavier_uniform(keys[5], (NUM_EXPERTS, D, L))   # synthetic expert start heads
    we = xavier_uniform(keys[6], (NUM_EXPERTS, D, L))   # synthetic expert end heads

    # deterministic inputs
    x_ids = jax.random.randint(keys[7], (B, SEQ), 0, VOCAB, jnp.int32)
    attention_mask = jnp.ones((B, SEQ), jnp.int32)      # unused by synthetic experts

    x_embed = embedding_lookup(x_ids, word_emb, pos_emb, tok_emb, ln_g, ln_b)

    # one-time weight repack (stack start/end heads, cast to bf16)
    w_se = prepare_expert_weights(ws, we)

    start_ave, end_ave = moe_forward_pallas(x_embed, w1, w2, w_se)
    jax.block_until_ready((start_ave, end_ave))
    loss = None  # TODO(synk): training loss path (start/end positions) not implemented

    # sanity check vs plain-JAX reference (bf16 expert path, f32 accumulation)
    p_r, s_r, e_r = moe_forward_ref(x_embed, w1, w2, ws, we)
    assert jnp.allclose(start_ave, s_r, rtol=2e-2, atol=2e-2)
    assert jnp.allclose(end_ave, e_r, rtol=2e-2, atol=2e-2)

    print("KERNEL_OK")
</pallas_src>

<mosaic_0001>
module attributes {stable_mosaic.version = 11 : i64} {
  func.func @gating_kernel(%arg0: i32, %arg1: memref<16x512xf32, #tpu.memory_space<vmem>>, %arg2: memref<512x14xf32, #tpu.memory_space<vmem>>, %arg3: memref<14x4xf32, #tpu.memory_space<vmem>>, %arg4: memref<16x4xf32, #tpu.memory_space<vmem>>) attributes {dimension_semantics = [#tpu.dimension_semantics<arbitrary>], iteration_bounds = array<i64: 1>, scalar_prefetch = 0 : i64, scratch_operands = 0 : i64, tpu.core_type = #tpu.core_type<tc>, window_params = [{pipeline_mode = #tpu.pipeline_mode<synchronous>, transform_indices = @transform_0, window_bounds = array<i64: 16, 512>}, {pipeline_mode = #tpu.pipeline_mode<synchronous>, transform_indices = @transform_1, window_bounds = array<i64: 512, 14>}, {pipeline_mode = #tpu.pipeline_mode<synchronous>, transform_indices = @transform_2, window_bounds = array<i64: 14, 4>}, {pipeline_mode = #tpu.pipeline_mode<synchronous>, transform_indices = @transform_3, window_bounds = array<i64: 16, 4>}]} {
    %c0 = arith.constant 0 : index
    %c0_0 = arith.constant 0 : index
    %0 = vector.load %arg1[%c0, %c0_0] : memref<16x512xf32, #tpu.memory_space<vmem>>, vector<16x512xf32>
    %c0_1 = arith.constant 0 : index
    %c0_2 = arith.constant 0 : index
    %1 = vector.load %arg2[%c0_1, %c0_2] : memref<512x14xf32, #tpu.memory_space<vmem>>, vector<512x14xf32>
    %cst = arith.constant dense<0.000000e+00> : vector<16x14xf32>
    %2 = tpu.matmul %0, %1, %cst {dimension_numbers = #tpu.dot_dimension_numbers<[1], [0], [0], [1], [0, 0, 1, 1], [], []>} : vector<16x512xf32>, vector<512x14xf32>, vector<16x14xf32> -> vector<16x14xf32>
    %cst_3 = arith.constant 0.000000e+00 : f32
    %3 = vector.broadcast %cst_3 : f32 to vector<16x14xf32>
    %4 = arith.maximumf %2, %3 : vector<16x14xf32>
    %c0_4 = arith.constant 0 : index
    %c0_5 = arith.constant 0 : index
    %5 = vector.load %arg3[%c0_4, %c0_5] : memref<14x4xf32, #tpu.memory_space<vmem>>, vector<14x4xf32>
    %cst_6 = arith.constant dense<0.000000e+00> : vector<16x4xf32>
    %6 = tpu.matmul %4, %5, %cst_6 {dimension_numbers = #tpu.dot_dimension_numbers<[1], [0], [0], [1], [0, 0, 1, 1], [], []>} : vector<16x14xf32>, vector<14x4xf32>, vector<16x4xf32> -> vector<16x4xf32>
    %cst_7 = arith.constant 0.000000e+00 : f32
    %7 = vector.broadcast %cst_7 : f32 to vector<16x4xf32>
    %8 = arith.maximumf %6, %7 : vector<16x4xf32>
    %cst_8 = arith.constant dense<0xFF800000> : vector<16xf32>
    %9 = vector.multi_reduction <maximumf>, %8, %cst_8 [1] : vector<16x4xf32> to vector<16xf32>
    %10 = vector.shape_cast %9 : vector<16xf32> to vector<16x1xf32>
    %11 = vector.broadcast %10 : vector<16x1xf32> to vector<16x4xf32>
    %12 = arith.subf %8, %11 : vector<16x4xf32>
    %13 = math.exp %12 : vector<16x4xf32>
    %cst_9 = arith.constant dense<0.000000e+00> : vector<16xf32>
    %14 = vector.multi_reduction <add>, %13, %cst_9 [1] : vector<16x4xf32> to vector<16xf32>
    %15 = vector.shape_cast %14 : vector<16xf32> to vector<16x1xf32>
    %16 = vector.broadcast %15 : vector<16x1xf32> to vector<16x4xf32>
    %17 = arith.divf %13, %16 : vector<16x4xf32>
    %c0_10 = arith.constant 0 : index
    %c0_11 = arith.constant 0 : index
    %18 = vector.load %arg4[%c0_10, %c0_11] : memref<16x4xf32, #tpu.memory_space<vmem>>, vector<16x4xf32>
    tpu.vector_store %arg4[%c0_10, %c0_11], %17 {strides = array<i32>} : memref<16x4xf32, #tpu.memory_space<vmem>>, vector<16x4xf32>,
    return
  }
  func.func @transform_0(%arg0: i32) -> (i32, i32) {
    %c0_i32 = arith.constant 0 : i32
    %c0_i32_0 = arith.constant 0 : i32
    %c0_i32_1 = arith.constant 0 : i32
    return %c0_i32, %c0_i32_0 : i32, i32
  }
  func.func @transform_1(%arg0: i32) -> (i32, i32) {
    %c0_i32 = arith.constant 0 : i32
    %c0_i32_0 = arith.constant 0 : i32
    %c0_i32_1 = arith.constant 0 : i32
    return %c0_i32, %c0_i32_0 : i32, i32
  }
  func.func @transform_2(%arg0: i32) -> (i32, i32) {
    %c0_i32 = arith.constant 0 : i32
    %c0_i32_0 = arith.constant 0 : i32
    %c0_i32_1 = arith.constant 0 : i32
    return %c0_i32, %c0_i32_0 : i32, i32
  }
  func.func @transform_3(%arg0: i32) -> (i32, i32) {
    %c0_i32 = arith.constant 0 : i32
    %c0_i32_0 = arith.constant 0 : i32
    %c0_i32_1 = arith.constant 0 : i32
    return %c0_i32, %c0_i32_0 : i32, i32
  }
}

module attributes {stable_mosaic.version = 11 : i64} {
  func.func @moe_mix_kernel(%arg0: i32, %arg1: memref<16x512xbf16, #tpu.memory_space<vmem>>, %arg2: memref<4x16x1xf32, #tpu.memory_space<vmem>>, %arg3: memref<4x512x768xbf16, #tpu.memory_space<vmem>>, %arg4: memref<16x768xf32, #tpu.memory_space<vmem>>) attributes {dimension_semantics = [#tpu.dimension_semantics<arbitrary>], iteration_bounds = array<i64: 1>, scalar_prefetch = 0 : i64, scratch_operands = 0 : i64, tpu.core_type = #tpu.core_type<tc>, window_params = [{pipeline_mode = #tpu.pipeline_mode<synchronous>, transform_indices = @transform_0, window_bounds = array<i64: 16, 512>}, {transform_indices = @transform_1, window_bounds = array<i64: 4, 16, 1>}, {transform_indices = @transform_2, window_bounds = array<i64: 4, 512, 768>}, {pipeline_mode = #tpu.pipeline_mode<synchronous>, transform_indices = @transform_3, window_bounds = array<i64: 16, 768>}]} {
    %c0_i32 = arith.constant 0 : i32
    %0 = arith.cmpi eq, %arg0, %c0_i32 : i32
    %1 = arith.extui %0 : i1 to i32
    %c0_i32_0 = arith.constant 0 : i32
    %2 = arith.cmpi ne, %1, %c0_i32_0 : i32
    scf.if %2 {
      %cst_31 = arith.constant 0.000000e+00 : f32
      %40 = vector.broadcast %cst_31 : f32 to vector<16x768xf32>
      %c0_32 = arith.constant 0 : index
      %c0_33 = arith.constant 0 : index
      %41 = vector.load %arg4[%c0_32, %c0_33] : memref<16x768xf32, #tpu.memory_space<vmem>>, vector<16x768xf32>
      tpu.vector_store %arg4[%c0_32, %c0_33], %40 {strides = array<i32>} : memref<16x768xf32, #tpu.memory_space<vmem>>, vector<16x768xf32>,
    } else {
    }
    %c0 = arith.constant 0 : index
    %c0_1 = arith.constant 0 : index
    %3 = vector.load %arg1[%c0, %c0_1] : memref<16x512xbf16, #tpu.memory_space<vmem>>, vector<16x512xbf16>
    %cst = arith.constant 0.000000e+00 : f32
    %4 = vector.broadcast %cst : f32 to vector<16x768xf32>
    %c0_2 = arith.constant 0 : index
    %c0_3 = arith.constant 0 : index
    %c0_4 = arith.constant 0 : index
    %5 = vector.load %arg3[%c0_2, %c0_3, %c0_4] : memref<4x512x768xbf16, #tpu.memory_space<vmem>>, vector<1x512x768xbf16>
    %6 = vector.shape_cast %5 : vector<1x512x768xbf16> to vector<512x768xbf16>
    %cst_5 = arith.constant dense<0.000000e+00> : vector<16x768xf32>
    %7 = tpu.matmul %3, %6, %cst_5 {dimension_numbers = #tpu.dot_dimension_numbers<[1], [0], [0], [1], [0, 0, 1, 1], [], []>} : vector<16x512xbf16>, vector<512x768xbf16>, vector<16x768xf32> -> vector<16x768xf32>
    %c0_6 = arith.constant 0 : index
    %c0_7 = arith.constant 0 : index
    %c0_8 = arith.constant 0 : index
    %8 = vector.load %arg2[%c0_6, %c0_7, %c0_8] : memref<4x16x1xf32, #tpu.memory_space<vmem>>, vector<1x16x1xf32>
    %9 = vector.shape_cast %8 : vector<1x16x1xf32> to vector<16x1xf32>
    %10 = vector.broadcast %9 : vector<16x1xf32> to vector<16x768xf32>
    %11 = arith.mulf %10, %7 : vector<16x768xf32>
    %12 = arith.addf %4, %11 : vector<16x768xf32>
    %c1 = arith.constant 1 : index
    %c0_9 = arith.constant 0 : index
    %c0_10 = arith.constant 0 : index
    %13 = vector.load %arg3[%c1, %c0_9, %c0_10] : memref<4x512x768xbf16, #tpu.memory_space<vmem>>, vector<1x512x768xbf16>
    %14 = vector.shape_cast %13 : vector<1x512x768xbf16> to vector<512x768xbf16>
    %cst_11 = arith.constant dense<0.000000e+00> : vector<16x768xf32>
    %15 = tpu.matmul %3, %14, %cst_11 {dimension_numbers = #tpu.dot_dimension_numbers<[1], [0], [0], [1], [0, 0, 1, 1], [], []>} : vector<16x512xbf16>, vector<512x768xbf16>, vector<16x768xf32> -> vector<16x768xf32>
    %c1_12 = arith.constant 1 : index
    %c0_13 = arith.constant 0 : index
    %c0_14 = arith.constant 0 : index
    %16 = vector.load %arg2[%c1_12, %c0_13, %c0_14] : memref<4x16x1xf32, #tpu.memory_space<vmem>>, vector<1x16x1xf32>
    %17 = vector.shape_cast %16 : vector<1x16x1xf32> to vector<16x1xf32>
    %18 = vector.broadcast %17 : vector<16x1xf32> to vector<16x768xf32>
    %19 = arith.mulf %18, %15 : vector<16x768xf32>
    %20 = arith.addf %12, %19 : vector<16x768xf32>
    %c2 = arith.constant 2 : index
    %c0_15 = arith.constant 0 : index
    %c0_16 = arith.constant 0 : index
    %21 = vector.load %arg3[%c2, %c0_15, %c0_16] : memref<4x512x768xbf16, #tpu.memory_space<vmem>>, vector<1x512x768xbf16>
    %22 = vector.shape_cast %21 : vector<1x512x768xbf16> to vector<512x768xbf16>
    %cst_17 = arith.constant dense<0.000000e+00> : vector<16x768xf32>
    %23 = tpu.matmul %3, %22, %cst_17 {dimension_numbers = #tpu.dot_dimension_numbers<[1], [0], [0], [1], [0, 0, 1, 1], [], []>} : vector<16x512xbf16>, vector<512x768xbf16>, vector<16x768xf32> -> vector<16x768xf32>
    %c2_18 = arith.constant 2 : index
    %c0_19 = arith.constant 0 : index
    %c0_20 = arith.constant 0 : index
    %24 = vector.load %arg2[%c2_18, %c0_19, %c0_20] : memref<4x16x1xf32, #tpu.memory_space<vmem>>, vector<1x16x1xf32>
    %25 = vector.shape_cast %24 : vector<1x16x1xf32> to vector<16x1xf32>
    %26 = vector.broadcast %25 : vector<16x1xf32> to vector<16x768xf32>
    %27 = arith.mulf %26, %23 : vector<16x768xf32>
    %28 = arith.addf %20, %27 : vector<16x768xf32>
    %c3 = arith.constant 3 : index
    %c0_21 = arith.constant 0 : index
    %c0_22 = arith.constant 0 : index
    %29 = vector.load %arg3[%c3, %c0_21, %c0_22] : memref<4x512x768xbf16, #tpu.memory_space<vmem>>, vector<1x512x768xbf16>
    %30 = vector.shape_cast %29 : vector<1x512x768xbf16> to vector<512x768xbf16>
    %cst_23 = arith.constant dense<0.000000e+00> : vector<16x768xf32>
    %31 = tpu.matmul %3, %30, %cst_23 {dimension_numbers = #tpu.dot_dimension_numbers<[1], [0], [0], [1], [0, 0, 1, 1], [], []>} : vector<16x512xbf16>, vector<512x768xbf16>, vector<16x768xf32> -> vector<16x768xf32>
    %c3_24 = arith.constant 3 : index
    %c0_25 = arith.constant 0 : index
    %c0_26 = arith.constant 0 : index
    %32 = vector.load %arg2[%c3_24, %c0_25, %c0_26] : memref<4x16x1xf32, #tpu.memory_space<vmem>>, vector<1x16x1xf32>
    %33 = vector.shape_cast %32 : vector<1x16x1xf32> to vector<16x1xf32>
    %34 = vector.broadcast %33 : vector<16x1xf32> to vector<16x768xf32>
    %35 = arith.mulf %34, %31 : vector<16x768xf32>
    %36 = arith.addf %28, %35 : vector<16x768xf32>
    %c0_27 = arith.constant 0 : index
    %c0_28 = arith.constant 0 : index
    %37 = vector.load %arg4[%c0_27, %c0_28] : memref<16x768xf32, #tpu.memory_space<vmem>>, vector<16x768xf32>
    %38 = arith.addf %37, %36 : vector<16x768xf32>
    %c0_29 = arith.constant 0 : index
    %c0_30 = arith.constant 0 : index
    %39 = vector.load %arg4[%c0_29, %c0_30] : memref<16x768xf32, #tpu.memory_space<vmem>>, vector<16x768xf32>
    tpu.vector_store %arg4[%c0_29, %c0_30], %38 {strides = array<i32>} : memref<16x768xf32, #tpu.memory_space<vmem>>, vector<16x768xf32>,
    return
  }
  func.func @transform_0(%arg0: i32) -> (i32, i32) {
    %c0_i32 = arith.constant 0 : i32
    %c0_i32_0 = arith.constant 0 : i32
    %c0_i32_1 = arith.constant 0 : i32
    return %c0_i32, %c0_i32_0 : i32, i32
  }
  func.func @transform_1(%arg0: i32) -> (i32, i32, i32) {
    %c0_i32 = arith.constant 0 : i32
    %c0_i32_0 = arith.constant 0 : i32
    %c0_i32_1 = arith.constant 0 : i32
    return %arg0, %c0_i32, %c0_i32_0 : i32, i32, i32
  }
  func.func @transform_2(%arg0: i32) -> (i32, i32, i32) {
    %c0_i32 = arith.constant 0 : i32
    %c0_i32_0 = arith.constant 0 : i32
    %c0_i32_1 = arith.constant 0 : i32
    return %arg0, %c0_i32, %c0_i32_0 : i32, i32, i32
  }
  func.func @transform_3(%arg0: i32) -> (i32, i32) {
    %c0_i32 = arith.constant 0 : i32
    %c0_i32_0 = arith.constant 0 : i32
    %c0_i32_1 = arith.constant 0 : i32
    return %c0_i32, %c0_i32_0 : i32, i32
  }
}

</mosaic_0001>

<llo_original>
// kernel: moe_forward_pallas.2
$region0: #{moe_forward_pallas.2}
  #allocation0 [shape = 'u32[]', space=smem, size = 0x4, offset = 0x4, fixed_abs, tag = 'smem constant byte address 0x4 - core index']
  #allocation1 [shape = 'u32[72,128]{1,0:T(1,128)}', space=vmem, size = 0x9000, scoped, tag = 'internal scratch']
  %s0 = inlined_call_operand.vmem [shape: f32[16,512], index: 0, kind: input, shape index: {}]
  %s1 = inlined_call_operand.vmem [shape: f32[512,14], index: 1, kind: input, shape index: {}]
  %s2 = inlined_call_operand.vmem [shape: f32[14,4], index: 2, kind: input, shape index: {}]
  %s3 = inlined_call_operand.vmem [shape: f32[16,4], index: 3, kind: output, shape index: {}]
  %s4 = sld [smem:[#allocation0]]
  $region22: #{moe_forward_pallas.2} parent=0
    _
  %s6 = ssub.s32 1, %s4
  %s7 = scalar_select 0, %s6, %s4
  // Predicated region
  $region2: #{moe_forward_pallas.2} parent=0 // pred_check
    _
  $region3: #{moe_forward_pallas.2} parent=0 // pred_check_branch
    %9 = sbr.rel (0) target = $region5
  $region4: #{moe_forward_pallas.2} parent=0 // pred_region
    _
  $region5: #{moe_forward_pallas.2} parent=0 // pred_fallthru
    _
  // Predicated region
  $region6: #{moe_forward_pallas.2} parent=0 // pred_check
    _
  $region7: #{moe_forward_pallas.2} parent=0 // pred_check_branch
    %11 = sbr.rel (0) target = $region9
  $region8: #{moe_forward_pallas.2} parent=0 // pred_region
    _
  $region9: #{moe_forward_pallas.2} parent=0 // pred_fallthru
    _
  // Predicated region
  $region10: #{moe_forward_pallas.2} parent=0 // pred_check
    _
  $region11: #{moe_forward_pallas.2} parent=0 // pred_check_branch
    %13 = sbr.rel (0) target = $region13
  $region12: #{moe_forward_pallas.2} parent=0 // pred_region
    _
  $region13: #{moe_forward_pallas.2} parent=0 // pred_fallthru
    _
  %v14 = vld [vmem:[%s0] sm:$0xff]
  %v15 = vld [vmem:[%s0 + $0x8] sm:$0xff]
  %v16 = vld [vmem:[%s0 + $0x10] sm:$0xff]
  %v17 = vld [vmem:[%s0 + $0x18] sm:$0xff]
  %v18 = vld [vmem:[%s0 + $0x20] sm:$0xff]
  %v19 = vld [vmem:[%s0 + $0x28] sm:$0xff]
  %v20 = vld [vmem:[%s0 + $0x30] sm:$0xff]
  %v21 = vld [vmem:[%s0 + $0x38] sm:$0xff]
  %v22 = vld [vmem:[%s1] sm:$0xff]
  %v23 = vld [vmem:[%s1 + $0x8] sm:$0xff]
  %v24 = vld [vmem:[%s1 + $0x10] sm:$0xff]
  %v25 = vld [vmem:[%s1 + $0x18] sm:$0xff]
  %v26 = vld [vmem:[%s1 + $0x20] sm:$0xff]
  %v27 = vld [vmem:[%s1 + $0x28] sm:$0xff]
  %v28 = vld [vmem:[%s1 + $0x30] sm:$0xff]
  %v29 = vld [vmem:[%s1 + $0x38] sm:$0xff]
  %v30 = vld [vmem:[%s1 + $0x40] sm:$0xff]
  %v31 = vld [vmem:[%s1 + $0x48] sm:$0xff]
  %v32 = vld [vmem:[%s1 + $0x50] sm:$0xff]
  %v33 = vld [vmem:[%s1 + $0x58] sm:$0xff]
  %v34 = vld [vmem:[%s1 + $0x60] sm:$0xff]
  %v35 = vld [vmem:[%s1 + $0x68] sm:$0xff]
  %v36 = vld [vmem:[%s1 + $0x70] sm:$0xff]
  %v37 = vld [vmem:[%s1 + $0x78] sm:$0xff]
  %v38 = vld [vmem:[%s1 + $0x80] sm:$0xff]
  %v39 = vld [vmem:[%s1 + $0x88] sm:$0xff]
  %v40 = vld [vmem:[%s1 + $0x90] sm:$0xff]
  %v41 = vld [vmem:[%s1 + $0x98] sm:$0xff]
  %v42 = vld [vmem:[%s1 + $0xa0] sm:$0xff]
  %v43 = vld [vmem:[%s1 + $0xa8] sm:$0xff]
  %v44 = vld [vmem:[%s1 + $0xb0] sm:$0xff]
  %v45 = vld [vmem:[%s1 + $0xb8] sm:$0xff]
  %v46 = vld [vmem:[%s1 + $0xc0] sm:$0xff]
  %v47 = vld [vmem:[%s1 + $0xc8] sm:$0xff]
  %v48 = vld [vmem:[%s1 + $0xd0] sm:$0xff]
  %v49 = vld [vmem:[%s1 + $0xd8] sm:$0xff]
  %v50 = vld [vmem:[%s1 + $0xe0] sm:$0xff]
  %v51 = vld [vmem:[%s1 + $0xe8] sm:$0xff]
  %v52 = vld [vmem:[%s1 + $0xf0] sm:$0xff]
  %v53 = vld [vmem:[%s1 + $0xf8] sm:$0xff]
  %v54 = vld [vmem:[%s1 + $0x100] sm:$0xff]
  %v55 = vld [vmem:[%s1 + $0x108] sm:$0xff]
  %v56 = vld [vmem:[%s1 + $0x110] sm:$0xff]
  %v57 = vld [vmem:[%s1 + $0x118] sm:$0xff]
  %v58 = vld [vmem:[%s1 + $0x120] sm:$0xff]
  %v59 = vld [vmem:[%s1 + $0x128] sm:$0xff]
  %v60 = vld [vmem:[%s1 + $0x130] sm:$0xff]
  %v61 = vld [vmem:[%s1 + $0x138] sm:$0xff]
  %v62 = vld [vmem:[%s1 + $0x140] sm:$0xff]
  %v63 = vld [vmem:[%s1 + $0x148] sm:$0xff]
  %v64 = vld [vmem:[%s1 + $0x150] sm:$0xff]
  %v65 = vld [vmem:[%s1 + $0x158] sm:$0xff]
  %v66 = vld [vmem:[%s1 + $0x160] sm:$0xff]
  %v67 = vld [vmem:[%s1 + $0x168] sm:$0xff]
  %v68 = vld [vmem:[%s1 + $0x170] sm:$0xff]
  %v69 = vld [vmem:[%s1 + $0x178] sm:$0xff]
  %v70 = vld [vmem:[%s1 + $0x180] sm:$0xff]
  %v71 = vld [vmem:[%s1 + $0x188] sm:$0xff]
  %v72 = vld [vmem:[%s1 + $0x190] sm:$0xff]
  %v73 = vld [vmem:[%s1 + $0x198] sm:$0xff]
  %v74 = vld [vmem:[%s1 + $0x1a0] sm:$0xff]
  %v75 = vld [vmem:[%s1 + $0x1a8] sm:$0xff]
  %v76 = vld [vmem:[%s1 + $0x1b0] sm:$0xff]
  %v77 = vld [vmem:[%s1 + $0x1b8] sm:$0xff]
  %v78 = vld [vmem:[%s1 + $0x1c0] sm:$0xff]
  %v79 = vld [vmem:[%s1 + $0x1c8] sm:$0xff]
  %v80 = vld [vmem:[%s1 + $0x1d0] sm:$0xff]
  %v81 = vld [vmem:[%s1 + $0x1d8] sm:$0xff]
  %v82 = vld [vmem:[%s1 + $0x1e0] sm:$0xff]
  %v83 = vld [vmem:[%s1 + $0x1e8] sm:$0xff]
  %v84 = vld [vmem:[%s1 + $0x1f0] sm:$0xff]
  %v85 = vld [vmem:[%s1 + $0x1f8] sm:$0xff]
  %86 = vmatpush.msra.mxu0 %v37
  %87 = vmatpush.msra.mxu0 %v36
  %88 = vmatpush.msra.mxu0 %v35
  %89 = vmatpush.msra.mxu0 %v34
  %90 = vmatpush.msra.mxu0 %v33
  %91 = vmatpush.msra.mxu0 %v32
  %92 = vmatpush.msra.mxu0 %v31
  %93 = vmatpush.msra.mxu0 %v30
  %94 = vmatpush.msra.mxu0 %v29
  %95 = vmatpush.msra.mxu0 %v28
  %96 = vmatpush.msra.mxu0 %v27
  %97 = vmatpush.msra.mxu0 %v26
  %98 = vmatpush.msra.mxu0 %v25
  %99 = vmatpush.msra.mxu0 %v24
  %100 = vmatpush.msra.mxu0 %v23
  %101 = vmatpush.msra.mxu0 %v22
  %102 = vmatmul.f32.gmra.mxu0 %v14
  %v103 = vpop.f32.mrf.mxu0
  %v104 = vadd.f32 0.0, %v103
  %105 = vmatmul.f32.gmra.mxu0 %v18
  %v106 = vpop.f32.mrf.mxu0
  %v107 = vadd.f32 0.0, %v106
  %108 = vdwg.mxu0
  %109 = vmatpush.msra.mxu0 %v53
  %110 = vmatpush.msra.mxu0 %v52
  %111 = vmatpush.msra.mxu0 %v51
  %112 = vmatpush.msra.mxu0 %v50
  %113 = vmatpush.msra.mxu0 %v49
  %114 = vmatpush.msra.mxu0 %v48
  %115 = vmatpush.msra.mxu0 %v47
  %116 = vmatpush.msra.mxu0 %v46
  %117 = vmatpush.msra.mxu0 %v45
  %118 = vmatpush.msra.mxu0 %v44
  %119 = vmatpush.msra.mxu0 %v43
  %120 = vmatpush.msra.mxu0 %v42
  %121 = vmatpush.msra.mxu0 %v41
  %122 = vmatpush.msra.mxu0 %v40
  %123 = vmatpush.msra.mxu0 %v39
  %124 = vmatpush.msra.mxu0 %v38
  %125 = vmatmul.f32.gmra.mxu0 %v15
  %v126 = vpop.f32.mrf.mxu0
  %v127 = vadd.f32 %v104, %v126
  %128 = vmatmul.f32.gmra.mxu0 %v19
  %v129 = vpop.f32.mrf.mxu0
  %v130 = vadd.f32 %v107, %v129
  %131 = vdwg.mxu0
  %132 = vmatpush.msra.mxu0 %v69
  %133 = vmatpush.msra.mxu0 %v68
  %134 = vmatpush.msra.mxu0 %v67
  %135 = vmatpush.msra.mxu0 %v66
  %136 = vmatpush.msra.mxu0 %v65
  %137 = vmatpush.msra.mxu0 %v64
  %138 = vmatpush.msra.mxu0 %v63
  %139 = vmatpush.msra.mxu0 %v62
  %140 = vmatpush.msra.mxu0 %v61
  %141 = vmatpush.msra.mxu0 %v60
  %142 = vmatpush.msra.mxu0 %v59
  %143 = vmatpush.msra.mxu0 %v58
  %144 = vmatpush.msra.mxu0 %v57
  %145 = vmatpush.msra.mxu0 %v56
  %146 = vmatpush.msra.mxu0 %v55
  %147 = vmatpush.msra.mxu0 %v54
  %148 = vmatmul.f32.gmra.mxu0 %v16
  %v149 = vpop.f32.mrf.mxu0
  %v150 = vadd.f32 %v127, %v149
  %151 = vmatmul.f32.gmra.mxu0 %v20
  %v152 = vpop.f32.mrf.mxu0
  %v153 = vadd.f32 %v130, %v152
  %154 = vdwg.mxu0
  %155 = vmatpush.msra.mxu0 %v85
  %156 = vmatpush.msra.mxu0 %v84
  %157 = vmatpush.msra.mxu0 %v83
  %158 = vmatpush.msra.mxu0 %v82
  %159 = vmatpush.msra.mxu0 %v81
  %160 = vmatpush.msra.mxu0 %v80
  %161 = vmatpush.msra.mxu0 %v79
  %162 = vmatpush.msra.mxu0 %v78
  %163 = vmatpush.msra.mxu0 %v77
  %164 = vmatpush.msra.mxu0 %v76
  %165 = vmatpush.msra.mxu0 %v75
  %166 = vmatpush.msra.mxu0 %v74
  %167 = vmatpush.msra.mxu0 %v73
  %168 = vmatpush.msra.mxu0 %v72
  %169 = vmatpush.msra.mxu0 %v71
  %170 = vmatpush.msra.mxu0 %v70
  %171 = vmatmul.f32.gmra.mxu0 %v17
  %v172 = vpop.f32.mrf.mxu0
  %v173 = vadd.f32 %v150, %v172
  %174 = vmatmul.f32.gmra.mxu0 %v21
  %v175 = vpop.f32.mrf.mxu0
  %v176 = vadd.f32 %v153, %v175
  %177 = vdwg.mxu0
  %v178 = vmax.f32 %v173, 0.0
  %v179 = vmax.f32 %v176, 0.0
  %v180 = vld [vmem:[%s2] sm:$0xff]
  %v181 = vld [vmem:[%s2 + $0x8] sm:$0x3f]
  %vm182 = vcmask 113664
  %v184 = vsel %vm182, %v178, 0
  %v187 = vsel %vm182, %v179, 0
  %vm189 = vcmask 1045504
  %v191 = vsel %vm189, %v181, 0
  %193 = vmatpush.msra.mxu0 0.0
  %194 = vmatpush.msra.mxu0 0.0
  %195 = vmatpush.msra.mxu0 0.0
  %196 = vmatpush.msra.mxu0 0.0
  %197 = vmatpush.msra.mxu0 0.0
  %198 = vmatpush.msra.mxu0 0.0
  %199 = vmatpush.msra.mxu0 0.0
  %200 = vmatpush.msra.mxu0 0.0
  %201 = vmatpush.msra.mxu0 0.0
  %202 = vmatpush.msra.mxu0 0.0
  %203 = vmatpush.msra.mxu0 0.0
  %204 = vmatpush.msra.mxu0 0.0
  %205 = vmatpush.msra.mxu0 0.0
  %206 = vmatpush.msra.mxu0 0.0
  %207 = vmatpush.msra.mxu0 %v191
  %208 = vmatpush.msra.mxu0 %v180
  %209 = vmatmul.f32.gmra.mxu0 %v184
  %v210 = vpop.f32.mrf.mxu0
  %v211 = vadd.f32 0.0, %v210
  %212 = vmatmul.f32.gmra.mxu0 %v187
  %v213 = vpop.f32.mrf.mxu0
  %v214 = vadd.f32 0.0, %v213
  %215 = vdwg.mxu0
  %v216 = vmax.f32 %v211, 0.0
  %v217 = vmax.f32 %v214, 0.0
  %vm218 = vcmask 31744
  %v219 = vsel %vm218, %v216, -inf
  %220 = vmax.xlane.f32.xlu0 %v219
  %v221 = vpop.xlane.xlu0 %220
  %v222 = vsel %vm218, %v217, -inf
  %223 = vmax.xlane.f32.xlu0 %v222
  %v224 = vpop.xlane.xlu0 %223
  %v225 = vsub.f32 %v216, %v221
  %v226 = vsub.f32 %v217, %v224
  %v227 = vmul.f32 %v225, 1.442695
  %v228 = vpow.pop %v227
  %v229 = vmul.f32 %v226, 1.442695
  %v230 = vpow.pop %v229
  %v231 = vsel %vm218, %v228, 0.0
  %232 = vadd.xlane.f32.xlu0 %v231
  %v233 = vpop.xlane.xlu0 %232
  %v234 = vsel %vm218, %v230, 0.0
  %235 = vadd.xlane.f32.xlu0 %v234
  %v236 = vpop.xlane.xlu0 %235
  %v237 = vrcp.pop %v233
  %v238 = vmul.f32 %v233, %v237
  %v239 = vsub.f32 1.0, %v238
  %v240 = vmul.f32 %v237, %v239
  %v241 = vadd.f32 %v237, %v240
  %vm242 = vweird.f32 %v233
  %vm243 = vweird.f32 %v237
  %vm244 = vmor %vm242, %vm243
  %v245 = vsel %vm244, %v237, %v241
  %v246 = vand.u32 2147483647, %v233
  %vm247 = vcmp.eq.f32.partialorder %v246, 8.507059e+37
  %v248 = vand.u32 %v233, 2147483648
  %v249 = vor.u32 1.1754944e-38, %v248
  %v250 = vsel %vm247, %v249, %v245
  %v251 = vmul.f32 %v228, %v250
  %v252 = vrcp.pop %v236
  %v253 = vmul.f32 %v236, %v252
  %v254 = vsub.f32 1.0, %v253
  %v255 = vmul.f32 %v252, %v254
  %v256 = vadd.f32 %v252, %v255
  %vm257 = vweird.f32 %v236
  %vm258 = vweird.f32 %v252
  %vm259 = vmor %vm257, %vm258
  %v260 = vsel %vm259, %v252, %v256
  %v261 = vand.u32 2147483647, %v236
  %vm262 = vcmp.eq.f32.partialorder %v261, 8.507059e+37
  %v263 = vand.u32 %v236, 2147483648
  %v264 = vor.u32 1.1754944e-38, %v263
  %v265 = vsel %vm262, %v264, %v260
  %v266 = vmul.f32 %v230, %v265
  %267 = vst.msk [vmem:[%s3] sm:$0xff] %vm218, %v251
  %268 = vst.msk [vmem:[%s3 + $0x8] sm:$0xff] %vm218, %v266
  // Predicated region
  $region14: #{moe_forward_pallas.2} parent=0 // pred_check
    _
  $region15: #{moe_forward_pallas.2} parent=0 // pred_check_branch
    %270 = sbr.rel (0) target = $region17
  $region16: #{moe_forward_pallas.2} parent=0 // pred_region
    _
  $region17: #{moe_forward_pallas.2} parent=0 // pred_fallthru
    _
  // Predicated region
  $region18: #{moe_forward_pallas.2} parent=0 // pred_check
    _
  $region19: #{moe_forward_pallas.2} parent=0 // pred_check_branch
    %272 = sbr.rel (0) target = $region21
  $region20: #{moe_forward_pallas.2} parent=0 // pred_region
    _
  $region21: #{moe_forward_pallas.2} parent=0 // pred_fallthru
    _

// kernel: moe_forward_pallas.3
$region0: #{moe_forward_pallas.3}
  #allocation0 [shape = 'u32[]', space=smem, size = 0x4, offset = 0x4, fixed_abs, tag = 'smem constant byte address 0x4 - core index']
  #allocation1 [shape = 'u32[72,128]{1,0:T(1,128)}', space=vmem, size = 0x9000, scoped, tag = 'internal scratch']
  %s0 = inlined_call_operand.vmem [shape: bf16[16,512], index: 0, kind: input, shape index: {}]
  %s1 = inlined_call_operand.vmem [shape: f32[4,16,1], index: 1, kind: input, shape index: {}]
  %s2 = inlined_call_operand.hbm [shape: bf16[4,512,768], index: 2, kind: input, shape index: {}]
  %s3 = inlined_call_operand.vmem [shape: f32[16,768], index: 3, kind: output, shape index: {}]
  %s4 = sld [smem:[#allocation0]]
  $region30: #{moe_forward_pallas.3} parent=0
    _
  %s6 = ssub.s32 1, %s4
  %s7 = scalar_select 0, %s6, %s4
  $region1: #{moe_forward_pallas.3} parent=0
    #allocation2 [shape = 'u8[3145728]{0}', space=vmem, size = 0x300000, scoped, tag = 'input window, operand 2, single buffered']
    #allocation3 [shape = 's32[1]{0}', space=sflag, size = 0x4, scoped, tag = 'scoped memory for moe_forward_pallas.3']
    %8 = vsyncpa [#allocation3], 0
    // Predicated region
    $region2: #{moe_forward_pallas.3} parent=1 // pred_check
      _
    $region3: #{moe_forward_pallas.3} parent=1 // pred_check_branch
      %10 = sbr.rel (0) target = $region5
    $region4: #{moe_forward_pallas.3} parent=1 // pred_region
      _
    $region5: #{moe_forward_pallas.3} parent=1 // pred_fallthru
      _
    // Predicated region
    $region6: #{moe_forward_pallas.3} parent=1 // pred_check
      _
    $region7: #{moe_forward_pallas.3} parent=1 // pred_check_branch
      %12 = sbr.rel (0) target = $region9
    $region8: #{moe_forward_pallas.3} parent=1 // pred_region
      _
    $region9: #{moe_forward_pallas.3} parent=1 // pred_fallthru
      _
    // Predicated region
    $region10: #{moe_forward_pallas.3} parent=1 // pred_check
      _
    $region11: #{moe_forward_pallas.3} parent=1 // pred_check_branch
      %14 = sbr.rel (0) target = $region13
    $region12: #{moe_forward_pallas.3} parent=1 // pred_region
      %16 = vsyncadd [#allocation3], 0
      %s17 = sshll.u32 %s2, 4
      %s18 = int_to_ptr.hbm [resolvable:$true] %s17
      %s19 = sshll.u32 [#allocation2], 4
      %s20 = int_to_ptr.vmem [resolvable:$true] %s19
      %25 = dma.hbm_to_vmem [thread:$0]  %s18, 98304, %s20, [#allocation3], 384, 384, 24
    $region13: #{moe_forward_pallas.3} parent=1 // pred_fallthru
      _
    // Predicated region
    $region14: #{moe_forward_pallas.3} parent=1 // pred_check
      _
    $region15: #{moe_forward_pallas.3} parent=1 // pred_check_branch
      %27 = sbr.rel (0) target = $region17
    $region16: #{moe_forward_pallas.3} parent=1 // pred_region
      %29 = dma.done [#allocation3], 98304
    $region17: #{moe_forward_pallas.3} parent=1 // pred_fallthru
      _
    %p30 = scmp.eq.s32.totalorder 0, 0
    // Predicated region
    $region18: #{moe_forward_pallas.3} parent=1 // pred_check
      %p31 = pneg %p30
    $region19: #{moe_forward_pallas.3} parent=1 // pred_check_branch
      %33 = sbr.rel (%p31) target = $region21
    $region20: #{moe_forward_pallas.3} parent=1 // pred_region
      %34 = vst [vmem:[%s3] sm:$0xff] 0.0
      %35 = vst [vmem:[%s3 + $0x8] sm:$0xff] 0.0
      %36 = vst [vmem:[%s3 + $0x10] sm:$0xff] 0.0
      %37 = vst [vmem:[%s3 + $0x18] sm:$0xff] 0.0
      %38 = vst [vmem:[%s3 + $0x20] sm:$0xff] 0.0
      %39 = vst [vmem:[%s3 + $0x28] sm:$0xff] 0.0
      %40 = vst [vmem:[%s3 + $0x30] sm:$0xff] 0.0
      %41 = vst [vmem:[%s3 + $0x38] sm:$0xff] 0.0
      %42 = vst [vmem:[%s3 + $0x40] sm:$0xff] 0.0
      %43 = vst [vmem:[%s3 + $0x48] sm:$0xff] 0.0
      %44 = vst [vmem:[%s3 + $0x50] sm:$0xff] 0.0
      %45 = vst [vmem:[%s3 + $0x58] sm:$0xff] 0.0
    $region21: #{moe_forward_pallas.3} parent=1 // pred_fallthru
      _
    %v46 = vld [vmem:[%s0] sm:$0xff]
    %v47 = vld [vmem:[%s0 + $0x8] sm:$0xff]
    %v48 = vld [vmem:[%s0 + $0x10] sm:$0xff]
    %v49 = vld [vmem:[%s0 + $0x18] sm:$0xff]
    %v50 = vld [vmem:[#allocation2] sm:$0xff]
    %v51 = vld [vmem:[#allocation2 + $0x8] sm:$0xff]
    %v52 = vld [vmem:[#allocation2 + $0x10] sm:$0xff]
    %v53 = vld [vmem:[#allocation2 + $0x18] sm:$0xff]
    %v54 = vld [vmem:[#allocation2 + $0x20] sm:$0xff]
    %v55 = vld [vmem:[#allocation2 + $0x28] sm:$0xff]
    %v56 = vld [vmem:[#allocation2 + $0x30] sm:$0xff]
    %v57 = vld [vmem:[#allocation2 + $0x38] sm:$0xff]
    %v58 = vld [vmem:[#allocation2 + $0x40] sm:$0xff]
    %v59 = vld [vmem:[#allocation2 + $0x48] sm:$0xff]
    %v60 = vld [vmem:[#allocation2 + $0x50] sm:$0xff]
    %v61 = vld [vmem:[#allocation2 + $0x58] sm:$0xff]
    %v62 = vld [vmem:[#allocation2 + $0x60] sm:$0xff]
    %v63 = vld [vmem:[#allocation2 + $0x68] sm:$0xff]
    %v64 = vld [vmem:[#allocation2 + $0x70] sm:$0xff]
    %v65 = vld [vmem:[#allocation2 + $0x78] sm:$0xff]
    %v66 = vld [vmem:[#allocation2 + $0x80] sm:$0xff]
    %v67 = vld [vmem:[#allocation2 + $0x88] sm:$0xff]
    %v68 = vld [vmem:[#allocation2 + $0x90] sm:$0xff]
    %v69 = vld [vmem:[#allocation2 + $0x98] sm:$0xff]
    %v70 = vld [vmem:[#allocation2 + $0xa0] sm:$0xff]
    %v71 = vld [vmem:[#allocation2 + $0xa8] sm:$0xff]
    %v72 = vld [vmem:[#allocation2 + $0xb0] sm:$0xff]
    %v73 = vld [vmem:[#allocation2 + $0xb8] sm:$0xff]
    %v74 = vld [vmem:[#allocation2 + $0xc0] sm:$0xff]
    %v75 = vld [vmem:[#allocation2 + $0xc8] sm:$0xff]
    %v76 = vld [vmem:[#allocation2 + $0xd0] sm:$0xff]
    %v77 = vld [vmem:[#allocation2 + $0xd8] sm:$0xff]
    %v78 = vld [vmem:[#allocation2 + $0xe0] sm:$0xff]
    %v79 = vld [vmem:[#allocation2 + $0xe8] sm:$0xff]
    %v80 = vld [vmem:[#allocation2 + $0xf0] sm:$0xff]
    %v81 = vld [vmem:[#allocation2 + $0xf8] sm:$0xff]
    %v82 = vld [vmem:[#allocation2 + $0x100] sm:$0xff]
    %v83 = vld [vmem:[#allocation2 + $0x108] sm:$0xff]
    %v84 = vld [vmem:[#allocation2 + $0x110] sm:$0xff]
    %v85 = vld [vmem:[#allocation2 + $0x118] sm:$0xff]
    %v86 = vld [vmem:[#allocation2 + $0x120] sm:$0xff]
    %v87 = vld [vmem:[#allocation2 + $0x128] sm:$0xff]
    %v88 = vld [vmem:[#allocation2 + $0x130] sm:$0xff]
    %v89 = vld [vmem:[#allocation2 + $0x138] sm:$0xff]
    %v90 = vld [vmem:[#allocation2 + $0x140] sm:$0xff]
    %v91 = vld [vmem:[#allocation2 + $0x148] sm:$0xff]
    %v92 = vld [vmem:[#allocation2 + $0x150] sm:$0xff]
    %v93 = vld [vmem:[#allocation2 + $0x158] sm:$0xff]
    %v94 = vld [vmem:[#allocation2 + $0x160] sm:$0xff]
    %v95 = vld [vmem:[#allocation2 + $0x168] sm:$0xff]
    %v96 = vld [vmem:[#allocation2 + $0x170] sm:$0xff]
    %v97 = vld [vmem:[#allocation2 + $0x178] sm:$0xff]
    %v98 = vld [vmem:[#allocation2 + $0x180] sm:$0xff]
    %v99 = vld [vmem:[#allocation2 + $0x188] sm:$0xff]
    %v100 = vld [vmem:[#allocation2 + $0x190] sm:$0xff]
    %v101 = vld [vmem:[#allocation2 + $0x198] sm:$0xff]
    %v102 = vld [vmem:[#allocation2 + $0x1a0] sm:$0xff]
    %v103 = vld [vmem:[#allocation2 + $0x1a8] sm:$0xff]
    %v104 = vld [vmem:[#allocation2 + $0x1b0] sm:$0xff]
    %v105 = vld [vmem:[#allocation2 + $0x1b8] sm:$0xff]
    %v106 = vld [vmem:[#allocation2 + $0x1c0] sm:$0xff]
    %v107 = vld [vmem:[#allocation2 + $0x1c8] sm:$0xff]
    %v108 = vld [vmem:[#allocation2 + $0x1d0] sm:$0xff]
    %v109 = vld [vmem:[#allocation2 + $0x1d8] sm:$0xff]
    %v110 = vld [vmem:[#allocation2 + $0x1e0] sm:$0xff]
    %v111 = vld [vmem:[#allocation2 + $0x1e8] sm:$0xff]
    %v112 = vld [vmem:[#allocation2 + $0x1f0] sm:$0xff]
    %v113 = vld [vmem:[#allocation2 + $0x1f8] sm:$0xff]
    %v114 = vld [vmem:[#allocation2 + $0x200] sm:$0xff]
    %v115 = vld [vmem:[#allocation2 + $0x208] sm:$0xff]
    %v116 = vld [vmem:[#allocation2 + $0x210] sm:$0xff]
    %v117 = vld [vmem:[#allocation2 + $0x218] sm:$0xff]
    %v118 = vld [vmem:[#allocation2 + $0x220] sm:$0xff]
    %v119 = vld [vmem:[#allocation2 + $0x228] sm:$0xff]
    %v120 = vld [vmem:[#allocation2 + $0x230] sm:$0xff]
    %v121 = vld [vmem:[#allocation2 + $0x238] sm:$0xff]
    %v122 = vld [vmem:[#allocation2 + $0x240] sm:$0xff]
    %v123 = vld [vmem:[#allocation2 + $0x248] sm:$0xff]
    %v124 = vld [vmem:[#allocation2 + $0x250] sm:$0xff]
    %v125 = vld [vmem:[#allocation2 + $0x258] sm:$0xff]
    %v126 = vld [vmem:[#allocation2 + $0x260] sm:$0xff]
    %v127 = vld [vmem:[#allocation2 + $0x268] sm:$0xff]
    %v128 = vld [vmem:[#allocation2 + $0x270] sm:$0xff]
    %v129 = vld [vmem:[#allocation2 + $0x278] sm:$0xff]
    %v130 = vld [vmem:[#allocation2 + $0x280] sm:$0xff]
    %v131 = vld [vmem:[#allocation2 + $0x288] sm:$0xff]
    %v132 = vld [vmem:[#allocation2 + $0x290] sm:$0xff]
    %v133 = vld [vmem:[#allocation2 + $0x298] sm:$0xff]
    %v134 = vld [vmem:[#allocation2 + $0x2a0] sm:$0xff]
    %v135 = vld [vmem:[#allocation2 + $0x2a8] sm:$0xff]
    %v136 = vld [vmem:[#allocation2 + $0x2b0] sm:$0xff]
    %v137 = vld [vmem:[#allocation2 + $0x2b8] sm:$0xff]
    %v138 = vld [vmem:[#allocation2 + $0x2c0] sm:$0xff]
    %v139 = vld [vmem:[#allocation2 + $0x2c8] sm:$0xff]
    %v140 = vld [vmem:[#allocation2 + $0x2d0] sm:$0xff]
    %v141 = vld [vmem:[#allocation2 + $0x2d8] sm:$0xff]
    %v142 = vld [vmem:[#allocation2 + $0x2e0] sm:$0xff]
    %v143 = vld [vmem:[#allocation2 + $0x2e8] sm:$0xff]
    %v144 = vld [vmem:[#allocation2 + $0x2f0] sm:$0xff]
    %v145 = vld [vmem:[#allocation2 + $0x2f8] sm:$0xff]
    %v146 = vld [vmem:[#allocation2 + $0x300] sm:$0xff]
    %v147 = vld [vmem:[#allocation2 + $0x308] sm:$0xff]
    %v148 = vld [vmem:[#allocation2 + $0x310] sm:$0xff]
    %v149 = vld [vmem:[#allocation2 + $0x318] sm:$0xff]
    %v150 = vld [vmem:[#allocation2 + $0x320] sm:$0xff]
    %v151 = vld [vmem:[#allocation2 + $0x328] sm:$0xff]
    %v152 = vld [vmem:[#allocation2 + $0x330] sm:$0xff]
    %v153 = vld [vmem:[#allocation2 + $0x338] sm:$0xff]
    %v154 = vld [vmem:[#allocation2 + $0x340] sm:$0xff]
    %v155 = vld [vmem:[#allocation2 + $0x348] sm:$0xff]
    %v156 = vld [vmem:[#allocation2 + $0x350] sm:$0xff]
    %v157 = vld [vmem:[#allocation2 + $0x358] sm:$0xff]
    %v158 = vld [vmem:[#allocation2 + $0x360] sm:$0xff]
    %v159 = vld [vmem:[#allocation2 + $0x368] sm:$0xff]
    %v160 = vld [vmem:[#allocation2 + $0x370] sm:$0xff]
    %v161 = vld [vmem:[#allocation2 + $0x378] sm:$0xff]
    %v162 = vld [vmem:[#allocation2 + $0x380] sm:$0xff]
    %v163 = vld [vmem:[#allocation2 + $0x388] sm:$0xff]
    %v164 = vld [vmem:[#allocation2 + $0x390] sm:$0xff]
    %v165 = vld [vmem:[#allocation2 + $0x398] sm:$0xff]
    %v166 = vld [vmem:[#allocation2 + $0x3a0] sm:$0xff]
    %v167 = vld [vmem:[#allocation2 + $0x3a8] sm:$0xff]
    %v168 = vld [vmem:[#allocation2 + $0x3b0] sm:$0xff]
    %v169 = vld [vmem:[#allocation2 + $0x3b8] sm:$0xff]
    %v170 = vld [vmem:[#allocation2 + $0x3c0] sm:$0xff]
    %v171 = vld [vmem:[#allocation2 + $0x3c8] sm:$0xff]
    %v172 = vld [vmem:[#allocation2 + $0x3d0] sm:$0xff]
    %v173 = vld [vmem:[#allocation2 + $0x3d8] sm:$0xff]
    %v174 = vld [vmem:[#allocation2 + $0x3e0] sm:$0xff]
    %v175 = vld [vmem:[#allocation2 + $0x3e8] sm:$0xff]
    %v176 = vld [vmem:[#allocation2 + $0x3f0] sm:$0xff]
    %v177 = vld [vmem:[#allocation2 + $0x3f8] sm:$0xff]
    %v178 = vld [vmem:[#allocation2 + $0x400] sm:$0xff]
    %v179 = vld [vmem:[#allocation2 + $0x408] sm:$0xff]
    %v180 = vld [vmem:[#allocation2 + $0x410] sm:$0xff]
    %v181 = vld [vmem:[#allocation2 + $0x418] sm:$0xff]
    %v182 = vld [vmem:[#allocation2 + $0x420] sm:$0xff]
    %v183 = vld [vmem:[#allocation2 + $0x428] sm:$0xff]
    %v184 = vld [vmem:[#allocation2 + $0x430] sm:$0xff]
    %v185 = vld [vmem:[#allocation2 + $0x438] sm:$0xff]
    %v186 = vld [vmem:[#allocation2 + $0x440] sm:$0xff]
    %v187 = vld [vmem:[#allocation2 + $0x448] sm:$0xff]
    %v188 = vld [vmem:[#allocation2 + $0x450] sm:$0xff]
    %v189 = vld [vmem:[#allocation2 + $0x458] sm:$0xff]
    %v190 = vld [vmem:[#allocation2 + $0x460] sm:$0xff]
    %v191 = vld [vmem:[#allocation2 + $0x468] sm:$0xff]
    %v192 = vld [vmem:[#allocation2 + $0x470] sm:$0xff]
    %v193 = vld [vmem:[#allocation2 + $0x478] sm:$0xff]
    %v194 = vld [vmem:[#allocation2 + $0x480] sm:$0xff]
    %v195 = vld [vmem:[#allocation2 + $0x488] sm:$0xff]
    %v196 = vld [vmem:[#allocation2 + $0x490] sm:$0xff]
    %v197 = vld [vmem:[#allocation2 + $0x498] sm:$0xff]
    %v198 = vld [vmem:[#allocation2 + $0x4a0] sm:$0xff]
    %v199 = vld [vmem:[#allocation2 + $0x4a8] sm:$0xff]
    %v200 = vld [vmem:[#allocation2 + $0x4b0] sm:$0xff]
    %v201 = vld [vmem:[#allocation2 + $0x4b8] sm:$0xff]
    %v202 = vld [vmem:[#allocation2 + $0x4c0] sm:$0xff]
    %v203 = vld [vmem:[#allocation2 + $0x4c8] sm:$0xff]
    %v204 = vld [vmem:[#allocation2 + $0x4d0] sm:$0xff]
    %v205 = vld [vmem:[#allocation2 + $0x4d8] sm:$0xff]
    %v206 = vld [vmem:[#allocation2 + $0x4e0] sm:$0xff]
    %v207 = vld [vmem:[#allocation2 + $0x4e8] sm:$0xff]
    %v208 = vld [vmem:[#allocation2 + $0x4f0] sm:$0xff]
    %v209 = vld [vmem:[#allocation2 + $0x4f8] sm:$0xff]
    %v210 = vld [vmem:[#allocation2 + $0x500] sm:$0xff]
    %v211 = vld [vmem:[#allocation2 + $0x508] sm:$0xff]
    %v212 = vld [vmem:[#allocation2 + $0x510] sm:$0xff]
    %v213 = vld [vmem:[#allocation2 + $0x518] sm:$0xff]
    %v214 = vld [vmem:[#allocation2 + $0x520] sm:$0xff]
    %v215 = vld [vmem:[#allocation2 + $0x528] sm:$0xff]
    %v216 = vld [vmem:[#allocation2 + $0x530] sm:$0xff]
    %v217 = vld [vmem:[#allocation2 + $0x538] sm:$0xff]
    %v218 = vld [vmem:[#allocation2 + $0x540] sm:$0xff]
    %v219 = vld [vmem:[#allocation2 + $0x548] sm:$0xff]
    %v220 = vld [vmem:[#allocation2 + $0x550] sm:$0xff]
    %v221 = vld [vmem:[#allocation2 + $0x558] sm:$0xff]
    %v222 = vld [vmem:[#allocation2 + $0x560] sm:$0xff]
    %v223 = vld [vmem:[#allocation2 + $0x568] sm:$0xff]
    %v224 = vld [vmem:[#allocation2 + $0x570] sm:$0xff]
    %v225 = vld [vmem:[#allocation2 + $0x578] sm:$0xff]
    %v226 = vld [vmem:[#allocation2 + $0x580] sm:$0xff]
    %v227 = vld [vmem:[#allocation2 + $0x588] sm:$0xff]
    %v228 = vld [vmem:[#allocation2 + $0x590] sm:$0xff]
    %v229 = vld [vmem:[#allocation2 + $0x598] sm:$0xff]
    %v230 = vld [vmem:[#allocation2 + $0x5a0] sm:$0xff]
    %v231 = vld [vmem:[#allocation2 + $0x5a8] sm:$0xff]
    %v232 = vld [vmem:[#allocation2 + $0x5b0] sm:$0xff]
    %v233 = vld [vmem:[#allocation2 + $0x5b8] sm:$0xff]
    %v234 = vld [vmem:[#allocation2 + $0x5c0] sm:$0xff]
    %v235 = vld [vmem:[#allocation2 + $0x5c8] sm:$0xff]
    %v236 = vld [vmem:[#allocation2 + $0x5d0] sm:$0xff]
    %v237 = vld [vmem:[#allocation2 + $0x5d8] sm:$0xff]
    %v238 = vld [vmem:[#allocation2 + $0x5e0] sm:$0xff]
    %v239 = vld [vmem:[#allocation2 + $0x5e8] sm:$0xff]
    %v240 = vld [vmem:[#allocation2 + $0x5f0] sm:$0xff]
    %v241 = vld [vmem:[#allocation2 + $0x5f8] sm:$0xff]
    %v246 = vunpack.c.l.b16 %v46
    %v247 = vunpack.c.h.b16 %v46
    %v248 = vunpack.c.l.b16 %v47
    %v249 = vunpack.c.h.b16 %v47
    %v250 = vunpack.c.l.b16 %v48
    %v251 = vunpack.c.h.b16 %v48
    %v252 = vunpack.c.l.b16 %v49
    %v253 = vunpack.c.h.b16 %v49
    %v254 = vpack.c.b16 %v250, %v246
    %v255 = vpack.c.b16 %v251, %v247
    %v256 = vpack.c.b16 %v252, %v248
    %v257 = vpack.c.b16 %v253, %v249
    %v454 = vunpack.c.l.b16 %v50
    %v455 = vunpack.c.h.b16 %v50
    %v456 = vunpack.c.l.b16 %v51
    %v457 = vunpack.c.h.b16 %v51
    %v458 = vunpack.c.l.b16 %v52
    %v459 = vunpack.c.h.b16 %v52
    %v460 = vunpack.c.l.b16 %v53
    %v461 = vunpack.c.h.b16 %v53
    %v462 = vunpack.c.l.b16 %v54
    %v463 = vunpack.c.h.b16 %v54
    %v464 = vunpack.c.l.b16 %v55
    %v465 = vunpack.c.h.b16 %v55
    %v466 = vunpack.c.l.b16 %v56
    %v467 = vunpack.c.h.b16 %v56
    %v468 = vunpack.c.l.b16 %v57
    %v469 = vunpack.c.h.b16 %v57
    %v470 = vunpack.c.l.b16 %v58
    %v471 = vunpack.c.h.b16 %v58
    %v472 = vunpack.c.l.b16 %v59
    %v473 = vunpack.c.h.b16 %v59
    %v474 = vunpack.c.l.b16 %v60
    %v475 = vunpack.c.h.b16 %v60
    %v476 = vunpack.c.l.b16 %v61
    %v477 = vunpack.c.h.b16 %v61
    %v478 = vunpack.c.l.b16 %v62
    %v479 = vunpack.c.h.b16 %v62
    %v480 = vunpack.c.l.b16 %v63
    %v481 = vunpack.c.h.b16 %v63
    %v482 = vunpack.c.l.b16 %v64
    %v483 = vunpack.c.h.b16 %v64
    %v484 = vunpack.c.l.b16 %v65
    %v485 = vunpack.c.h.b16 %v65
    %v486 = vunpack.c.l.b16 %v66
    %v487 = vunpack.c.h.b16 %v66
    %v488 = vunpack.c.l.b16 %v67
    %v489 = vunpack.c.h.b16 %v67
    %v490 = vunpack.c.l.b16 %v68
    %v491 = vunpack.c.h.b16 %v68
    %v492 = vunpack.c.l.b16 %v69
    %v493 = vunpack.c.h.b16 %v69
    %v494 = vunpack.c.l.b16 %v70
    %v495 = vunpack.c.h.b16 %v70
    %v496 = vunpack.c.l.b16 %v71
    %v497 = vunpack.c.h.b16 %v71
    %v498 = vunpack.c.l.b16 %v72
    %v499 = vunpack.c.h.b16 %v72
    %v500 = vunpack.c.l.b16 %v73
    %v501 = vunpack.c.h.b16 %v73
    %v502 = vunpack.c.l.b16 %v74
    %v503 = vunpack.c.h.b16 %v74
    %v504 = vunpack.c.l.b16 %v75
    %v505 = vunpack.c.h.b16 %v75
    %v506 = vunpack.c.l.b16 %v76
    %v507 = vunpack.c.h.b16 %v76
    %v508 = vunpack.c.l.b16 %v77
    %v509 = vunpack.c.h.b16 %v77
    %v510 = vunpack.c.l.b16 %v78
    %v511 = vunpack.c.h.b16 %v78
    %v512 = vunpack.c.l.b16 %v79
    %v513 = vunpack.c.h.b16 %v79
    %v514 = vunpack.c.l.b16 %v80
    %v515 = vunpack.c.h.b16 %v80
    %v516 = vunpack.c.l.b16 %v81
    %v517 = vunpack.c.h.b16 %v81
    %v518 = vunpack.c.l.b16 %v82
    %v519 = vunpack.c.h.b16 %v82
    %v520 = vunpack.c.l.b16 %v83
    %v521 = vunpack.c.h.b16 %v83
    %v522 = vunpack.c.l.b16 %v84
    %v523 = vunpack.c.h.b16 %v84
    %v524 = vunpack.c.l.b16 %v85
    %v525 = vunpack.c.h.b16 %v85
    %v526 = vunpack.c.l.b16 %v86
    %v527 = vunpack.c.h.b16 %v86
    %v528 = vunpack.c.l.b16 %v87
    %v529 = vunpack.c.h.b16 %v87
    %v530 = vunpack.c.l.b16 %v88
    %v531 = vunpack.c.h.b16 %v88
    %v532 = vunpack.c.l.b16 %v89
    %v533 = vunpack.c.h.b16 %v89
    %v534 = vunpack.c.l.b16 %v90
    %v535 = vunpack.c.h.b16 %v90
    %v536 = vunpack.c.l.b16 %v91
    %v537 = vunpack.c.h.b16 %v91
    %v538 = vunpack.c.l.b16 %v92
    %v539 = vunpack.c.h.b16 %v92
    %v540 = vunpack.c.l.b16 %v93
    %v541 = vunpack.c.h.b16 %v93
    %v542 = vunpack.c.l.b16 %v94
    %v543 = vunpack.c.h.b16 %v94
    %v544 = vunpack.c.l.b16 %v95
    %v545 = vunpack.c.h.b16 %v95
    %v546 = vunpack.c.l.b16 %v96
    %v547 = vunpack.c.h.b16 %v96
    %v548 = vunpack.c.l.b16 %v97
    %v549 = vunpack.c.h.b16 %v97
    %v550 = vunpack.c.l.b16 %v98
    %v551 = vunpack.c.h.b16 %v98
    %v552 = vunpack.c.l.b16 %v99
    %v553 = vunpack.c.h.b16 %v99
    %v554 = vunpack.c.l.b16 %v100
    %v555 = vunpack.c.h.b16 %v100
    %v556 = vunpack.c.l.b16 %v101
    %v557 = vunpack.c.h.b16 %v101
    %v558 = vunpack.c.l.b16 %v102
    %v559 = vunpack.c.h.b16 %v102
    %v560 = vunpack.c.l.b16 %v103
    %v561 = vunpack.c.h.b16 %v103
    %v562 = vunpack.c.l.b16 %v104
    %v563 = vunpack.c.h.b16 %v104
    %v564 = vunpack.c.l.b16 %v105
    %v565 = vunpack.c.h.b16 %v105
    %v566 = vunpack.c.l.b16 %v106
    %v567 = vunpack.c.h.b16 %v106
    %v568 = vunpack.c.l.b16 %v107
    %v569 = vunpack.c.h.b16 %v107
    %v570 = vunpack.c.l.b16 %v108
    %v571 = vunpack.c.h.b16 %v108
    %v572 = vunpack.c.l.b16 %v109
    %v573 = vunpack.c.h.b16 %v109
    %v574 = vunpack.c.l.b16 %v110
    %v575 = vunpack.c.h.b16 %v110
    %v576 = vunpack.c.l.b16 %v111
    %v577 = vunpack.c.h.b16 %v111
    %v578 = vunpack.c.l.b16 %v112
    %v579 = vunpack.c.h.b16 %v112
    %v580 = vunpack.c.l.b16 %v113
    %v581 = vunpack.c.h.b16 %v113
    %v582 = vunpack.c.l.b16 %v114
    %v583 = vunpack.c.h.b16 %v114
    %v584 = vunpack.c.l.b16 %v115
    %v585 = vunpack.c.h.b16 %v115
    %v586 = vunpack.c.l.b16 %v116
    %v587 = vunpack.c.h.b16 %v116
    %v588 = vunpack.c.l.b16 %v117
    %v589 = vunpack.c.h.b16 %v117
    %v590 = vunpack.c.l.b16 %v118
    %v591 = vunpack.c.h.b16 %v118
    %v592 = vunpack.c.l.b16 %v119
    %v593 = vunpack.c.h.b16 %v119
    %v594 = vunpack.c.l.b16 %v120
    %v595 = vunpack.c.h.b16 %v120
    %v596 = vunpack.c.l.b16 %v121
    %v597 = vunpack.c.h.b16 %v121
    %v598 = vunpack.c.l.b16 %v122
    %v599 = vunpack.c.h.b16 %v122
    %v600 = vunpack.c.l.b16 %v123
    %v601 = vunpack.c.h.b16 %v123
    %v602 = vunpack.c.l.b16 %v124
    %v603 = vunpack.c.h.b16 %v124
    %v604 = vunpack.c.l.b16 %v125
    %v605 = vunpack.c.h.b16 %v125
    %v606 = vunpack.c.l.b16 %v126
    %v607 = vunpack.c.h.b16 %v126
    %v608 = vunpack.c.l.b16 %v127
    %v609 = vunpack.c.h.b16 %v127
    %v610 = vunpack.c.l.b16 %v128
    %v611 = vunpack.c.h.b16 %v128
    %v612 = vunpack.c.l.b16 %v129
    %v613 = vunpack.c.h.b16 %v129
    %v614 = vunpack.c.l.b16 %v130
    %v615 = vunpack.c.h.b16 %v130
    %v616 = vunpack.c.l.b16 %v131
    %v617 = vunpack.c.h.b16 %v131
    %v618 = vunpack.c.l.b16 %v132
    %v619 = vunpack.c.h.b16 %v132
    %v620 = vunpack.c.l.b16 %v133
    %v621 = vunpack.c.h.b16 %v133
    %v622 = vunpack.c.l.b16 %v134
    %v623 = vunpack.c.h.b16 %v134
    %v624 = vunpack.c.l.b16 %v135
    %v625 = vunpack.c.h.b16 %v135
    %v626 = vunpack.c.l.b16 %v136
    %v627 = vunpack.c.h.b16 %v136
    %v628 = vunpack.c.l.b16 %v137
    %v629 = vunpack.c.h.b16 %v137
    %v630 = vunpack.c.l.b16 %v138
    %v631 = vunpack.c.h.b16 %v138
    %v632 = vunpack.c.l.b16 %v139
    %v633 = vunpack.c.h.b16 %v139
    %v634 = vunpack.c.l.b16 %v140
    %v635 = vunpack.c.h.b16 %v140
    %v636 = vunpack.c.l.b16 %v141
    %v637 = vunpack.c.h.b16 %v141
    %v638 = vunpack.c.l.b16 %v142
    %v639 = vunpack.c.h.b16 %v142
    %v640 = vunpack.c.l.b16 %v143
    %v641 = vunpack.c.h.b16 %v143
    %v642 = vunpack.c.l.b16 %v144
    %v643 = vunpack.c.h.b16 %v144
    %v644 = vunpack.c.l.b16 %v145
    %v645 = vunpack.c.h.b16 %v145
    %v646 = vunpack.c.l.b16 %v146
    %v647 = vunpack.c.h.b16 %v146
    %v648 = vunpack.c.l.b16 %v147
    %v649 = vunpack.c.h.b16 %v147
    %v650 = vunpack.c.l.b16 %v148
    %v651 = vunpack.c.h.b16 %v148
    %v652 = vunpack.c.l.b16 %v149
    %v653 = vunpack.c.h.b16 %v149
    %v654 = vunpack.c.l.b16 %v150
    %v655 = vunpack.c.h.b16 %v150
    %v656 = vunpack.c.l.b16 %v151
    %v657 = vunpack.c.h.b16 %v151
    %v658 = vunpack.c.l.b16 %v152
    %v659 = vunpack.c.h.b16 %v152
    %v660 = vunpack.c.l.b16 %v153
    %v661 = vunpack.c.h.b16 %v153
    %v662 = vunpack.c.l.b16 %v154
    %v663 = vunpack.c.h.b16 %v154
    %v664 = vunpack.c.l.b16 %v155
    %v665 = vunpack.c.h.b16 %v155
    %v666 = vunpack.c.l.b16 %v156
    %v667 = vunpack.c.h.b16 %v156
    %v668 = vunpack.c.l.b16 %v157
    %v669 = vunpack.c.h.b16 %v157
    %v670 = vunpack.c.l.b16 %v158
    %v671 = vunpack.c.h.b16 %v158
    %v672 = vunpack.c.l.b16 %v159
    %v673 = vunpack.c.h.b16 %v159
    %v674 = vunpack.c.l.b16 %v160
    %v675 = vunpack.c.h.b16 %v160
    %v676 = vunpack.c.l.b16 %v161
    %v677 = vunpack.c.h.b16 %v161
    %v678 = vunpack.c.l.b16 %v162
    %v679 = vunpack.c.h.b16 %v162
    %v680 = vunpack.c.l.b16 %v163
    %v681 = vunpack.c.h.b16 %v163
    %v682 = vunpack.c.l.b16 %v164
    %v683 = vunpack.c.h.b16 %v164
    %v684 = vunpack.c.l.b16 %v165
    %v685 = vunpack.c.h.b16 %v165
    %v686 = vunpack.c.l.b16 %v166
    %v687 = vunpack.c.h.b16 %v166
    %v688 = vunpack.c.l.b16 %v167
    %v689 = vunpack.c.h.b16 %v167
    %v690 = vunpack.c.l.b16 %v168
    %v691 = vunpack.c.h.b16 %v168
    %v692 = vunpack.c.l.b16 %v169
    %v693 = vunpack.c.h.b16 %v169
    %v694 = vunpack.c.l.b16 %v170
    %v695 = vunpack.c.h.b16 %v170
    %v696 = vunpack.c.l.b16 %v171
    %v697 = vunpack.c.h.b16 %v171
    %v698 = vunpack.c.l.b16 %v172
    %v699 = vunpack.c.h.b16 %v172
    %v700 = vunpack.c.l.b16 %v173
    %v701 = vunpack.c.h.b16 %v173
    %v702 = vunpack.c.l.b16 %v174
    %v703 = vunpack.c.h.b16 %v174
    %v704 = vunpack.c.l.b16 %v175
    %v705 = vunpack.c.h.b16 %v175
    %v706 = vunpack.c.l.b16 %v176
    %v707 = vunpack.c.h.b16 %v176
    %v708 = vunpack.c.l.b16 %v177
    %v709 = vunpack.c.h.b16 %v177
    %v710 = vunpack.c.l.b16 %v178
    %v711 = vunpack.c.h.b16 %v178
    %v712 = vunpack.c.l.b16 %v179
    %v713 = vunpack.c.h.b16 %v179
    %v714 = vunpack.c.l.b16 %v180
    %v715 = vunpack.c.h.b16 %v180
    %v716 = vunpack.c.l.b16 %v181
    %v717 = vunpack.c.h.b16 %v181
    %v718 = vunpack.c.l.b16 %v182
    %v719 = vunpack.c.h.b16 %v182
    %v720 = vunpack.c.l.b16 %v183
    %v721 = vunpack.c.h.b16 %v183
    %v722 = vunpack.c.l.b16 %v184
    %v723 = vunpack.c.h.b16 %v184
    %v724 = vunpack.c.l.b16 %v185
    %v725 = vunpack.c.h.b16 %v185
    %v726 = vunpack.c.l.b16 %v186
    %v727 = vunpack.c.h.b16 %v186
    %v728 = vunpack.c.l.b16 %v187
    %v729 = vunpack.c.h.b16 %v187
    %v730 = vunpack.c.l.b16 %v188
    %v731 = vunpack.c.h.b16 %v188
    %v732 = vunpack.c.l.b16 %v189
    %v733 = vunpack.c.h.b16 %v189
    %v734 = vunpack.c.l.b16 %v190
    %v735 = vunpack.c.h.b16 %v190
    %v736 = vunpack.c.l.b16 %v191
    %v737 = vunpack.c.h.b16 %v191
    %v738 = vunpack.c.l.b16 %v192
    %v739 = vunpack.c.h.b16 %v192
    %v740 = vunpack.c.l.b16 %v193
    %v741 = vunpack.c.h.b16 %v193
    %v742 = vunpack.c.l.b16 %v194
    %v743 = vunpack.c.h.b16 %v194
    %v744 = vunpack.c.l.b16 %v195
    %v745 = vunpack.c.h.b16 %v195
    %v746 = vunpack.c.l.b16 %v196
    %v747 = vunpack.c.h.b16 %v196
    %v748 = vunpack.c.l.b16 %v197
    %v749 = vunpack.c.h.b16 %v197
    %v750 = vunpack.c.l.b16 %v198
    %v751 = vunpack.c.h.b16 %v198
    %v752 = vunpack.c.l.b16 %v199
    %v753 = vunpack.c.h.b16 %v199
    %v754 = vunpack.c.l.b16 %v200
    %v755 = vunpack.c.h.b16 %v200
    %v756 = vunpack.c.l.b16 %v201
    %v757 = vunpack.c.h.b16 %v201
    %v758 = vunpack.c.l.b16 %v202
    %v759 = vunpack.c.h.b16 %v202
    %v760 = vunpack.c.l.b16 %v203
    %v761 = vunpack.c.h.b16 %v203
    %v762 = vunpack.c.l.b16 %v204
    %v763 = vunpack.c.h.b16 %v204
    %v764 = vunpack.c.l.b16 %v205
    %v765 = vunpack.c.h.b16 %v205
    %v766 = vunpack.c.l.b16 %v206
    %v767 = vunpack.c.h.b16 %v206
    %v768 = vunpack.c.l.b16 %v207
    %v769 = vunpack.c.h.b16 %v207
    %v770 = vunpack.c.l.b16 %v208
    %v771 = vunpack.c.h.b16 %v208
    %v772 = vunpack.c.l.b16 %v209
    %v773 = vunpack.c.h.b16 %v209
    %v774 = vunpack.c.l.b16 %v210
    %v775 = vunpack.c.h.b16 %v210
    %v776 = vunpack.c.l.b16 %v211
    %v777 = vunpack.c.h.b16 %v211
    %v778 = vunpack.c.l.b16 %v212
    %v779 = vunpack.c.h.b16 %v212
    %v780 = vunpack.c.l.b16 %v213
    %v781 = vunpack.c.h.b16 %v213
    %v782 = vunpack.c.l.b16 %v214
    %v783 = vunpack.c.h.b16 %v214
    %v784 = vunpack.c.l.b16 %v215
    %v785 = vunpack.c.h.b16 %v215
    %v786 = vunpack.c.l.b16 %v216
    %v787 = vunpack.c.h.b16 %v216
    %v788 = vunpack.c.l.b16 %v217
    %v789 = vunpack.c.h.b16 %v217
    %v790 = vunpack.c.l.b16 %v218
    %v791 = vunpack.c.h.b16 %v218
    %v792 = vunpack.c.l.b16 %v219
    %v793 = vunpack.c.h.b16 %v219
    %v794 = vunpack.c.l.b16 %v220
    %v795 = vunpack.c.h.b16 %v220
    %v796 = vunpack.c.l.b16 %v221
    %v797 = vunpack.c.h.b16 %v221
    %v798 = vunpack.c.l.b16 %v222
    %v799 = vunpack.c.h.b16 %v222
    %v800 = vunpack.c.l.b16 %v223
    %v801 = vunpack.c.h.b16 %v223
    %v802 = vunpack.c.l.b16 %v224
    %v803 = vunpack.c.h.b16 %v224
    %v804 = vunpack.c.l.b16 %v225
    %v805 = vunpack.c.h.b16 %v225
    %v806 = vunpack.c.l.b16 %v226
    %v807 = vunpack.c.h.b16 %v226
    %v808 = vunpack.c.l.b16 %v227
    %v809 = vunpack.c.h.b16 %v227
    %v810 = vunpack.c.l.b16 %v228
    %v811 = vunpack.c.h.b16 %v228
    %v812 = vunpack.c.l.b16 %v229
    %v813 = vunpack.c.h.b16 %v229
    %v814 = vunpack.c.l.b16 %v230
    %v815 = vunpack.c.h.b16 %v230
    %v816 = vunpack.c.l.b16 %v231
    %v817 = vunpack.c.h.b16 %v231
    %v818 = vunpack.c.l.b16 %v232
    %v819 = vunpack.c.h.b16 %v232
    %v820 = vunpack.c.l.b16 %v233
    %v821 = vunpack.c.h.b16 %v233
    %v822 = vunpack.c.l.b16 %v234
    %v823 = vunpack.c.h.b16 %v234
    %v824 = vunpack.c.l.b16 %v235
    %v825 = vunpack.c.h.b16 %v235
    %v826 = vunpack.c.l.b16 %v236
    %v827 = vunpack.c.h.b16 %v236
    %v828 = vunpack.c.l.b16 %v237
    %v829 = vunpack.c.h.b16 %v237
    %v830 = vunpack.c.l.b16 %v238
    %v831 = vunpack.c.h.b16 %v238
    %v832 = vunpack.c.l.b16 %v239
    %v833 = vunpack.c.h.b16 %v239
    %v834 = vunpack.c.l.b16 %v240
    %v835 = vunpack.c.h.b16 %v240
    %v836 = vunpack.c.l.b16 %v241
    %v837 = vunpack.c.h.b16 %v241
    %v838 = vpack.c.b16 %v460, %v454
    %v839 = vpack.c.b16 %v461, %v455
    %v840 = vpack.c.b16 %v462, %v456
    %v841 = vpack.c.b16 %v463, %v457
    %v842 = vpack.c.b16 %v464, %v458
    %v843 = vpack.c.b16 %v465, %v459
    %v844 = vpack.c.b16 %v472, %v466
    %v845 = vpack.c.b16 %v473, %v467
    %v846 = vpack.c.b16 %v474, %v468
    %v847 = vpack.c.b16 %v475, %v469
    %v848 = vpack.c.b16 %v476, %v470
    %v849 = vpack.c.b16 %v477, %v471
    %v850 = vpack.c.b16 %v484, %v478
    %v851 = vpack.c.b16 %v485, %v479
    %v852 = vpack.c.b16 %v486, %v480
    %v853 = vpack.c.b16 %v487, %v481
    %v854 = vpack.c.b16 %v488, %v482
    %v855 = vpack.c.b16 %v489, %v483
    %v856 = vpack.c.b16 %v496, %v490
    %v857 = vpack.c.b16 %v497, %v491
    %v858 = vpack.c.b16 %v498, %v492
    %v859 = vpack.c.b16 %v499, %v493
    %v860 = vpack.c.b16 %v500, %v494
    %v861 = vpack.c.b16 %v501, %v495
    %v862 = vpack.c.b16 %v508, %v502
    %v863 = vpack.c.b16 %v509, %v503
    %v864 = vpack.c.b16 %v510, %v504
    %v865 = vpack.c.b16 %v511, %v505
    %v866 = vpack.c.b16 %v512, %v506
    %v867 = vpack.c.b16 %v513, %v507
    %v868 = vpack.c.b16 %v520, %v514
    %v869 = vpack.c.b16 %v521, %v515
    %v870 = vpack.c.b16 %v522, %v516
    %v871 = vpack.c.b16 %v523, %v517
    %v872 = vpack.c.b16 %v524, %v518
    %v873 = vpack.c.b16 %v525, %v519
    %v874 = vpack.c.b16 %v532, %v526
    %v875 = vpack.c.b16 %v533, %v527
    %v876 = vpack.c.b16 %v534, %v528
    %v877 = vpack.c.b16 %v535, %v529
    %v878 = vpack.c.b16 %v536, %v530
    %v879 = vpack.c.b16 %v537, %v531
    %v880 = vpack.c.b16 %v544, %v538
    %v881 = vpack.c.b16 %v545, %v539
    %v882 = vpack.c.b16 %v546, %v540
    %v883 = vpack.c.b16 %v547, %v541
    %v884 = vpack.c.b16 %v548, %v542
    %v885 = vpack.c.b16 %v549, %v543
    %v886 = vpack.c.b16 %v556, %v550
    %v887 = vpack.c.b16 %v557, %v551
    %v888 = vpack.c.b16 %v558, %v552
    %v889 = vpack.c.b16 %v559, %v553
    %v890 = vpack.c.b16 %v560, %v554
    %v891 = vpack.c.b16 %v561, %v555
    %v892 = vpack.c.b16 %v568, %v562
    %v893 = vpack.c.b16 %v569, %v563
    %v894 = vpack.c.b16 %v570, %v564
    %v895 = vpack.c.b16 %v571, %v565
    %v896 = vpack.c.b16 %v572, %v566
    %v897 = vpack.c.b16 %v573, %v567
    %v898 = vpack.c.b16 %v580, %v574
    %v899 = vpack.c.b16 %v581, %v575
    %v900 = vpack.c.b16 %v582, %v576
    %v901 = vpack.c.b16 %v583, %v577
    %v902 = vpack.c.b16 %v584, %v578
    %v903 = vpack.c.b16 %v585, %v579
    %v904 = vpack.c.b16 %v592, %v586
    %v905 = vpack.c.b16 %v593, %v587
    %v906 = vpack.c.b16 %v594, %v588
    %v907 = vpack.c.b16 %v595, %v589
    %v908 = vpack.c.b16 %v596, %v590
    %v909 = vpack.c.b16 %v597, %v591
    %v910 = vpack.c.b16 %v604, %v598
    %v911 = vpack.c.b16 %v605, %v599
    %v912 = vpack.c.b16 %v606, %v600
    %v913 = vpack.c.b16 %v607, %v601
    %v914 = vpack.c.b16 %v608, %v602
    %v915 = vpack.c.b16 %v609, %v603
    %v916 = vpack.c.b16 %v616, %v610
    %v917 = vpack.c.b16 %v617, %v611
    %v918 = vpack.c.b16 %v618, %v612
    %v919 = vpack.c.b16 %v619, %v613
    %v920 = vpack.c.b16 %v620, %v614
    %v921 = vpack.c.b16 %v621, %v615
    %v922 = vpack.c.b16 %v628, %v622
    %v923 = vpack.c.b16 %v629, %v623
    %v924 = vpack.c.b16 %v630, %v624
    %v925 = vpack.c.b16 %v631, %v625
    %v926 = vpack.c.b16 %v632, %v626
    %v927 = vpack.c.b16 %v633, %v627
    %v928 = vpack.c.b16 %v640, %v634
    %v929 = vpack.c.b16 %v641, %v635
    %v930 = vpack.c.b16 %v642, %v636
    %v931 = vpack.c.b16 %v643, %v637
    %v932 = vpack.c.b16 %v644, %v638
    %v933 = vpack.c.b16 %v645, %v639
    %v934 = vpack.c.b16 %v652, %v646
    %v935 = vpack.c.b16 %v653, %v647
    %v936 = vpack.c.b16 %v654, %v648
    %v937 = vpack.c.b16 %v655, %v649
    %v938 = vpack.c.b16 %v656, %v650
    %v939 = vpack.c.b16 %v657, %v651
    %v940 = vpack.c.b16 %v664, %v658
    %v941 = vpack.c.b16 %v665, %v659
    %v942 = vpack.c.b16 %v666, %v660
    %v943 = vpack.c.b16 %v667, %v661
    %v944 = vpack.c.b16 %v668, %v662
    %v945 = vpack.c.b16 %v669, %v663
    %v946 = vpack.c.b16 %v676, %v670
    %v947 = vpack.c.b16 %v677, %v671
    %v948 = vpack.c.b16 %v678, %v672
    %v949 = vpack.c.b16 %v679, %v673
    %v950 = vpack.c.b16 %v680, %v674
    %v951 = vpack.c.b16 %v681, %v675
    %v952 = vpack.c.b16 %v688, %v682
    %v953 = vpack.c.b16 %v689, %v683
    %v954 = vpack.c.b16 %v690, %v684
    %v955 = vpack.c.b16 %v691, %v685
    %v956 = vpack.c.b16 %v692, %v686
    %v957 = vpack.c.b16 %v693, %v687
    %v958 = vpack.c.b16 %v700, %v694
    %v959 = vpack.c.b16 %v701, %v695
    %v960 = vpack.c.b16 %v702, %v696
    %v961 = vpack.c.b16 %v703, %v697
    %v962 = vpack.c.b16 %v704, %v698
    %v963 = vpack.c.b16 %v705, %v699
    %v964 = vpack.c.b16 %v712, %v706
    %v965 = vpack.c.b16 %v713, %v707
    %v966 = vpack.c.b16 %v714, %v708
    %v967 = vpack.c.b16 %v715, %v709
    %v968 = vpack.c.b16 %v716, %v710
    %v969 = vpack.c.b16 %v717, %v711
    %v970 = vpack.c.b16 %v724, %v718
    %v971 = vpack.c.b16 %v725, %v719
    %v972 = vpack.c.b16 %v726, %v720
    %v973 = vpack.c.b16 %v727, %v721
    %v974 = vpack.c.b16 %v728, %v722
    %v975 = vpack.c.b16 %v729, %v723
    %v976 = vpack.c.b16 %v736, %v730
    %v977 = vpack.c.b16 %v737, %v731
    %v978 = vpack.c.b16 %v738, %v732
    %v979 = vpack.c.b16 %v739, %v733
    %v980 = vpack.c.b16 %v740, %v734
    %v981 = vpack.c.b16 %v741, %v735
    %v982 = vpack.c.b16 %v748, %v742
    %v983 = vpack.c.b16 %v749, %v743
    %v984 = vpack.c.b16 %v750, %v744
    %v985 = vpack.c.b16 %v751, %v745
    %v986 = vpack.c.b16 %v752, %v746
    %v987 = vpack.c.b16 %v753, %v747
    %v988 = vpack.c.b16 %v760, %v754
    %v989 = vpack.c.b16 %v761, %v755
    %v990 = vpack.c.b16 %v762, %v756
    %v991 = vpack.c.b16 %v763, %v757
    %v992 = vpack.c.b16 %v764, %v758
    %v993 = vpack.c.b16 %v765, %v759
    %v994 = vpack.c.b16 %v772, %v766
    %v995 = vpack.c.b16 %v773, %v767
    %v996 = vpack.c.b16 %v774, %v768
    %v997 = vpack.c.b16 %v775, %v769
    %v998 = vpack.c.b16 %v776, %v770
    %v999 = vpack.c.b16 %v777, %v771
    %v1000 = vpack.c.b16 %v784, %v778
    %v1001 = vpack.c.b16 %v785, %v779
    %v1002 = vpack.c.b16 %v786, %v780
    %v1003 = vpack.c.b16 %v787, %v781
    %v1004 = vpack.c.b16 %v788, %v782
    %v1005 = vpack.c.b16 %v789, %v783
    %v1006 = vpack.c.b16 %v796, %v790
    %v1007 = vpack.c.b16 %v797, %v791
    %v1008 = vpack.c.b16 %v798, %v792
    %v1009 = vpack.c.b16 %v799, %v793
    %v1010 = vpack.c.b16 %v800, %v794
    %v1011 = vpack.c.b16 %v801, %v795
    %v1012 = vpack.c.b16 %v808, %v802
    %v1013 = vpack.c.b16 %v809, %v803
    %v1014 = vpack.c.b16 %v810, %v804
    %v1015 = vpack.c.b16 %v811, %v805
    %v1016 = vpack.c.b16 %v812, %v806
    %v1017 = vpack.c.b16 %v813, %v807
    %v1018 = vpack.c.b16 %v820, %v814
    %v1019 = vpack.c.b16 %v821, %v815
    %v1020 = vpack.c.b16 %v822, %v816
    %v1021 = vpack.c.b16 %v823, %v817
    %v1022 = vpack.c.b16 %v824, %v818
    %v1023 = vpack.c.b16 %v825, %v819
    %v1024 = vpack.c.b16 %v832, %v826
    %v1025 = vpack.c.b16 %v833, %v827
    %v1026 = vpack.c.b16 %v834, %v828
    %v1027 = vpack.c.b16 %v835, %v829
    %v1028 = vpack.c.b16 %v836, %v830
    %v1029 = vpack.c.b16 %v837, %v831
    %1222 = vmatpush.bf16.msra.mxu0 %v880
    %1223 = vmatpush.bf16.msra.mxu0 %v874
    %1224 = vmatpush.bf16.msra.mxu0 %v868
    %1225 = vmatpush.bf16.msra.mxu0 %v862
    %1226 = vmatpush.bf16.msra.mxu0 %v856
    %1227 = vmatpush.bf16.msra.mxu0 %v850
    %1228 = vmatpush.bf16.msra.mxu0 %v844
    %1229 = vmatpush.bf16.msra.mxu0 %v838
    %1230 = vmatmul.bf16.gmra.mxu0 %v254
    %v1231 = vpop.f32.mrf.mxu0
    %v1232 = vadd.f32 0.0, %v1231
    %v1233 = vpop.f32.mrf.mxu0
    %v1234 = vadd.f32 0.0, %v1233
    %1235 = vdwg.mxu0
    %1236 = vmatpush.bf16.msra.mxu0 %v928
    %1237 = vmatpush.bf16.msra.mxu0 %v922
    %1238 = vmatpush.bf16.msra.mxu0 %v916
    %1239 = vmatpush.bf16.msra.mxu0 %v910
    %1240 = vmatpush.bf16.msra.mxu0 %v904
    %1241 = vmatpush.bf16.msra.mxu0 %v898
    %1242 = vmatpush.bf16.msra.mxu0 %v892
    %1243 = vmatpush.bf16.msra.mxu0 %v886
    %1244 = vmatmul.bf16.gmra.mxu0 %v255
    %v1245 = vpop.f32.mrf.mxu0
    %v1246 = vadd.f32 %v1232, %v1245
    %v1247 = vpop.f32.mrf.mxu0
    %v1248 = vadd.f32 %v1234, %v1247
    %1249 = vdwg.mxu0
    %1250 = vmatpush.bf16.msra.mxu0 %v976
    %1251 = vmatpush.bf16.msra.mxu0 %v970
    %1252 = vmatpush.bf16.msra.mxu0 %v964
    %1253 = vmatpush.bf16.msra.mxu0 %v958
    %1254 = vmatpush.bf16.msra.mxu0 %v952
    %1255 = vmatpush.bf16.msra.mxu0 %v946
    %1256 = vmatpush.bf16.msra.mxu0 %v940
    %1257 = vmatpush.bf16.msra.mxu0 %v934
    %1258 = vmatmul.bf16.gmra.mxu0 %v256
    %v1259 = vpop.f32.mrf.mxu0
    %v1260 = vadd.f32 %v1246, %v1259
    %v1261 = vpop.f32.mrf.mxu0
    %v1262 = vadd.f32 %v1248, %v1261
    %1263 = vdwg.mxu0
    %1264 = vmatpush.bf16.msra.mxu0 %v1024
    %1265 = vmatpush.bf16.msra.mxu0 %v1018
    %1266 = vmatpush.bf16.msra.mxu0 %v1012
    %1267 = vmatpush.bf16.msra.mxu0 %v1006
    %1268 = vmatpush.bf16.msra.mxu0 %v1000
    %1269 = vmatpush.bf16.msra.mxu0 %v994
    %1270 = vmatpush.bf16.msra.mxu0 %v988
    %1271 = vmatpush.bf16.msra.mxu0 %v982
    %1272 = vmatmul.bf16.gmra.mxu0 %v257
    %v1273 = vpop.f32.mrf.mxu0
    %v1274 = vadd.f32 %v1260, %v1273
    %v1275 = vpop.f32.mrf.mxu0
    %v1276 = vadd.f32 %v1262, %v1275
    %1277 = vdwg.mxu0
    %1278 = vmatpush.bf16.msra.mxu0 %v881
    %1279 = vmatpush.bf16.msra.mxu0 %v875
    %1280 = vmatpush.bf16.msra.mxu0 %v869
    %1281 = vmatpush.bf16.msra.mxu0 %v863
    %1282 = vmatpush.bf16.msra.mxu0 %v857
    %1283 = vmatpush.bf16.msra.mxu0 %v851
    %1284 = vmatpush.bf16.msra.mxu0 %v845
    %1285 = vmatpush.bf16.msra.mxu0 %v839
    %1286 = vmatmul.bf16.gmra.mxu0 %v254
    %v1287 = vpop.f32.mrf.mxu0
    %v1288 = vadd.f32 0.0, %v1287
    %v1289 = vpop.f32.mrf.mxu0
    %v1290 = vadd.f32 0.0, %v1289
    %1291 = vdwg.mxu0
    %1292 = vmatpush.bf16.msra.mxu0 %v929
    %1293 = vmatpush.bf16.msra.mxu0 %v923
    %1294 = vmatpush.bf16.msra.mxu0 %v917
    %1295 = vmatpush.bf16.msra.mxu0 %v911
    %1296 = vmatpush.bf16.msra.mxu0 %v905
    %1297 = vmatpush.bf16.msra.mxu0 %v899
    %1298 = vmatpush.bf16.msra.mxu0 %v893
    %1299 = vmatpush.bf16.msra.mxu0 %v887
    %1300 = vmatmul.bf16.gmra.mxu0 %v255
    %v1301 = vpop.f32.mrf.mxu0
    %v1302 = vadd.f32 %v1288, %v1301
    %v1303 = vpop.f32.mrf.mxu0
    %v1304 = vadd.f32 %v1290, %v1303
    %1305 = vdwg.mxu0
    %1306 = vmatpush.bf16.msra.mxu0 %v977
    %1307 = vmatpush.bf16.msra.mxu0 %v971
    %1308 = vmatpush.bf16.msra.mxu0 %v965
    %1309 = vmatpush.bf16.msra.mxu0 %v959
    %1310 = vmatpush.bf16.msra.mxu0 %v953
    %1311 = vmatpush.bf16.msra.mxu0 %v947
    %1312 = vmatpush.bf16.msra.mxu0 %v941
    %1313 = vmatpush.bf16.msra.mxu0 %v935
    %1314 = vmatmul.bf16.gmra.mxu0 %v256
    %v1315 = vpop.f32.mrf.mxu0
    %v1316 = vadd.f32 %v1302, %v1315
    %v1317 = vpop.f32.mrf.mxu0
    %v1318 = vadd.f32 %v1304, %v1317
    %1319 = vdwg.mxu0
    %1320 = vmatpush.bf16.msra.mxu0 %v1025
    %1321 = vmatpush.bf16.msra.mxu0 %v1019
    %1322 = vmatpush.bf16.msra.mxu0 %v1013
    %1323 = vmatpush.bf16.msra.mxu0 %v1007
    %1324 = vmatpush.bf16.msra.mxu0 %v1001
    %1325 = vmatpush.bf16.msra.mxu0 %v995
    %1326 = vmatpush.bf16.msra.mxu0 %v989
    %1327 = vmatpush.bf16.msra.mxu0 %v983
    %1328 = vmatmul.bf16.gmra.mxu0 %v257
    %v1329 = vpop.f32.mrf.mxu0
    %v1330 = vadd.f32 %v1316, %v1329
    %v1331 = vpop.f32.mrf.mxu0
    %v1332 = vadd.f32 %v1318, %v1331
    %1333 = vdwg.mxu0
    %1334 = vmatpush.bf16.msra.mxu0 %v882
    %1335 = vmatpush.bf16.msra.mxu0 %v876
    %1336 = vmatpush.bf16.msra.mxu0 %v870
    %1337 = vmatpush.bf16.msra.mxu0 %v864
    %1338 = vmatpush.bf16.msra.mxu0 %v858
    %1339 = vmatpush.bf16.msra.mxu0 %v852
    %1340 = vmatpush.bf16.msra.mxu0 %v846
    %1341 = vmatpush.bf16.msra.mxu0 %v840
    %1342 = vmatmul.bf16.gmra.mxu0 %v254
    %v1343 = vpop.f32.mrf.mxu0
    %v1344 = vadd.f32 0.0, %v1343
    %v1345 = vpop.f32.mrf.mxu0
    %v1346 = vadd.f32 0.0, %v1345
    %1347 = vdwg.mxu0
    %1348 = vmatpush.bf16.msra.mxu0 %v930
    %1349 = vmatpush.bf16.msra.mxu0 %v924
    %1350 = vmatpush.bf16.msra.mxu0 %v918
    %1351 = vmatpush.bf16.msra.mxu0 %v912
    %1352 = vmatpush.bf16.msra.mxu0 %v906
    %1353 = vmatpush.bf16.msra.mxu0 %v900
    %1354 = vmatpush.bf16.msra.mxu0 %v894
    %1355 = vmatpush.bf16.msra.mxu0 %v888
    %1356 = vmatmul.bf16.gmra.mxu0 %v255
    %v1357 = vpop.f32.mrf.mxu0
    %v1358 = vadd.f32 %v1344, %v1357
    %v1359 = vpop.f32.mrf.mxu0
    %v1360 = vadd.f32 %v1346, %v1359
    %1361 = vdwg.mxu0
    %1362 = vmatpush.bf16.msra.mxu0 %v978
    %1363 = vmatpush.bf16.msra.mxu0 %v972
    %1364 = vmatpush.bf16.msra.mxu0 %v966
    %1365 = vmatpush.bf16.msra.mxu0 %v960
    %1366 = vmatpush.bf16.msra.mxu0 %v954
    %1367 = vmatpush.bf16.msra.mxu0 %v948
    %1368 = vmatpush.bf16.msra.mxu0 %v942
    %1369 = vmatpush.bf16.msra.mxu0 %v936
    %1370 = vmatmul.bf16.gmra.mxu0 %v256
    %v1371 = vpop.f32.mrf.mxu0
    %v1372 = vadd.f32 %v1358, %v1371
    %v1373 = vpop.f32.mrf.mxu0
    %v1374 = vadd.f32 %v1360, %v1373
    %1375 = vdwg.mxu0
    %1376 = vmatpush.bf16.msra.mxu0 %v1026
    %1377 = vmatpush.bf16.msra.mxu0 %v1020
    %1378 = vmatpush.bf16.msra.mxu0 %v1014
    %1379 = vmatpush.bf16.msra.mxu0 %v1008
    %1380 = vmatpush.bf16.msra.mxu0 %v1002
    %1381 = vmatpush.bf16.msra.mxu0 %v996
    %1382 = vmatpush.bf16.msra.mxu0 %v990
    %1383 = vmatpush.bf16.msra.mxu0 %v984
    %1384 = vmatmul.bf16.gmra.mxu0 %v257
    %v1385 = vpop.f32.mrf.mxu0
    %v1386 = vadd.f32 %v1372, %v1385
    %v1387 = vpop.f32.mrf.mxu0
    %v1388 = vadd.f32 %v1374, %v1387
    %1389 = vdwg.mxu0
    %1390 = vmatpush.bf16.msra.mxu0 %v883
    %1391 = vmatpush.bf16.msra.mxu0 %v877
    %1392 = vmatpush.bf16.msra.mxu0 %v871
    %1393 = vmatpush.bf16.msra.mxu0 %v865
    %1394 = vmatpush.bf16.msra.mxu0 %v859
    %1395 = vmatpush.bf16.msra.mxu0 %v853
    %1396 = vmatpush.bf16.msra.mxu0 %v847
    %1397 = vmatpush.bf16.msra.mxu0 %v841
    %1398 = vmatmul.bf16.gmra.mxu0 %v254
    %v1399 = vpop.f32.mrf.mxu0
    %v1400 = vadd.f32 0.0, %v1399
    %v1401 = vpop.f32.mrf.mxu0
    %v1402 = vadd.f32 0.0, %v1401
    %1403 = vdwg.mxu0
    %1404 = vmatpush.bf16.msra.mxu0 %v931
    %1405 = vmatpush.bf16.msra.mxu0 %v925
    %1406 = vmatpush.bf16.msra.mxu0 %v919
    %1407 = vmatpush.bf16.msra.mxu0 %v913
    %1408 = vmatpush.bf16.msra.mxu0 %v907
    %1409 = vmatpush.bf16.msra.mxu0 %v901
    %1410 = vmatpush.bf16.msra.mxu0 %v895
    %1411 = vmatpush.bf16.msra.mxu0 %v889
    %1412 = vmatmul.bf16.gmra.mxu0 %v255
    %v1413 = vpop.f32.mrf.mxu0
    %v1414 = vadd.f32 %v1400, %v1413
    %v1415 = vpop.f32.mrf.mxu0
    %v1416 = vadd.f32 %v1402, %v1415
    %1417 = vdwg.mxu0
    %1418 = vmatpush.bf16.msra.mxu0 %v979
    %1419 = vmatpush.bf16.msra.mxu0 %v973
    %1420 = vmatpush.bf16.msra.mxu0 %v967
    %1421 = vmatpush.bf16.msra.mxu0 %v961
    %1422 = vmatpush.bf16.msra.mxu0 %v955
    %1423 = vmatpush.bf16.msra.mxu0 %v949
    %1424 = vmatpush.bf16.msra.mxu0 %v943
    %1425 = vmatpush.bf16.msra.mxu0 %v937
    %1426 = vmatmul.bf16.gmra.mxu0 %v256
    %v1427 = vpop.f32.mrf.mxu0
    %v1428 = vadd.f32 %v1414, %v1427
    %v1429 = vpop.f32.mrf.mxu0
    %v1430 = vadd.f32 %v1416, %v1429
    %1431 = vdwg.mxu0
    %1432 = vmatpush.bf16.msra.mxu0 %v1027
    %1433 = vmatpush.bf16.msra.mxu0 %v1021
    %1434 = vmatpush.bf16.msra.mxu0 %v1015
    %1435 = vmatpush.bf16.msra.mxu0 %v1009
    %1436 = vmatpush.bf16.msra.mxu0 %v1003
    %1437 = vmatpush.bf16.msra.mxu0 %v997
    %1438 = vmatpush.bf16.msra.mxu0 %v991
    %1439 = vmatpush.bf16.msra.mxu0 %v985
    %1440 = vmatmul.bf16.gmra.mxu0 %v257
    %v1441 = vpop.f32.mrf.mxu0
    %v1442 = vadd.f32 %v1428, %v1441
    %v1443 = vpop.f32.mrf.mxu0
    %v1444 = vadd.f32 %v1430, %v1443
    %1445 = vdwg.mxu0
    %1446 = vmatpush.bf16.msra.mxu0 %v884
    %1447 = vmatpush.bf16.msra.mxu0 %v878
    %1448 = vmatpush.bf16.msra.mxu0 %v872
    %1449 = vmatpush.bf16.msra.mxu0 %v866
    %1450 = vmatpush.bf16.msra.mxu0 %v860
    %1451 = vmatpush.bf16.msra.mxu0 %v854
    %1452 = vmatpush.bf16.msra.mxu0 %v848
    %1453 = vmatpush.bf16.msra.mxu0 %v842
    %1454 = vmatmul.bf16.gmra.mxu0 %v254
    %v1455 = vpop.f32.mrf.mxu0
    %v1456 = vadd.f32 0.0, %v1455
    %v1457 = vpop.f32.mrf.mxu0
    %v1458 = vadd.f32 0.0, %v1457
    %1459 = vdwg.mxu0
    %1460 = vmatpush.bf16.msra.mxu0 %v932
    %1461 = vmatpush.bf16.msra.mxu0 %v926
    %1462 = vmatpush.bf16.msra.mxu0 %v920
    %1463 = vmatpush.bf16.msra.mxu0 %v914
    %1464 = vmatpush.bf16.msra.mxu0 %v908
    %1465 = vmatpush.bf16.msra.mxu0 %v902
    %1466 = vmatpush.bf16.msra.mxu0 %v896
    %1467 = vmatpush.bf16.msra.mxu0 %v890
    %1468 = vmatmul.bf16.gmra.mxu0 %v255
    %v1469 = vpop.f32.mrf.mxu0
    %v1470 = vadd.f32 %v1456, %v1469
    %v1471 = vpop.f32.mrf.mxu0
    %v1472 = vadd.f32 %v1458, %v1471
    %1473 = vdwg.mxu0
    %1474 = vmatpush.bf16.msra.mxu0 %v980
    %1475 = vmatpush.bf16.msra.mxu0 %v974
    %1476 = vmatpush.bf16.msra.mxu0 %v968
    %1477 = vmatpush.bf16.msra.mxu0 %v962
    %1478 = vmatpush.bf16.msra.mxu0 %v956
    %1479 = vmatpush.bf16.msra.mxu0 %v950
    %1480 = vmatpush.bf16.msra.mxu0 %v944
    %1481 = vmatpush.bf16.msra.mxu0 %v938
    %1482 = vmatmul.bf16.gmra.mxu0 %v256
    %v1483 = vpop.f32.mrf.mxu0
    %v1484 = vadd.f32 %v1470, %v1483
    %v1485 = vpop.f32.mrf.mxu0
    %v1486 = vadd.f32 %v1472, %v1485
    %1487 = vdwg.mxu0
    %1488 = vmatpush.bf16.msra.mxu0 %v1028
    %1489 = vmatpush.bf16.msra.mxu0 %v1022
    %1490 = vmatpush.bf16.msra.mxu0 %v1016
    %1491 = vmatpush.bf16.msra.mxu0 %v1010
    %1492 = vmatpush.bf16.msra.mxu0 %v1004
    %1493 = vmatpush.bf16.msra.mxu0 %v998
    %1494 = vmatpush.bf16.msra.mxu0 %v992
    %1495 = vmatpush.bf16.msra.mxu0 %v986
    %1496 = vmatmul.bf16.gmra.mxu0 %v257
    %v1497 = vpop.f32.mrf.mxu0
    %v1498 = vadd.f32 %v1484, %v1497
    %v1499 = vpop.f32.mrf.mxu0
    %v1500 = vadd.f32 %v1486, %v1499
    %1501 = vdwg.mxu0
    %1502 = vmatpush.bf16.msra.mxu0 %v885
    %1503 = vmatpush.bf16.msra.mxu0 %v879
    %1504 = vmatpush.bf16.msra.mxu0 %v873
    %1505 = vmatpush.bf16.msra.mxu0 %v867
    %1506 = vmatpush.bf16.msra.mxu0 %v861
    %1507 = vmatpush.bf16.msra.mxu0 %v855
    %1508 = vmatpush.bf16.msra.mxu0 %v849
    %1509 = vmatpush.bf16.msra.mxu0 %v843
    %1510 = vmatmul.bf16.gmra.mxu0 %v254
    %v1511 = vpop.f32.mrf.mxu0
    %v1512 = vadd.f32 0.0, %v1511
    %v1513 = vpop.f32.mrf.mxu0
    %v1514 = vadd.f32 0.0, %v1513
    %1515 = vdwg.mxu0
    %1516 = vmatpush.bf16.msra.mxu0 %v933
    %1517 = vmatpush.bf16.msra.mxu0 %v927
    %1518 = vmatpush.bf16.msra.mxu0 %v921
    %1519 = vmatpush.bf16.msra.mxu0 %v915
    %1520 = vmatpush.bf16.msra.mxu0 %v909
    %1521 = vmatpush.bf16.msra.mxu0 %v903
    %1522 = vmatpush.bf16.msra.mxu0 %v897
    %1523 = vmatpush.bf16.msra.mxu0 %v891
    %1524 = vmatmul.bf16.gmra.mxu0 %v255
    %v1525 = vpop.f32.mrf.mxu0
    %v1526 = vadd.f32 %v1512, %v1525
    %v1527 = vpop.f32.mrf.mxu0
    %v1528 = vadd.f32 %v1514, %v1527
    %1529 = vdwg.mxu0
    %1530 = vmatpush.bf16.msra.mxu0 %v981
    %1531 = vmatpush.bf16.msra.mxu0 %v975
    %1532 = vmatpush.bf16.msra.mxu0 %v969
    %1533 = vmatpush.bf16.msra.mxu0 %v963
    %1534 = vmatpush.bf16.msra.mxu0 %v957
    %1535 = vmatpush.bf16.msra.mxu0 %v951
    %1536 = vmatpush.bf16.msra.mxu0 %v945
    %1537 = vmatpush.bf16.msra.mxu0 %v939
    %1538 = vmatmul.bf16.gmra.mxu0 %v256
    %v1539 = vpop.f32.mrf.mxu0
    %v1540 = vadd.f32 %v1526, %v1539
    %v1541 = vpop.f32.mrf.mxu0
    %v1542 = vadd.f32 %v1528, %v1541
    %1543 = vdwg.mxu0
    %1544 = vmatpush.bf16.msra.mxu0 %v1029
    %1545 = vmatpush.bf16.msra.mxu0 %v1023
    %1546 = vmatpush.bf16.msra.mxu0 %v1017
    %1547 = vmatpush.bf16.msra.mxu0 %v1011
    %1548 = vmatpush.bf16.msra.mxu0 %v1005
    %1549 = vmatpush.bf16.msra.mxu0 %v999
    %1550 = vmatpush.bf16.msra.mxu0 %v993
    %1551 = vmatpush.bf16.msra.mxu0 %v987
    %1552 = vmatmul.bf16.gmra.mxu0 %v257
    %v1553 = vpop.f32.mrf.mxu0
    %v1554 = vadd.f32 %v1540, %v1553
    %v1555 = vpop.f32.mrf.mxu0
    %v1556 = vadd.f32 %v1542, %v1555
    %1557 = vdwg.mxu0
    %v1558 = vld [vmem:[%s1] sm:$0xff]
    %v1559 = vld [vmem:[%s1 + $0x8] sm:$0xff]
    %1561 = vset.pattern.permute.xlu0 0
    %1562 = vperm.xlu0 %1561, %v1558
    %v1563 = vpop.permute.xlu0 %1562
    %1566 = vset.pattern.permute.xlu0 0
    %1567 = vperm.xlu0 %1566, %v1559
    %v1568 = vpop.permute.xlu0 %1567
    %v1570 = vmul.f32 %v1563, %v1274
    %v1571 = vmul.f32 %v1563, %v1330
    %v1572 = vmul.f32 %v1563, %v1386
    %v1573 = vmul.f32 %v1563, %v1442
    %v1574 = vmul.f32 %v1563, %v1498
    %v1575 = vmul.f32 %v1563, %v1554
    %v1576 = vmul.f32 %v1568, %v1276
    %v1577 = vmul.f32 %v1568, %v1332
    %v1578 = vmul.f32 %v1568, %v1388
    %v1579 = vmul.f32 %v1568, %v1444
    %v1580 = vmul.f32 %v1568, %v1500
    %v1581 = vmul.f32 %v1568, %v1556
    %v1582 = vadd.f32 %v1570, 0.0
    %v1583 = vadd.f32 %v1571, 0.0
    %v1584 = vadd.f32 %v1572, 0.0
    %v1585 = vadd.f32 %v1573, 0.0
    %v1586 = vadd.f32 %v1574, 0.0
    %v1587 = vadd.f32 %v1575, 0.0
    %v1588 = vadd.f32 %v1576, 0.0
    %v1589 = vadd.f32 %v1577, 0.0
    %v1590 = vadd.f32 %v1578, 0.0
    %v1591 = vadd.f32 %v1579, 0.0
    %v1592 = vadd.f32 %v1580, 0.0
    %v1593 = vadd.f32 %v1581, 0.0
    %s1594 = scalar_lea.vmem [#allocation2], 1536
    %v1595 = vld [vmem:[%s1594] sm:$0xff]
    %v1596 = vld [vmem:[%s1594 + $0x8] sm:$0xff]
    %v1597 = vld [vmem:[%s1594 + $0x10] sm:$0xff]
    %v1598 = vld [vmem:[%s1594 + $0x18] sm:$0xff]
    %v1599 = vld [vmem:[%s1594 + $0x20] sm:$0xff]
    %v1600 = vld [vmem:[%s1594 + $0x28] sm:$0xff]
    %v1601 = vld [vmem:[%s1594 + $0x30] sm:$0xff]
    %v1602 = vld [vmem:[%s1594 + $0x38] sm:$0xff]
    %v1603 = vld [vmem:[%s1594 + $0x40] sm:$0xff]
    %v1604 = vld [vmem:[%s1594 + $0x48] sm:$0xff]
    %v1605 = vld [vmem:[%s1594 + $0x50] sm:$0xff]
    %v1606 = vld [vmem:[%s1594 + $0x58] sm:$0xff]
    %v1607 = vld [vmem:[%s1594 + $0x60] sm:$0xff]
    %v1608 = vld [vmem:[%s1594 + $0x68] sm:$0xff]
    %v1609 = vld [vmem:[%s1594 + $0x70] sm:$0xff]
    %v1610 = vld [vmem:[%s1594 + $0x78] sm:$0xff]
    %v1611 = vld [vmem:[%s1594 + $0x80] sm:$0xff]
    %v1612 = vld [vmem:[%s1594 + $0x88] sm:$0xff]
    %v1613 = vld [vmem:[%s1594 + $0x90] sm:$0xff]
    %v1614 = vld [vmem:[%s1594 + $0x98] sm:$0xff]
    %v1615 = vld [vmem:[%s1594 + $0xa0] sm:$0xff]
    %v1616 = vld [vmem:[%s1594 + $0xa8] sm:$0xff]
    %v1617 = vld [vmem:[%s1594 + $0xb0] sm:$0xff]
    %v1618 = vld [vmem:[%s1594 + $0xb8] sm:$0xff]
    %v1619 = vld [vmem:[%s1594 + $0xc0] sm:$0xff]
    %v1620 = vld [vmem:[%s1594 + $0xc8] sm:$0xff]
    %v1621 = vld [vmem:[%s1594 + $0xd0] sm:$0xff]
    %v1622 = vld [vmem:[%s1594 + $0xd8] sm:$0xff]
    %v1623 = vld [vmem:[%s1594 + $0xe0] sm:$0xff]
    %v1624 = vld [vmem:[%s1594 + $0xe8] sm:$0xff]
    %v1625 = vld [vmem:[%s1594 + $0xf0] sm:$0xff]
    %v1626 = vld [vmem:[%s1594 + $0xf8] sm:$0xff]
    %v1627 = vld [vmem:[%s1594 + $0x100] sm:$0xff]
    %v1628 = vld [vmem:[%s1594 + $0x108] sm:$0xff]
    %v1629 = vld [vmem:[%s1594 + $0x110] sm:$0xff]
    %v1630 = vld [vmem:[%s1594 + $0x118] sm:$0xff]
    %v1631 = vld [vmem:[%s1594 + $0x120] sm:$0xff]
    %v1632 = vld [vmem:[%s1594 + $0x128] sm:$0xff]
    %v1633 = vld [vmem:[%s1594 + $0x130] sm:$0xff]
    %v1634 = vld [vmem:[%s1594 + $0x138] sm:$0xff]
    %v1635 = vld [vmem:[%s1594 + $0x140] sm:$0xff]
    %v1636 = vld [vmem:[%s1594 + $0x148] sm:$0xff]
    %v1637 = vld [vmem:[%s1594 + $0x150] sm:$0xff]
    %v1638 = vld [vmem:[%s1594 + $0x158] sm:$0xff]
    %v1639 = vld [vmem:[%s1594 + $0x160] sm:$0xff]
    %v1640 = vld [vmem:[%s1594 + $0x168] sm:$0xff]
    %v1641 = vld [vmem:[%s1594 + $0x170] sm:$0xff]
    %v1642 = vld [vmem:[%s1594 + $0x178] sm:$0xff]
    %v1643 = vld [vmem:[%s1594 + $0x180] sm:$0xff]
    %v1644 = vld [vmem:[%s1594 + $0x188] sm:$0xff]
    %v1645 = vld [vmem:[%s1594 + $0x190] sm:$0xff]
    %v1646 = vld [vmem:[%s1594 + $0x198] sm:$0xff]
    %v1647 = vld [vmem:[%s1594 + $0x1a0] sm:$0xff]
    %v1648 = vld [vmem:[%s1594 + $0x1a8] sm:$0xff]
    %v1649 = vld [vmem:[%s1594 + $0x1b0] sm:$0xff]
    %v1650 = vld [vmem:[%s1594 + $0x1b8] sm:$0xff]
    %v1651 = vld [vmem:[%s1594 + $0x1c0] sm:$0xff]
    %v1652 = vld [vmem:[%s1594 + $0x1c8] sm:$0xff]
    %v1653 = vld [vmem:[%s1594 + $0x1d0] sm:$0xff]
    %v1654 = vld [vmem:[%s1594 + $0x1d8] sm:$0xff]
    %v1655 = vld [vmem:[%s1594 + $0x1e0] sm:$0xff]
    %v1656 = vld [vmem:[%s1594 + $0x1e8] sm:$0xff]
    %v1657 = vld [vmem:[%s1594 + $0x1f0] sm:$0xff]
    %v1658 = vld [vmem:[%s1594 + $0x1f8] sm:$0xff]
    %v1659 = vld [vmem:[%s1594 + $0x200] sm:$0xff]
    %v1660 = vld [vmem:[%s1594 + $0x208] sm:$0xff]
    %v1661 = vld [vmem:[%s1594 + $0x210] sm:$0xff]
    %v1662 = vld [vmem:[%s1594 + $0x218] sm:$0xff]
    %v1663 = vld [vmem:[%s1594 + $0x220] sm:$0xff]
    %v1664 = vld [vmem:[%s1594 + $0x228] sm:$0xff]
    %v1665 = vld [vmem:[%s1594 + $0x230] sm:$0xff]
    %v1666 = vld [vmem:[%s1594 + $0x238] sm:$0xff]
    %v1667 = vld [vmem:[%s1594 + $0x240] sm:$0xff]
    %v1668 = vld [vmem:[%s1594 + $0x248] sm:$0xff]
    %v1669 = vld [vmem:[%s1594 + $0x250] sm:$0xff]
    %v1670 = vld [vmem:[%s1594 + $0x258] sm:$0xff]
    %v1671 = vld [vmem:[%s1594 + $0x260] sm:$0xff]
    %v1672 = vld [vmem:[%s1594 + $0x268] sm:$0xff]
    %v1673 = vld [vmem:[%s1594 + $0x270] sm:$0xff]
    %v1674 = vld [vmem:[%s1594 + $0x278] sm:$0xff]
    %v1675 = vld [vmem:[%s1594 + $0x280] sm:$0xff]
    %v1676 = vld [vmem:[%s1594 + $0x288] sm:$0xff]
    %v1677 = vld [vmem:[%s1594 + $0x290] sm:$0xff]
    %v1678 = vld [vmem:[%s1594 + $0x298] sm:$0xff]
    %v1679 = vld [vmem:[%s1594 + $0x2a0] sm:$0xff]
    %v1680 = vld [vmem:[%s1594 + $0x2a8] sm:$0xff]
    %v1681 = vld [vmem:[%s1594 + $0x2b0] sm:$0xff]
    %v1682 = vld [vmem:[%s1594 + $0x2b8] sm:$0xff]
    %v1683 = vld [vmem:[%s1594 + $0x2c0] sm:$0xff]
    %v1684 = vld [vmem:[%s1594 + $0x2c8] sm:$0xff]
    %v1685 = vld [vmem:[%s1594 + $0x2d0] sm:$0xff]
    %v1686 = vld [vmem:[%s1594 + $0x2d8] sm:$0xff]
    %v1687 = vld [vmem:[%s1594 + $0x2e0] sm:$0xff]
    %v1688 = vld [vmem:[%s1594 + $0x2e8] sm:$0xff]
    %v1689 = vld [vmem:[%s1594 + $0x2f0] sm:$0xff]
    %v1690 = vld [vmem:[%s1594 + $0x2f8] sm:$0xff]
    %v1691 = vld [vmem:[%s1594 + $0x300] sm:$0xff]
    %v1692 = vld [vmem:[%s1594 + $0x308] sm:$0xff]
    %v1693 = vld [vmem:[%s1594 + $0x310] sm:$0xff]
    %v1694 = vld [vmem:[%s1594 + $0x318] sm:$0xff]
    %v1695 = vld [vmem:[%s1594 + $0x320] sm:$0xff]
    %v1696 = vld [vmem:[%s1594 + $0x328] sm:$0xff]
    %v1697 = vld [vmem:[%s1594 + $0x330] sm:$0xff]
    %v1698 = vld [vmem:[%s1594 + $0x338] sm:$0xff]
    %v1699 = vld [vmem:[%s1594 + $0x340] sm:$0xff]
    %v1700 = vld [vmem:[%s1594 + $0x348] sm:$0xff]
    %v1701 = vld [vmem:[%s1594 + $0x350] sm:$0xff]
    %v1702 = vld [vmem:[%s1594 + $0x358] sm:$0xff]
    %v1703 = vld [vmem:[%s1594 + $0x360] sm:$0xff]
    %v1704 = vld [vmem:[%s1594 + $0x368] sm:$0xff]
    %v1705 = vld [vmem:[%s1594 + $0x370] sm:$0xff]
    %v1706 = vld [vmem:[%s1594 + $0x378] sm:$0xff]
    %v1707 = vld [vmem:[%s1594 + $0x380] sm:$0xff]
    %v1708 = vld [vmem:[%s1594 + $0x388] sm:$0xff]
    %v1709 = vld [vmem:[%s1594 + $0x390] sm:$0xff]
    %v1710 = vld [vmem:[%s1594 + $0x398] sm:$0xff]
    %v1711 = vld [vmem:[%s1594 + $0x3a0] sm:$0xff]
    %v1712 = vld [vmem:[%s1594 + $0x3a8] sm:$0xff]
    %v1713 = vld [vmem:[%s1594 + $0x3b0] sm:$0xff]
    %v1714 = vld [vmem:[%s1594 + $0x3b8] sm:$0xff]
    %v1715 = vld [vmem:[%s1594 + $0x3c0] sm:$0xff]
    %v1716 = vld [vmem:[%s1594 + $0x3c8] sm:$0xff]
    %v1717 = vld [vmem:[%s1594 + $0x3d0] sm:$0xff]
    %v1718 = vld [vmem:[%s1594 + $0x3d8] sm:$0xff]
    %v1719 = vld [vmem:[%s1594 + $0x3e0] sm:$0xff]
    %v1720 = vld [vmem:[%s1594 + $0x3e8] sm:$0xff]
    %v1721 = vld [vmem:[%s1594 + $0x3f0] sm:$0xff]
    %v1722 = vld [vmem:[%s1594 + $0x3f8] sm:$0xff]
    %v1723 = vld [vmem:[%s1594 + $0x400] sm:$0xff]
    %v1724 = vld [vmem:[%s1594 + $0x408] sm:$0xff]
    %v1725 = vld [vmem:[%s1594 + $0x410] sm:$0xff]
    %v1726 = vld [vmem:[%s1594 + $0x418] sm:$0xff]
    %v1727 = vld [vmem:[%s1594 + $0x420] sm:$0xff]
    %v1728 = vld [vmem:[%s1594 + $0x428] sm:$0xff]
    %v1729 = vld [vmem:[%s1594 + $0x430] sm:$0xff]
    %v1730 = vld [vmem:[%s1594 + $0x438] sm:$0xff]
    %v1731 = vld [vmem:[%s1594 + $0x440] sm:$0xff]
    %v1732 = vld [vmem:[%s1594 + $0x448] sm:$0xff]
    %v1733 = vld [vmem:[%s1594 + $0x450] sm:$0xff]
    %v1734 = vld [vmem:[%s1594 + $0x458] sm:$0xff]
    %v1735 = vld [vmem:[%s1594 + $0x460] sm:$0xff]
    %v1736 = vld [vmem:[%s1594 + $0x468] sm:$0xff]
    %v1737 = vld [vmem:[%s1594 + $0x470] sm:$0xff]
    %v1738 = vld [vmem:[%s1594 + $0x478] sm:$0xff]
    %v1739 = vld [vmem:[%s1594 + $0x480] sm:$0xff]
    %v1740 = vld [vmem:[%s1594 + $0x488] sm:$0xff]
    %v1741 = vld [vmem:[%s1594 + $0x490] sm:$0xff]
    %v1742 = vld [vmem:[%s1594 + $0x498] sm:$0xff]
    %v1743 = vld [vmem:[%s1594 + $0x4a0] sm:$0xff]
    %v1744 = vld [vmem:[%s1594 + $0x4a8] sm:$0xff]
    %v1745 = vld [vmem:[%s1594 + $0x4b0] sm:$0xff]
    %v1746 = vld [vmem:[%s1594 + $0x4b8] sm:$0xff]
    %v1747 = vld [vmem:[%s1594 + $0x4c0] sm:$0xff]
    %v1748 = vld [vmem:[%s1594 + $0x4c8] sm:$0xff]
    %v1749 = vld [vmem:[%s1594 + $0x4d0] sm:$0xff]
    %v1750 = vld [vmem:[%s1594 + $0x4d8] sm:$0xff]
    %v1751 = vld [vmem:[%s1594 + $0x4e0] sm:$0xff]
    %v1752 = vld [vmem:[%s1594 + $0x4e8] sm:$0xff]
    %v1753 = vld [vmem:[%s1594 + $0x4f0] sm:$0xff]
    %v1754 = vld [vmem:[%s1594 + $0x4f8] sm:$0xff]
    %v1755 = vld [vmem:[%s1594 + $0x500] sm:$0xff]
    %v1756 = vld [vmem:[%s1594 + $0x508] sm:$0xff]
    %v1757 = vld [vmem:[%s1594 + $0x510] sm:$0xff]
    %v1758 = vld [vmem:[%s1594 + $0x518] sm:$0xff]
    %v1759 = vld [vmem:[%s1594 + $0x520] sm:$0xff]
    %v1760 = vld [vmem:[%s1594 + $0x528] sm:$0xff]
    %v1761 = vld [vmem:[%s1594 + $0x530] sm:$0xff]
    %v1762 = vld [vmem:[%s1594 + $0x538] sm:$0xff]
    %v1763 = vld [vmem:[%s1594 + $0x540] sm:$0xff]
    %v1764 = vld [vmem:[%s1594 + $0x548] sm:$0xff]
    %v1765 = vld [vmem:[%s1594 + $0x550] sm:$0xff]
    %v1766 = vld [vmem:[%s1594 + $0x558] sm:$0xff]
    %v1767 = vld [vmem:[%s1594 + $0x560] sm:$0xff]
    %v1768 = vld [vmem:[%s1594 + $0x568] sm:$0xff]
    %v1769 = vld [vmem:[%s1594 + $0x570] sm:$0xff]
    %v1770 = vld [vmem:[%s1594 + $0x578] sm:$0xff]
    %v1771 = vld [vmem:[%s1594 + $0x580] sm:$0xff]
    %v1772 = vld [vmem:[%s1594 + $0x588] sm:$0xff]
    %v1773 = vld [vmem:[%s1594 + $0x590] sm:$0xff]
    %v1774 = vld [vmem:[%s1594 + $0x598] sm:$0xff]
    %v1775 = vld [vmem:[%s1594 + $0x5a0] sm:$0xff]
    %v1776 = vld [vmem:[%s1594 + $0x5a8] sm:$0xff]
    %v1777 = vld [vmem:[%s1594 + $0x5b0] sm:$0xff]
    %v1778 = vld [vmem:[%s1594 + $0x5b8] sm:$0xff]
    %v1779 = vld [vmem:[%s1594 + $0x5c0] sm:$0xff]
    %v1780 = vld [vmem:[%s1594 + $0x5c8] sm:$0xff]
    %v1781 = vld [vmem:[%s1594 + $0x5d0] sm:$0xff]
    %v1782 = vld [vmem:[%s1594 + $0x5d8] sm:$0xff]
    %v1783 = vld [vmem:[%s1594 + $0x5e0] sm:$0xff]
    %v1784 = vld [vmem:[%s1594 + $0x5e8] sm:$0xff]
    %v1785 = vld [vmem:[%s1594 + $0x5f0] sm:$0xff]
    %v1786 = vld [vmem:[%s1594 + $0x5f8] sm:$0xff]
    %v1979 = vunpack.c.l.b16 %v1595
    %v1980 = vunpack.c.h.b16 %v1595
    %v1981 = vunpack.c.l.b16 %v1596
    %v1982 = vunpack.c.h.b16 %v1596
    %v1983 = vunpack.c.l.b16 %v1597
    %v1984 = vunpack.c.h.b16 %v1597
    %v1985 = vunpack.c.l.b16 %v1598
    %v1986 = vunpack.c.h.b16 %v1598
    %v1987 = vunpack.c.l.b16 %v1599
    %v1988 = vunpack.c.h.b16 %v1599
    %v1989 = vunpack.c.l.b16 %v1600
    %v1990 = vunpack.c.h.b16 %v1600
    %v1991 = vunpack.c.l.b16 %v1601
    %v1992 = vunpack.c.h.b16 %v1601
    %v1993 = vunpack.c.l.b16 %v1602
    %v1994 = vunpack.c.h.b16 %v1602
    %v1995 = vunpack.c.l.b16 %v1603
    %v1996 = vunpack.c.h.b16 %v1603
    %v1997 = vunpack.c.l.b16 %v1604
    %v1998 = vunpack.c.h.b16 %v1604
    %v1999 = vunpack.c.l.b16 %v1605
    %v2000 = vunpack.c.h.b16 %v1605
    %v2001 = vunpack.c.l.b16 %v1606
    %v2002 = vunpack.c.h.b16 %v1606
    %v2003 = vunpack.c.l.b16 %v1607
    %v2004 = vunpack.c.h.b16 %v1607
    %v2005 = vunpack.c.l.b16 %v1608
    %v2006 = vunpack.c.h.b16 %v1608
    %v2007 = vunpack.c.l.b16 %v1609
    %v2008 = vunpack.c.h.b16 %v1609
    %v2009 = vunpack.c.l.b16 %v1610
    %v2010 = vunpack.c.h.b16 %v1610
    %v2011 = vunpack.c.l.b16 %v1611
    %v2012 = vunpack.c.h.b16 %v1611
    %v2013 = vunpack.c.l.b16 %v1612
    %v2014 = vunpack.c.h.b16 %v1612
    %v2015 = vunpack.c.l.b16 %v1613
    %v2016 = vunpack.c.h.b16 %v1613
    %v2017 = vunpack.c.l.b16 %v1614
    %v2018 = vunpack.c.h.b16 %v1614
    %v2019 = vunpack.c.l.b16 %v1615
    %v2020 = vunpack.c.h.b16 %v1615
    %v2021 = vunpack.c.l.b16 %v1616
    %v2022 = vunpack.c.h.b16 %v1616
    %v2023 = vunpack.c.l.b16 %v1617
    %v2024 = vunpack.c.h.b16 %v1617
    %v2025 = vunpack.c.l.b16 %v1618
    %v2026 = vunpack.c.h.b16 %v1618
    %v2027 = vunpack.c.l.b16 %v1619
    %v2028 = vunpack.c.h.b16 %v1619
    %v2029 = vunpack.c.l.b16 %v1620
    %v2030 = vunpack.c.h.b16 %v1620
    %v2031 = vunpack.c.l.b16 %v1621
    %v2032 = vunpack.c.h.b16 %v1621
    %v2033 = vunpack.c.l.b16 %v1622
    %v2034 = vunpack.c.h.b16 %v1622
    %v2035 = vunpack.c.l.b16 %v1623
    %v2036 = vunpack.c.h.b16 %v1623
    %v2037 = vunpack.c.l.b16 %v1624
    %v2038 = vunpack.c.h.b16 %v1624
    %v2039 = vunpack.c.l.b16 %v1625
    %v2040 = vunpack.c.h.b16 %v1625
    %v2041 = vunpack.c.l.b16 %v1626
    %v2042 = vunpack.c.h.b16 %v1626
    %v2043 = vunpack.c.l.b16 %v1627
    %v2044 = vunpack.c.h.b16 %v1627
    %v2045 = vunpack.c.l.b16 %v1628
    %v2046 = vunpack.c.h.b16 %v1628
    %v2047 = vunpack.c.l.b16 %v1629
    %v2048 = vunpack.c.h.b16 %v1629
    %v2049 = vunpack.c.l.b16 %v1630
    %v2050 = vunpack.c.h.b16 %v1630
    %v2051 = vunpack.c.l.b16 %v1631
    %v2052 = vunpack.c.h.b16 %v1631
    %v2053 = vunpack.c.l.b16 %v1632
    %v2054 = vunpack.c.h.b16 %v1632
    %v2055 = vunpack.c.l.b16 %v1633
    %v2056 = vunpack.c.h.b16 %v1633
    %v2057 = vunpack.c.l.b16 %v1634
    %v2058 = vunpack.c.h.b16 %v1634
    %v2059 = vunpack.c.l.b16 %v1635
    %v2060 = vunpack.c.h.b16 %v1635
    %v2061 = vunpack.c.l.b16 %v1636
    %v2062 = vunpack.c.h.b16 %v1636
    %v2063 = vunpack.c.l.b16 %v1637
    %v2064 = vunpack.c.h.b16 %v1637
    %v2065 = vunpack.c.l.b16 %v1638
    %v2066 = vunpack.c.h.b16 %v1638
    %v2067 = vunpack.c.l.b16 %v1639
    %v2068 = vunpack.c.h.b16 %v1639
    %v2069 = vunpack.c.l.b16 %v1640
    %v2070 = vunpack.c.h.b16 %v1640
    %v2071 = vunpack.c.l.b16 %v1641
    %v2072 = vunpack.c.h.b16 %v1641
    %v2073 = vunpack.c.l.b16 %v1642
    %v2074 = vunpack.c.h.b16 %v1642
    %v2075 = vunpack.c.l.b16 %v1643
    %v2076 = vunpack.c.h.b16 %v1643
    %v2077 = vunpack.c.l.b16 %v1644
    %v2078 = vunpack.c.h.b16 %v1644
    %v2079 = vunpack.c.l.b16 %v1645
    %v2080 = vunpack.c.h.b16 %v1645
    %v2081 = vunpack.c.l.b16 %v1646
    %v2082 = vunpack.c.h.b16 %v1646
    %v2083 = vunpack.c.l.b16 %v1647
    %v2084 = vunpack.c.h.b16 %v1647
    %v2085 = vunpack.c.l.b16 %v1648
    %v2086 = vunpack.c.h.b16 %v1648
    %v2087 = vunpack.c.l.b16 %v1649
    %v2088 = vunpack.c.h.b16 %v1649
    %v2089 = vunpack.c.l.b16 %v1650
    %v2090 = vunpack.c.h.b16 %v1650
    %v2091 = vunpack.c.l.b16 %v1651
    %v2092 = vunpack.c.h.b16 %v1651
    %v2093 = vunpack.c.l.b16 %v1652
    %v2094 = vunpack.c.h.b16 %v1652
    %v2095 = vunpack.c.l.b16 %v1653
    %v2096 = vunpack.c.h.b16 %v1653
    %v2097 = vunpack.c.l.b16 %v1654
    %v2098 = vunpack.c.h.b16 %v1654
    %v2099 = vunpack.c.l.b16 %v1655
    %v2100 = vunpack.c.h.b16 %v1655
    %v2101 = vunpack.c.l.b16 %v1656
    %v2102 = vunpack.c.h.b16 %v1656
    %v2103 = vunpack.c.l.b16 %v1657
    %v2104 = vunpack.c.h.b16 %v1657
    %v2105 = vunpack.c.l.b16 %v1658
    %v2106 = vunpack.c.h.b16 %v1658
    %v2107 = vunpack.c.l.b16 %v1659
    %v2108 = vunpack.c.h.b16 %v1659
    %v2109 = vunpack.c.l.b16 %v1660
    %v2110 = vunpack.c.h.b16 %v1660
    %v2111 = vunpack.c.l.b16 %v1661
    %v2112 = vunpack.c.h.b16 %v1661
    %v2113 = vunpack.c.l.b16 %v1662
    %v2114 = vunpack.c.h.b16 %v1662
    %v2115 = vunpack.c.l.b16 %v1663
    %v2116 = vunpack.c.h.b16 %v1663
    %v2117 = vunpack.c.l.b16 %v1664
    %v2118 = vunpack.c.h.b16 %v1664
    %v2119 = vunpack.c.l.b16 %v1665
    %v2120 = vunpack.c.h.b16 %v1665
    %v2121 = vunpack.c.l.b16 %v1666
    %v2122 = vunpack.c.h.b16 %v1666
    %v2123 = vunpack.c.l.b16 %v1667
    %v2124 = vunpack.c.h.b16 %v1667
    %v2125 = vunpack.c.l.b16 %v1668
    %v2126 = vunpack.c.h.b16 %v1668
    %v2127 = vunpack.c.l.b16 %v1669
    %v2128 = vunpack.c.h.b16 %v1669
    %v2129 = vunpack.c.l.b16 %v1670
    %v2130 = vunpack.c.h.b16 %v1670
    %v2131 = vunpack.c.l.b16 %v1671
    %v2132 = vunpack.c.h.b16 %v1671
    %v2133 = vunpack.c.l.b16 %v1672
    %v2134 = vunpack.c.h.b16 %v1672
    %v2135 = vunpack.c.l.b16 %v1673
    %v2136 = vunpack.c.h.b16 %v1673
    %v2137 = vunpack.c.l.b16 %v1674
    %v2138 = vunpack.c.h.b16 %v1674
    %v2139 = vunpack.c.l.b16 %v1675
    %v2140 = vunpack.c.h.b16 %v1675
    %v2141 = vunpack.c.l.b16 %v1676
    %v2142 = vunpack.c.h.b16 %v1676
    %v2143 = vunpack.c.l.b16 %v1677
    %v2144 = vunpack.c.h.b16 %v1677
    %v2145 = vunpack.c.l.b16 %v1678
    %v2146 = vunpack.c.h.b16 %v1678
    %v2147 = vunpack.c.l.b16 %v1679
    %v2148 = vunpack.c.h.b16 %v1679
    %v2149 = vunpack.c.l.b16 %v1680
    %v2150 = vunpack.c.h.b16 %v1680
    %v2151 = vunpack.c.l.b16 %v1681
    %v2152 = vunpack.c.h.b16 %v1681
    %v2153 = vunpack.c.l.b16 %v1682
    %v2154 = vunpack.c.h.b16 %v1682
    %v2155 = vunpack.c.l.b16 %v1683
    %v2156 = vunpack.c.h.b16 %v1683
    %v2157 = vunpack.c.l.b16 %v1684
    %v2158 = vunpack.c.h.b16 %v1684
    %v2159 = vunpack.c.l.b16 %v1685
    %v2160 = vunpack.c.h.b16 %v1685
    %v2161 = vunpack.c.l.b16 %v1686
    %v2162 = vunpack.c.h.b16 %v1686
    %v2163 = vunpack.c.l.b16 %v1687
    %v2164 = vunpack.c.h.b16 %v1687
    %v2165 = vunpack.c.l.b16 %v1688
    %v2166 = vunpack.c.h.b16 %v1688
    %v2167 = vunpack.c.l.b16 %v1689
    %v2168 = vunpack.c.h.b16 %v1689
    %v2169 = vunpack.c.l.b16 %v1690
    %v2170 = vunpack.c.h.b16 %v1690
    %v2171 = vunpack.c.l.b16 %v1691
    %v2172 = vunpack.c.h.b16 %v1691
    %v2173 = vunpack.c.l.b16 %v1692
    %v2174 = vunpack.c.h.b16 %v1692
    %v2175 = vunpack.c.l.b16 %v1693
    %v2176 = vunpack.c.h.b16 %v1693
    %v2177 = vunpack.c.l.b16 %v1694
    %v2178 = vunpack.c.h.b16 %v1694
    %v2179 = vunpack.c.l.b16 %v1695
    %v2180 = vunpack.c.h.b16 %v1695
    %v2181 = vunpack.c.l.b16 %v1696
    %v2182 = vunpack.c.h.b16 %v1696
    %v2183 = vunpack.c.l.b16 %v1697
    %v2184 = vunpack.c.h.b16 %v1697
    %v2185 = vunpack.c.l.b16 %v1698
    %v2186 = vunpack.c.h.b16 %v1698
    %v2187 = vunpack.c.l.b16 %v1699
    %v2188 = vunpack.c.h.b16 %v1699
    %v2189 = vunpack.c.l.b16 %v1700
    %v2190 = vunpack.c.h.b16 %v1700
    %v2191 = vunpack.c.l.b16 %v1701
    %v2192 = vunpack.c.h.b16 %v1701
    %v2193 = vunpack.c.l.b16 %v1702
    %v2194 = vunpack.c.h.b16 %v1702
    %v2195 = vunpack.c.l.b16 %v1703
    %v2196 = vunpack.c.h.b16 %v1703
    %v2197 = vunpack.c.l.b16 %v1704
    %v2198 = vunpack.c.h.b16 %v1704
    %v2199 = vunpack.c.l.b16 %v1705
    %v2200 = vunpack.c.h.b16 %v1705
    %v2201 = vunpack.c.l.b16 %v1706
    %v2202 = vunpack.c.h.b16 %v1706
    %v2203 = vunpack.c.l.b16 %v1707
    %v2204 = vunpack.c.h.b16 %v1707
    %v2205 = vunpack.c.l.b16 %v1708
    %v2206 = vunpack.c.h.b16 %v1708
    %v2207 = vunpack.c.l.b16 %v1709
    %v2208 = vunpack.c.h.b16 %v1709
    %v2209 = vunpack.c.l.b16 %v1710
    %v2210 = vunpack.c.h.b16 %v1710
    %v2211 = vunpack.c.l.b16 %v1711
    %v2212 = vunpack.c.h.b16 %v1711
    %v2213 = vunpack.c.l.b16 %v1712
    %v2214 = vunpack.c.h.b16 %v1712
    %v2215 = vunpack.c.l.b16 %v1713
    %v2216 = vunpack.c.h.b16 %v1713
    %v2217 = vunpack.c.l.b16 %v1714
    %v2218 = vunpack.c.h.b16 %v1714
    %v2219 = vunpack.c.l.b16 %v1715
    %v2220 = vunpack.c.h.b16 %v1715
    %v2221 = vunpack.c.l.b16 %v1716
    %v2222 = vunpack.c.h.b16 %v1716
    %v2223 = vunpack.c.l.b16 %v1717
    %v2224 = vunpack.c.h.b16 %v1717
    %v2225 = vunpack.c.l.b16 %v1718
    %v2226 = vunpack.c.h.b16 %v1718
    %v2227 = vunpack.c.l.b16 %v1719
    %v2228 = vunpack.c.h.b16 %v1719
    %v2229 = vunpack.c.l.b16 %v1720
    %v2230 = vunpack.c.h.b16 %v1720
    %v2231 = vunpack.c.l.b16 %v1721
    %v2232 = vunpack.c.h.b16 %v1721
    %v2233 = vunpack.c.l.b16 %v1722
    %v2234 = vunpack.c.h.b16 %v1722
    %v2235 = vunpack.c.l.b16 %v1723
    %v2236 = vunpack.c.h.b16 %v1723
    %v2237 = vunpack.c.l.b16 %v1724
    %v2238 = vunpack.c.h.b16 %v1724
    %v2239 = vunpack.c.l.b16 %v1725
    %v2240 = vunpack.c.h.b16 %v1725
    %v2241 = vunpack.c.l.b16 %v1726
    %v2242 = vunpack.c.h.b16 %v1726
    %v2243 = vunpack.c.l.b16 %v1727
    %v2244 = vunpack.c.h.b16 %v1727
    %v2245 = vunpack.c.l.b16 %v1728
    %v2246 = vunpack.c.h.b16 %v1728
    %v2247 = vunpack.c.l.b16 %v1729
    %v2248 = vunpack.c.h.b16 %v1729
    %v2249 = vunpack.c.l.b16 %v1730
    %v2250 = vunpack.c.h.b16 %v1730
    %v2251 = vunpack.c.l.b16 %v1731
    %v2252 = vunpack.c.h.b16 %v1731
    %v2253 = vunpack.c.l.b16 %v1732
    %v2254 = vunpack.c.h.b16 %v1732
    %v2255 = vunpack.c.l.b16 %v1733
    %v2256 = vunpack.c.h.b16 %v1733
    %v2257 = vunpack.c.l.b16 %v1734
    %v2258 = vunpack.c.h.b16 %v1734
    %v2259 = vunpack.c.l.b16 %v1735
    %v2260 = vunpack.c.h.b16 %v1735
    %v2261 = vunpack.c.l.b16 %v1736
    %v2262 = vunpack.c.h.b16 %v1736
    %v2263 = vunpack.c.l.b16 %v1737
    %v2264 = vunpack.c.h.b16 %v1737
    %v2265 = vunpack.c.l.b16 %v1738
    %v2266 = vunpack.c.h.b16 %v1738
    %v2267 = vunpack.c.l.b16 %v1739
    %v2268 = vunpack.c.h.b16 %v1739
    %v2269 = vunpack.c.l.b16 %v1740
    %v2270 = vunpack.c.h.b16 %v1740
    %v2271 = vunpack.c.l.b16 %v1741
    %v2272 = vunpack.c.h.b16 %v1741
    %v2273 = vunpack.c.l.b16 %v1742
    %v2274 = vunpack.c.h.b16 %v1742
    %v2275 = vunpack.c.l.b16 %v1743
    %v2276 = vunpack.c.h.b16 %v1743
    %v2277 = vunpack.c.l.b16 %v1744
    %v2278 = vunpack.c.h.b16 %v1744
    %v2279 = vunpack.c.l.b16 %v1745
    %v2280 = vunpack.c.h.b16 %v1745
    %v2281 = vunpack.c.l.b16 %v1746
    %v2282 = vunpack.c.h.b16 %v1746
    %v2283 = vunpack.c.l.b16 %v1747
    %v2284 = vunpack.c.h.b16 %v1747
    %v2285 = vunpack.c.l.b16 %v1748
    %v2286 = vunpack.c.h.b16 %v1748
    %v2287 = vunpack.c.l.b16 %v1749
    %v2288 = vunpack.c.h.b16 %v1749
    %v2289 = vunpack.c.l.b16 %v1750
    %v2290 = vunpack.c.h.b16 %v1750
    %v2291 = vunpack.c.l.b16 %v1751
    %v2292 = vunpack.c.h.b16 %v1751
    %v2293 = vunpack.c.l.b16 %v1752
    %v2294 = vunpack.c.h.b16 %v1752
    %v2295 = vunpack.c.l.b16 %v1753
    %v2296 = vunpack.c.h.b16 %v1753
    %v2297 = vunpack.c.l.b16 %v1754
    %v2298 = vunpack.c.h.b16 %v1754
    %v2299 = vunpack.c.l.b16 %v1755
    %v2300 = vunpack.c.h.b16 %v1755
    %v2301 = vunpack.c.l.b16 %v1756
    %v2302 = vunpack.c.h.b16 %v1756
    %v2303 = vunpack.c.l.b16 %v1757
    %v2304 = vunpack.c.h.b16 %v1757
    %v2305 = vunpack.c.l.b16 %v1758
    %v2306 = vunpack.c.h.b16 %v1758
    %v2307 = vunpack.c.l.b16 %v1759
    %v2308 = vunpack.c.h.b16 %v1759
    %v2309 = vunpack.c.l.b16 %v1760
    %v2310 = vunpack.c.h.b16 %v1760
    %v2311 = vunpack.c.l.b16 %v1761
    %v2312 = vunpack.c.h.b16 %v1761
    %v2313 = vunpack.c.l.b16 %v1762
    %v2314 = vunpack.c.h.b16 %v1762
    %v2315 = vunpack.c.l.b16 %v1763
    %v2316 = vunpack.c.h.b16 %v1763
    %v2317 = vunpack.c.l.b16 %v1764
    %v2318 = vunpack.c.h.b16 %v1764
    %v2319 = vunpack.c.l.b16 %v1765
    %v2320 = vunpack.c.h.b16 %v1765
    %v2321 = vunpack.c.l.b16 %v1766
    %v2322 = vunpack.c.h.b16 %v1766
    %v2323 = vunpack.c.l.b16 %v1767
    %v2324 = vunpack.c.h.b16 %v1767
    %v2325 = vunpack.c.l.b16 %v1768
    %v2326 = vunpack.c.h.b16 %v1768
    %v2327 = vunpack.c.l.b16 %v1769
    %v2328 = vunpack.c.h.b16 %v1769
    %v2329 = vunpack.c.l.b16 %v1770
    %v2330 = vunpack.c.h.b16 %v1770
    %v2331 = vunpack.c.l.b16 %v1771
    %v2332 = vunpack.c.h.b16 %v1771
    %v2333 = vunpack.c.l.b16 %v1772
    %v2334 = vunpack.c.h.b16 %v1772
    %v2335 = vunpack.c.l.b16 %v1773
    %v2336 = vunpack.c.h.b16 %v1773
    %v2337 = vunpack.c.l.b16 %v1774
    %v2338 = vunpack.c.h.b16 %v1774
    %v2339 = vunpack.c.l.b16 %v1775
    %v2340 = vunpack.c.h.b16 %v1775
    %v2341 = vunpack.c.l.b16 %v1776
    %v2342 = vunpack.c.h.b16 %v1776
    %v2343 = vunpack.c.l.b16 %v1777
    %v2344 = vunpack.c.h.b16 %v1777
    %v2345 = vunpack.c.l.b16 %v1778
    %v2346 = vunpack.c.h.b16 %v1778
    %v2347 = vunpack.c.l.b16 %v1779
    %v2348 = vunpack.c.h.b16 %v1779
    %v2349 = vunpack.c.l.b16 %v1780
    %v2350 = vunpack.c.h.b16 %v1780
    %v2351 = vunpack.c.l.b16 %v1781
    %v2352 = vunpack.c.h.b16 %v1781
    %v2353 = vunpack.c.l.b16 %v1782
    %v2354 = vunpack.c.h.b16 %v1782
    %v2355 = vunpack.c.l.b16 %v1783
    %v2356 = vunpack.c.h.b16 %v1783
    %v2357 = vunpack.c.l.b16 %v1784
    %v2358 = vunpack.c.h.b16 %v1784
    %v2359 = vunpack.c.l.b16 %v1785
    %v2360 = vunpack.c.h.b16 %v1785
    %v2361 = vunpack.c.l.b16 %v1786
    %v2362 = vunpack.c.h.b16 %v1786
    %v2363 = vpack.c.b16 %v1985, %v1979
    %v2364 = vpack.c.b16 %v1986, %v1980
    %v2365 = vpack.c.b16 %v1987, %v1981
    %v2366 = vpack.c.b16 %v1988, %v1982
    %v2367 = vpack.c.b16 %v1989, %v1983
    %v2368 = vpack.c.b16 %v1990, %v1984
    %v2369 = vpack.c.b16 %v1997, %v1991
    %v2370 = vpack.c.b16 %v1998, %v1992
    %v2371 = vpack.c.b16 %v1999, %v1993
    %v2372 = vpack.c.b16 %v2000, %v1994
    %v2373 = vpack.c.b16 %v2001, %v1995
    %v2374 = vpack.c.b16 %v2002, %v1996
    %v2375 = vpack.c.b16 %v2009, %v2003
    %v2376 = vpack.c.b16 %v2010, %v2004
    %v2377 = vpack.c.b16 %v2011, %v2005
    %v2378 = vpack.c.b16 %v2012, %v2006
    %v2379 = vpack.c.b16 %v2013, %v2007
    %v2380 = vpack.c.b16 %v2014, %v2008
    %v2381 = vpack.c.b16 %v2021, %v2015
    %v2382 = vpack.c.b16 %v2022, %v2016
    %v2383 = vpack.c.b16 %v2023, %v2017
    %v2384 = vpack.c.b16 %v2024, %v2018
    %v2385 = vpack.c.b16 %v2025, %v2019
    %v2386 = vpack.c.b16 %v2026, %v2020
    %v2387 = vpack.c.b16 %v2033, %v2027
    %v2388 = vpack.c.b16 %v2034, %v2028
    %v2389 = vpack.c.b16 %v2035, %v2029
    %v2390 = vpack.c.b16 %v2036, %v2030
    %v2391 = vpack.c.b16 %v2037, %v2031
    %v2392 = vpack.c.b16 %v2038, %v2032
    %v2393 = vpack.c.b16 %v2045, %v2039
    %v2394 = vpack.c.b16 %v2046, %v2040
    %v2395 = vpack.c.b16 %v2047, %v2041
    %v2396 = vpack.c.b16 %v2048, %v2042
    %v2397 = vpack.c.b16 %v2049, %v2043
    %v2398 = vpack.c.b16 %v2050, %v2044
    %v2399 = vpack.c.b16 %v2057, %v2051
    %v2400 = vpack.c.b16 %v2058, %v2052
    %v2401 = vpack.c.b16 %v2059, %v2053
    %v2402 = vpack.c.b16 %v2060, %v2054
    %v2403 = vpack.c.b16 %v2061, %v2055
    %v2404 = vpack.c.b16 %v2062, %v2056
    %v2405 = vpack.c.b16 %v2069, %v2063
    %v2406 = vpack.c.b16 %v2070, %v2064
    %v2407 = vpack.c.b16 %v2071, %v2065
    %v2408 = vpack.c.b16 %v2072, %v2066
    %v2409 = vpack.c.b16 %v2073, %v2067
    %v2410 = vpack.c.b16 %v2074, %v2068
    %v2411 = vpack.c.b16 %v2081, %v2075
    %v2412 = vpack.c.b16 %v2082, %v2076
    %v2413 = vpack.c.b16 %v2083, %v2077
    %v2414 = vpack.c.b16 %v2084, %v2078
    %v2415 = vpack.c.b16 %v2085, %v2079
    %v2416 = vpack.c.b16 %v2086, %v2080
    %v2417 = vpack.c.b16 %v2093, %v2087
    %v2418 = vpack.c.b16 %v2094, %v2088
    %v2419 = vpack.c.b16 %v2095, %v2089
    %v2420 = vpack.c.b16 %v2096, %v2090
    %v2421 = vpack.c.b16 %v2097, %v2091
    %v2422 = vpack.c.b16 %v2098, %v2092
    %v2423 = vpack.c.b16 %v2105, %v2099
    %v2424 = vpack.c.b16 %v2106, %v2100
    %v2425 = vpack.c.b16 %v2107, %v2101
    %v2426 = vpack.c.b16 %v2108, %v2102
    %v2427 = vpack.c.b16 %v2109, %v2103
    %v2428 = vpack.c.b16 %v2110, %v2104
    %v2429 = vpack.c.b16 %v2117, %v2111
    %v2430 = vpack.c.b16 %v2118, %v2112
    %v2431 = vpack.c.b16 %v2119, %v2113
    %v2432 = vpack.c.b16 %v2120, %v2114
    %v2433 = vpack.c.b16 %v2121, %v2115
    %v2434 = vpack.c.b16 %v2122, %v2116
    %v2435 = vpack.c.b16 %v2129, %v2123
    %v2436 = vpack.c.b16 %v2130, %v2124
    %v2437 = vpack.c.b16 %v2131, %v2125
    %v2438 = vpack.c.b16 %v2132, %v2126
    %v2439 = vpack.c.b16 %v2133, %v2127
    %v2440 = vpack.c.b16 %v2134, %v2128
    %v2441 = vpack.c.b16 %v2141, %v2135
    %v2442 = vpack.c.b16 %v2142, %v2136
    %v2443 = vpack.c.b16 %v2143, %v2137
    %v2444 = vpack.c.b16 %v2144, %v2138
    %v2445 = vpack.c.b16 %v2145, %v2139
    %v2446 = vpack.c.b16 %v2146, %v2140
    %v2447 = vpack.c.b16 %v2153, %v2147
    %v2448 = vpack.c.b16 %v2154, %v2148
    %v2449 = vpack.c.b16 %v2155, %v2149
    %v2450 = vpack.c.b16 %v2156, %v2150
    %v2451 = vpack.c.b16 %v2157, %v2151
    %v2452 = vpack.c.b16 %v2158, %v2152
    %v2453 = vpack.c.b16 %v2165, %v2159
    %v2454 = vpack.c.b16 %v2166, %v2160
    %v2455 = vpack.c.b16 %v2167, %v2161
    %v2456 = vpack.c.b16 %v2168, %v2162
    %v2457 = vpack.c.b16 %v2169, %v2163
    %v2458 = vpack.c.b16 %v2170, %v2164
    %v2459 = vpack.c.b16 %v2177, %v2171
    %v2460 = vpack.c.b16 %v2178, %v2172
    %v2461 = vpack.c.b16 %v2179, %v2173
    %v2462 = vpack.c.b16 %v2180, %v2174
    %v2463 = vpack.c.b16 %v2181, %v2175
    %v2464 = vpack.c.b16 %v2182, %v2176
    %v2465 = vpack.c.b16 %v2189, %v2183
    %v2466 = vpack.c.b16 %v2190, %v2184
    %v2467 = vpack.c.b16 %v2191, %v2185
    %v2468 = vpack.c.b16 %v2192, %v2186
    %v2469 = vpack.c.b16 %v2193, %v2187
    %v2470 = vpack.c.b16 %v2194, %v2188
    %v2471 = vpack.c.b16 %v2201, %v2195
    %v2472 = vpack.c.b16 %v2202, %v2196
    %v2473 = vpack.c.b16 %v2203, %v2197
    %v2474 = vpack.c.b16 %v2204, %v2198
    %v2475 = vpack.c.b16 %v2205, %v2199
    %v2476 = vpack.c.b16 %v2206, %v2200
    %v2477 = vpack.c.b16 %v2213, %v2207
    %v2478 = vpack.c.b16 %v2214, %v2208
    %v2479 = vpack.c.b16 %v2215, %v2209
    %v2480 = vpack.c.b16 %v2216, %v2210
    %v2481 = vpack.c.b16 %v2217, %v2211
    %v2482 = vpack.c.b16 %v2218, %v2212
    %v2483 = vpack.c.b16 %v2225, %v2219
    %v2484 = vpack.c.b16 %v2226, %v2220
    %v2485 = vpack.c.b16 %v2227, %v2221
    %v2486 = vpack.c.b16 %v2228, %v2222
    %v2487 = vpack.c.b16 %v2229, %v2223
    %v2488 = vpack.c.b16 %v2230, %v2224
    %v2489 = vpack.c.b16 %v2237, %v2231
    %v2490 = vpack.c.b16 %v2238, %v2232
    %v2491 = vpack.c.b16 %v2239, %v2233
    %v2492 = vpack.c.b16 %v2240, %v2234
    %v2493 = vpack.c.b16 %v2241, %v2235
    %v2494 = vpack.c.b16 %v2242, %v2236
    %v2495 = vpack.c.b16 %v2249, %v2243
    %v2496 = vpack.c.b16 %v2250, %v2244
    %v2497 = vpack.c.b16 %v2251, %v2245
    %v2498 = vpack.c.b16 %v2252, %v2246
    %v2499 = vpack.c.b16 %v2253, %v2247
    %v2500 = vpack.c.b16 %v2254, %v2248
    %v2501 = vpack.c.b16 %v2261, %v2255
    %v2502 = vpack.c.b16 %v2262, %v2256
    %v2503 = vpack.c.b16 %v2263, %v2257
    %v2504 = vpack.c.b16 %v2264, %v2258
    %v2505 = vpack.c.b16 %v2265, %v2259
    %v2506 = vpack.c.b16 %v2266, %v2260
    %v2507 = vpack.c.b16 %v2273, %v2267
    %v2508 = vpack.c.b16 %v2274, %v2268
    %v2509 = vpack.c.b16 %v2275, %v2269
    %v2510 = vpack.c.b16 %v2276, %v2270
    %v2511 = vpack.c.b16 %v2277, %v2271
    %v2512 = vpack.c.b16 %v2278, %v2272
    %v2513 = vpack.c.b16 %v2285, %v2279
    %v2514 = vpack.c.b16 %v2286, %v2280
    %v2515 = vpack.c.b16 %v2287, %v2281
    %v2516 = vpack.c.b16 %v2288, %v2282
    %v2517 = vpack.c.b16 %v2289, %v2283
    %v2518 = vpack.c.b16 %v2290, %v2284
    %v2519 = vpack.c.b16 %v2297, %v2291
    %v2520 = vpack.c.b16 %v2298, %v2292
    %v2521 = vpack.c.b16 %v2299, %v2293
    %v2522 = vpack.c.b16 %v2300, %v2294
    %v2523 = vpack.c.b16 %v2301, %v2295
    %v2524 = vpack.c.b16 %v2302, %v2296
    %v2525 = vpack.c.b16 %v2309, %v2303
    %v2526 = vpack.c.b16 %v2310, %v2304
    %v2527 = vpack.c.b16 %v2311, %v2305
    %v2528 = vpack.c.b16 %v2312, %v2306
    %v2529 = vpack.c.b16 %v2313, %v2307
    %v2530 = vpack.c.b16 %v2314, %v2308
    %v2531 = vpack.c.b16 %v2321, %v2315
    %v2532 = vpack.c.b16 %v2322, %v2316
    %v2533 = vpack.c.b16 %v2323, %v2317
    %v2534 = vpack.c.b16 %v2324, %v2318
    %v2535 = vpack.c.b16 %v2325, %v2319
    %v2536 = vpack.c.b16 %v2326, %v2320
    %v2537 = vpack.c.b16 %v2333, %v2327
    %v2538 = vpack.c.b16 %v2334, %v2328
    %v2539 = vpack.c.b16 %v2335, %v2329
    %v2540 = vpack.c.b16 %v2336, %v2330
    %v2541 = vpack.c.b16 %v2337, %v2331
    %v2542 = vpack.c.b16 %v2338, %v2332
    %v2543 = vpack.c.b16 %v2345, %v2339
    %v2544 = vpack.c.b16 %v2346, %v2340
    %v2545 = vpack.c.b16 %v2347, %v2341
    %v2546 = vpack.c.b16 %v2348, %v2342
    %v2547 = vpack.c.b16 %v2349, %v2343
    %v2548 = vpack.c.b16 %v2350, %v2344
    %v2549 = vpack.c.b16 %v2357, %v2351
    %v2550 = vpack.c.b16 %v2358, %v2352
    %v2551 = vpack.c.b16 %v2359, %v2353
    %v2552 = vpack.c.b16 %v2360, %v2354
    %v2553 = vpack.c.b16 %v2361, %v2355
    %v2554 = vpack.c.b16 %v2362, %v2356
    %2747 = vmatpush.bf16.msra.mxu0 %v2405
    %2748 = vmatpush.bf16.msra.mxu0 %v2399
    %2749 = vmatpush.bf16.msra.mxu0 %v2393
    %2750 = vmatpush.bf16.msra.mxu0 %v2387
    %2751 = vmatpush.bf16.msra.mxu0 %v2381
    %2752 = vmatpush.bf16.msra.mxu0 %v2375
    %2753 = vmatpush.bf16.msra.mxu0 %v2369
    %2754 = vmatpush.bf16.msra.mxu0 %v2363
    %2755 = vmatmul.bf16.gmra.mxu0 %v254
    %v2756 = vpop.f32.mrf.mxu0
    %v2757 = vadd.f32 0.0, %v2756
    %v2758 = vpop.f32.mrf.mxu0
    %v2759 = vadd.f32 0.0, %v2758
    %2760 = vdwg.mxu0
    %2761 = vmatpush.bf16.msra.mxu0 %v2453
    %2762 = vmatpush.bf16.msra.mxu0 %v2447
    %2763 = vmatpush.bf16.msra.mxu0 %v2441
    %2764 = vmatpush.bf16.msra.mxu0 %v2435
    %2765 = vmatpush.bf16.msra.mxu0 %v2429
    %2766 = vmatpush.bf16.msra.mxu0 %v2423
    %2767 = vmatpush.bf16.msra.mxu0 %v2417
    %2768 = vmatpush.bf16.msra.mxu0 %v2411
    %2769 = vmatmul.bf16.gmra.mxu0 %v255
    %v2770 = vpop.f32.mrf.mxu0
    %v2771 = vadd.f32 %v2757, %v2770
    %v2772 = vpop.f32.mrf.mxu0
    %v2773 = vadd.f32 %v2759, %v2772
    %2774 = vdwg.mxu0
    %2775 = vmatpush.bf16.msra.mxu0 %v2501
    %2776 = vmatpush.bf16.msra.mxu0 %v2495
    %2777 = vmatpush.bf16.msra.mxu0 %v2489
    %2778 = vmatpush.bf16.msra.mxu0 %v2483
    %2779 = vmatpush.bf16.msra.mxu0 %v2477
    %2780 = vmatpush.bf16.msra.mxu0 %v2471
    %2781 = vmatpush.bf16.msra.mxu0 %v2465
    %2782 = vmatpush.bf16.msra.mxu0 %v2459
    %2783 = vmatmul.bf16.gmra.mxu0 %v256
    %v2784 = vpop.f32.mrf.mxu0
    %v2785 = vadd.f32 %v2771, %v2784
    %v2786 = vpop.f32.mrf.mxu0
    %v2787 = vadd.f32 %v2773, %v2786
    %2788 = vdwg.mxu0
    %2789 = vmatpush.bf16.msra.mxu0 %v2549
    %2790 = vmatpush.bf16.msra.mxu0 %v2543
    %2791 = vmatpush.bf16.msra.mxu0 %v2537
    %2792 = vmatpush.bf16.msra.mxu0 %v2531
    %2793 = vmatpush.bf16.msra.mxu0 %v2525
    %2794 = vmatpush.bf16.msra.mxu0 %v2519
    %2795 = vmatpush.bf16.msra.mxu0 %v2513
    %2796 = vmatpush.bf16.msra.mxu0 %v2507
    %2797 = vmatmul.bf16.gmra.mxu0 %v257
    %v2798 = vpop.f32.mrf.mxu0
    %v2799 = vadd.f32 %v2785, %v2798
    %v2800 = vpop.f32.mrf.mxu0
    %v2801 = vadd.f32 %v2787, %v2800
    %2802 = vdwg.mxu0
    %2803 = vmatpush.bf16.msra.mxu0 %v2406
    %2804 = vmatpush.bf16.msra.mxu0 %v2400
    %2805 = vmatpush.bf16.msra.mxu0 %v2394
    %2806 = vmatpush.bf16.msra.mxu0 %v2388
    %2807 = vmatpush.bf16.msra.mxu0 %v2382
    %2808 = vmatpush.bf16.msra.mxu0 %v2376
    %2809 = vmatpush.bf16.msra.mxu0 %v2370
    %2810 = vmatpush.bf16.msra.mxu0 %v2364
    %2811 = vmatmul.bf16.gmra.mxu0 %v254
    %v2812 = vpop.f32.mrf.mxu0
    %v2813 = vadd.f32 0.0, %v2812
    %v2814 = vpop.f32.mrf.mxu0
    %v2815 = vadd.f32 0.0, %v2814
    %2816 = vdwg.mxu0
    %2817 = vmatpush.bf16.msra.mxu0 %v2454
    %2818 = vmatpush.bf16.msra.mxu0 %v2448
    %2819 = vmatpush.bf16.msra.mxu0 %v2442
    %2820 = vmatpush.bf16.msra.mxu0 %v2436
    %2821 = vmatpush.bf16.msra.mxu0 %v2430
    %2822 = vmatpush.bf16.msra.mxu0 %v2424
    %2823 = vmatpush.bf16.msra.mxu0 %v2418
    %2824 = vmatpush.bf16.msra.mxu0 %v2412
    %2825 = vmatmul.bf16.gmra.mxu0 %v255
    %v2826 = vpop.f32.mrf.mxu0
    %v2827 = vadd.f32 %v2813, %v2826
    %v2828 = vpop.f32.mrf.mxu0
    %v2829 = vadd.f32 %v2815, %v2828
    %2830 = vdwg.mxu0
    %2831 = vmatpush.bf16.msra.mxu0 %v2502
    %2832 = vmatpush.bf16.msra.mxu0 %v2496
    %2833 = vmatpush.bf16.msra.mxu0 %v2490
    %2834 = vmatpush.bf16.msra.mxu0 %v2484
    %2835 = vmatpush.bf16.msra.mxu0 %v2478
    %2836 = vmatpush.bf16.msra.mxu0 %v2472
    %2837 = vmatpush.bf16.msra.mxu0 %v2466
    %2838 = vmatpush.bf16.msra.mxu0 %v2460
    %2839 = vmatmul.bf16.gmra.mxu0 %v256
    %v2840 = vpop.f32.mrf.mxu0
    %v2841 = vadd.f32 %v2827, %v2840
    %v2842 = vpop.f32.mrf.mxu0
    %v2843 = vadd.f32 %v2829, %v2842
    %2844 = vdwg.mxu0
    %2845 = vmatpush.bf16.msra.mxu0 %v2550
    %2846 = vmatpush.bf16.msra.mxu0 %v2544
    %2847 = vmatpush.bf16.msra.mxu0 %v2538
    %2848 = vmatpush.bf16.msra.mxu0 %v2532
    %2849 = vmatpush.bf16.msra.mxu0 %v2526
    %2850 = vmatpush.bf16.msra.mxu0 %v2520
    %2851 = vmatpush.bf16.msra.mxu0 %v2514
    %2852 = vmatpush.bf16.msra.mxu0 %v2508
    %2853 = vmatmul.bf16.gmra.mxu0 %v257
    %v2854 = vpop.f32.mrf.mxu0
    %v2855 = vadd.f32 %v2841, %v2854
    %v2856 = vpop.f32.mrf.mxu0
    %v2857 = vadd.f32 %v2843, %v2856
    %2858 = vdwg.mxu0
    %2859 = vmatpush.bf16.msra.mxu0 %v2407
    %2860 = vmatpush.bf16.msra.mxu0 %v2401
    %2861 = vmatpush.bf16.msra.mxu0 %v2395
    %2862 = vmatpush.bf16.msra.mxu0 %v2389
    %2863 = vmatpush.bf16.msra.mxu0 %v2383
    %2864 = vmatpush.bf16.msra.mxu0 %v2377
    %2865 = vmatpush.bf16.msra.mxu0 %v2371
    %2866 = vmatpush.bf16.msra.mxu0 %v2365
    %2867 = vmatmul.bf16.gmra.mxu0 %v254
    %v2868 = vpop.f32.mrf.mxu0
    %v2869 = vadd.f32 0.0, %v2868
    %v2870 = vpop.f32.mrf.mxu0
    %v2871 = vadd.f32 0.0, %v2870
    %2872 = vdwg.mxu0
    %2873 = vmatpush.bf16.msra.mxu0 %v2455
    %2874 = vmatpush.bf16.msra.mxu0 %v2449
    %2875 = vmatpush.bf16.msra.mxu0 %v2443
    %2876 = vmatpush.bf16.msra.mxu0 %v2437
    %2877 = vmatpush.bf16.msra.mxu0 %v2431
    %2878 = vmatpush.bf16.msra.mxu0 %v2425
    %2879 = vmatpush.bf16.msra.mxu0 %v2419
    %2880 = vmatpush.bf16.msra.mxu0 %v2413
    %2881 = vmatmul.bf16.gmra.mxu0 %v255
    %v2882 = vpop.f32.mrf.mxu0
    %v2883 = vadd.f32 %v2869, %v2882
    %v2884 = vpop.f32.mrf.mxu0
    %v2885 = vadd.f32 %v2871, %v2884
    %2886 = vdwg.mxu0
    %2887 = vmatpush.bf16.msra.mxu0 %v2503
    %2888 = vmatpush.bf16.msra.mxu0 %v2497
    %2889 = vmatpush.bf16.msra.mxu0 %v2491
    %2890 = vmatpush.bf16.msra.mxu0 %v2485
    %2891 = vmatpush.bf16.msra.mxu0 %v2479
    %2892 = vmatpush.bf16.msra.mxu0 %v2473
    %2893 = vmatpush.bf16.msra.mxu0 %v2467
    %2894 = vmatpush.bf16.msra.mxu0 %v2461
    %2895 = vmatmul.bf16.gmra.mxu0 %v256
    %v2896 = vpop.f32.mrf.mxu0
    %v2897 = vadd.f32 %v2883, %v2896
    %v2898 = vpop.f32.mrf.mxu0
    %v2899 = vadd.f32 %v2885, %v2898
    %2900 = vdwg.mxu0
    %2901 = vmatpush.bf16.msra.mxu0 %v2551
    %2902 = vmatpush.bf16.msra.mxu0 %v2545
    %2903 = vmatpush.bf16.msra.mxu0 %v2539
    %2904 = vmatpush.bf16.msra.mxu0 %v2533
    %2905 = vmatpush.bf16.msra.mxu0 %v2527
    %2906 = vmatpush.bf16.msra.mxu0 %v2521
    %2907 = vmatpush.bf16.msra.mxu0 %v2515
    %2908 = vmatpush.bf16.msra.mxu0 %v2509
    %2909 = vmatmul.bf16.gmra.mxu0 %v257
    %v2910 = vpop.f32.mrf.mxu0
    %v2911 = vadd.f32 %v2897, %v2910
    %v2912 = vpop.f32.mrf.mxu0
    %v2913 = vadd.f32 %v2899, %v2912
    %2914 = vdwg.mxu0
    %2915 = vmatpush.bf16.msra.mxu0 %v2408
    %2916 = vmatpush.bf16.msra.mxu0 %v2402
    %2917 = vmatpush.bf16.msra.mxu0 %v2396
    %2918 = vmatpush.bf16.msra.mxu0 %v2390
    %2919 = vmatpush.bf16.msra.mxu0 %v2384
    %2920 = vmatpush.bf16.msra.mxu0 %v2378
    %2921 = vmatpush.bf16.msra.mxu0 %v2372
    %2922 = vmatpush.bf16.msra.mxu0 %v2366
    %2923 = vmatmul.bf16.gmra.mxu0 %v254
    %v2924 = vpop.f32.mrf.mxu0
    %v2925 = vadd.f32 0.0, %v2924
    %v2926 = vpop.f32.mrf.mxu0
    %v2927 = vadd.f32 0.0, %v2926
    %2928 = vdwg.mxu0
    %2929 = vmatpush.bf16.msra.mxu0 %v2456
    %2930 = vmatpush.bf16.msra.mxu0 %v2450
    %2931 = vmatpush.bf16.msra.mxu0 %v2444
    %2932 = vmatpush.bf16.msra.mxu0 %v2438
    %2933 = vmatpush.bf16.msra.mxu0 %v2432
    %2934 = vmatpush.bf16.msra.mxu0 %v2426
    %2935 = vmatpush.bf16.msra.mxu0 %v2420
    %2936 = vmatpush.bf16.msra.mxu0 %v2414
    %2937 = vmatmul.bf16.gmra.mxu0 %v255
    %v2938 = vpop.f32.mrf.mxu0
    %v2939 = vadd.f32 %v2925, %v2938
    %v2940 = vpop.f32.mrf.mxu0
    %v2941 = vadd.f32 %v2927, %v2940
    %2942 = vdwg.mxu0
    %2943 = vmatpush.bf16.msra.mxu0 %v2504
    %2944 = vmatpush.bf16.msra.mxu0 %v2498
    %2945 = vmatpush.bf16.msra.mxu0 %v2492
    %2946 = vmatpush.bf16.msra.mxu0 %v2486
    %2947 = vmatpush.bf16.msra.mxu0 %v2480
    %2948 = vmatpush.bf16.msra.mxu0 %v2474
    %2949 = vmatpush.bf16.msra.mxu0 %v2468
    %2950 = vmatpush.bf16.msra.mxu0 %v2462
    %2951 = vmatmul.bf16.gmra.mxu0 %v256
    %v2952 = vpop.f32.mrf.mxu0
    %v2953 = vadd.f32 %v2939, %v2952
    %v2954 = vpop.f32.mrf.mxu0
    %v2955 = vadd.f32 %v2941, %v2954
    %2956 = vdwg.mxu0
    %2957 = vmatpush.bf16.msra.mxu0 %v2552
    %2958 = vmatpush.bf16.msra.mxu0 %v2546
    %2959 = vmatpush.bf16.msra.mxu0 %v2540
    %2960 = vmatpush.bf16.msra.mxu0 %v2534
    %2961 = vmatpush.bf16.msra.mxu0 %v2528
    %2962 = vmatpush.bf16.msra.mxu0 %v2522
    %2963 = vmatpush.bf16.msra.mxu0 %v2516
    %2964 = vmatpush.bf16.msra.mxu0 %v2510
    %2965 = vmatmul.bf16.gmra.mxu0 %v257
    %v2966 = vpop.f32.mrf.mxu0
    %v2967 = vadd.f32 %v2953, %v2966
    %v2968 = vpop.f32.mrf.mxu0
    %v2969 = vadd.f32 %v2955, %v2968
    %2970 = vdwg.mxu0
    %2971 = vmatpush.bf16.msra.mxu0 %v2409
    %2972 = vmatpush.bf16.msra.mxu0 %v2403
    %2973 = vmatpush.bf16.msra.mxu0 %v2397
    %2974 = vmatpush.bf16.msra.mxu0 %v2391
    %2975 = vmatpush.bf16.msra.mxu0 %v2385
    %2976 = vmatpush.bf16.msra.mxu0 %v2379
    %2977 = vmatpush.bf16.msra.mxu0 %v2373
    %2978 = vmatpush.bf16.msra.mxu0 %v2367
    %2979 = vmatmul.bf16.gmra.mxu0 %v254
    %v2980 = vpop.f32.mrf.mxu0
    %v2981 = vadd.f32 0.0, %v2980
    %v2982 = vpop.f32.mrf.mxu0
    %v2983 = vadd.f32 0.0, %v2982
    %2984 = vdwg.mxu0
    %2985 = vmatpush.bf16.msra.mxu0 %v2457
    %2986 = vmatpush.bf16.msra.mxu0 %v2451
    %2987 = vmatpush.bf16.msra.mxu0 %v2445
    %2988 = vmatpush.bf16.msra.mxu0 %v2439
    %2989 = vmatpush.bf16.msra.mxu0 %v2433
    %2990 = vmatpush.bf16.msra.mxu0 %v2427
    %2991 = vmatpush.bf16.msra.mxu0 %v2421
    %2992 = vmatpush.bf16.msra.mxu0 %v2415
    %2993 = vmatmul.bf16.gmra.mxu0 %v255
    %v2994 = vpop.f32.mrf.mxu0
    %v2995 = vadd.f32 %v2981, %v2994
    %v2996 = vpop.f32.mrf.mxu0
    %v2997 = vadd.f32 %v2983, %v2996
    %2998 = vdwg.mxu0
    %2999 = vmatpush.bf16.msra.mxu0 %v2505
    %3000 = vmatpush.bf16.msra.mxu0 %v2499
    %3001 = vmatpush.bf16.msra.mxu0 %v2493
    %3002 = vmatpush.bf16.msra.mxu0 %v2487
    %3003 = vmatpush.bf16.msra.mxu0 %v2481
    %3004 = vmatpush.bf16.msra.mxu0 %v2475
    %3005 = vmatpush.bf16.msra.mxu0 %v2469
    %3006 = vmatpush.bf16.msra.mxu0 %v2463
    %3007 = vmatmul.bf16.gmra.mxu0 %v256
    %v3008 = vpop.f32.mrf.mxu0
    %v3009 = vadd.f32 %v2995, %v3008
    %v3010 = vpop.f32.mrf.mxu0
    %v3011 = vadd.f32 %v2997, %v3010
    %3012 = vdwg.mxu0
    %3013 = vmatpush.bf16.msra.mxu0 %v2553
    %3014 = vmatpush.bf16.msra.mxu0 %v2547
    %3015 = vmatpush.bf16.msra.mxu0 %v2541
    %3016 = vmatpush.bf16.msra.mxu0 %v2535
    %3017 = vmatpush.bf16.msra.mxu0 %v2529
    %3018 = vmatpush.bf16.msra.mxu0 %v2523
    %3019 = vmatpush.bf16.msra.mxu0 %v2517
    %3020 = vmatpush.bf16.msra.mxu0 %v2511
    %3021 = vmatmul.bf16.gmra.mxu0 %v257
    %v3022 = vpop.f32.mrf.mxu0
    %v3023 = vadd.f32 %v3009, %v3022
    %v3024 = vpop.f32.mrf.mxu0
    %v3025 = vadd.f32 %v3011, %v3024
    %3026 = vdwg.mxu0
    %3027 = vmatpush.bf16.msra.mxu0 %v2410
    %3028 = vmatpush.bf16.msra.mxu0 %v2404
    %3029 = vmatpush.bf16.msra.mxu0 %v2398
    %3030 = vmatpush.bf16.msra.mxu0 %v2392
    %3031 = vmatpush.bf16.msra.mxu0 %v2386
    %3032 = vmatpush.bf16.msra.mxu0 %v2380
    %3033 = vmatpush.bf16.msra.mxu0 %v2374
    %3034 = vmatpush.bf16.msra.mxu0 %v2368
    %3035 = vmatmul.bf16.gmra.mxu0 %v254
    %v3036 = vpop.f32.mrf.mxu0
    %v3037 = vadd.f32 0.0, %v3036
    %v3038 = vpop.f32.mrf.mxu0
    %v3039 = vadd.f32 0.0, %v3038
    %3040 = vdwg.mxu0
    %3041 = vmatpush.bf16.msra.mxu0 %v2458
    %3042 = vmatpush.bf16.msra.mxu0 %v2452
    %3043 = vmatpush.bf16.msra.mxu0 %v2446
    %3044 = vmatpush.bf16.msra.mxu0 %v2440
    %3045 = vmatpush.bf16.msra.mxu0 %v2434
    %3046 = vmatpush.bf16.msra.mxu0 %v2428
    %3047 = vmatpush.bf16.msra.mxu0 %v2422
    %3048 = vmatpush.bf16.msra.mxu0 %v2416
    %3049 = vmatmul.bf16.gmra.mxu0 %v255
    %v3050 = vpop.f32.mrf.mxu0
    %v3051 = vadd.f32 %v3037, %v3050
    %v3052 = vpop.f32.mrf.mxu0
    %v3053 = vadd.f32 %v3039, %v3052
    %3054 = vdwg.mxu0
    %3055 = vmatpush.bf16.msra.mxu0 %v2506
    %3056 = vmatpush.bf16.msra.mxu0 %v2500
    %3057 = vmatpush.bf16.msra.mxu0 %v2494
    %3058 = vmatpush.bf16.msra.mxu0 %v2488
    %3059 = vmatpush.bf16.msra.mxu0 %v2482
    %3060 = vmatpush.bf16.msra.mxu0 %v2476
    %3061 = vmatpush.bf16.msra.mxu0 %v2470
    %3062 = vmatpush.bf16.msra.mxu0 %v2464
    %3063 = vmatmul.bf16.gmra.mxu0 %v256
    %v3064 = vpop.f32.mrf.mxu0
    %v3065 = vadd.f32 %v3051, %v3064
    %v3066 = vpop.f32.mrf.mxu0
    %v3067 = vadd.f32 %v3053, %v3066
    %3068 = vdwg.mxu0
    %3069 = vmatpush.bf16.msra.mxu0 %v2554
    %3070 = vmatpush.bf16.msra.mxu0 %v2548
    %3071 = vmatpush.bf16.msra.mxu0 %v2542
    %3072 = vmatpush.bf16.msra.mxu0 %v2536
    %3073 = vmatpush.bf16.msra.mxu0 %v2530
    %3074 = vmatpush.bf16.msra.mxu0 %v2524
    %3075 = vmatpush.bf16.msra.mxu0 %v2518
    %3076 = vmatpush.bf16.msra.mxu0 %v2512
    %3077 = vmatmul.bf16.gmra.mxu0 %v257
    %v3078 = vpop.f32.mrf.mxu0
    %v3079 = vadd.f32 %v3065, %v3078
    %v3080 = vpop.f32.mrf.mxu0
    %v3081 = vadd.f32 %v3067, %v3080
    %3082 = vdwg.mxu0
    %s3083 = scalar_lea.vmem %s1, 16
    %v3084 = vld [vmem:[%s3083] sm:$0xff]
    %v3085 = vld [vmem:[%s3083 + $0x8] sm:$0xff]
    %3087 = vset.pattern.permute.xlu0 0
    %3088 = vperm.xlu0 %3087, %v3084
    %v3089 = vpop.permute.xlu0 %3088
    %3092 = vset.pattern.permute.xlu0 0
    %3093 = vperm.xlu0 %3092, %v3085
    %v3094 = vpop.permute.xlu0 %3093
    %v3096 = vmul.f32 %v3089, %v2799
    %v3097 = vmul.f32 %v3089, %v2855
    %v3098 = vmul.f32 %v3089, %v2911
    %v3099 = vmul.f32 %v3089, %v2967
    %v3100 = vmul.f32 %v3089, %v3023
    %v3101 = vmul.f32 %v3089, %v3079
    %v3102 = vmul.f32 %v3094, %v2801
    %v3103 = vmul.f32 %v3094, %v2857
    %v3104 = vmul.f32 %v3094, %v2913
    %v3105 = vmul.f32 %v3094, %v2969
    %v3106 = vmul.f32 %v3094, %v3025
    %v3107 = vmul.f32 %v3094, %v3081
    %v3108 = vadd.f32 %v1582, %v3096
    %v3109 = vadd.f32 %v1583, %v3097
    %v3110 = vadd.f32 %v1584, %v3098
    %v3111 = vadd.f32 %v1585, %v3099
    %v3112 = vadd.f32 %v1586, %v3100
    %v3113 = vadd.f32 %v1587, %v3101
    %v3114 = vadd.f32 %v1588, %v3102
    %v3115 = vadd.f32 %v1589, %v3103
    %v3116 = vadd.f32 %v1590, %v3104
    %v3117 = vadd.f32 %v1591, %v3105
    %v3118 = vadd.f32 %v1592, %v3106
    %v3119 = vadd.f32 %v1593, %v3107
    %s3120 = scalar_lea.vmem [#allocation2], 3072
    %v3121 = vld [vmem:[%s3120] sm:$0xff]
    %v3122 = vld [vmem:[%s3120 + $0x8] sm:$0xff]
    %v3123 = vld [vmem:[%s3120 + $0x10] sm:$0xff]
    %v3124 = vld [vmem:[%s3120 + $0x18] sm:$0xff]
    %v3125 = vld [vmem:[%s3120 + $0x20] sm:$0xff]
    %v3126 = vld [vmem:[%s3120 + $0x28] sm:$0xff]
    %v3127 = vld [vmem:[%s3120 + $0x30] sm:$0xff]
    %v3128 = vld [vmem:[%s3120 + $0x38] sm:$0xff]
    %v3129 = vld [vmem:[%s3120 + $0x40] sm:$0xff]
    %v3130 = vld [vmem:[%s3120 + $0x48] sm:$0xff]
    %v3131 = vld [vmem:[%s3120 + $0x50] sm:$0xff]
    %v3132 = vld [vmem:[%s3120 + $0x58] sm:$0xff]
    %v3133 = vld [vmem:[%s3120 + $0x60] sm:$0xff]
    %v3134 = vld [vmem:[%s3120 + $0x68] sm:$0xff]
    %v3135 = vld [vmem:[%s3120 + $0x70] sm:$0xff]
    %v3136 = vld [vmem:[%s3120 + $0x78] sm:$0xff]
    %v3137 = vld [vmem:[%s3120 + $0x80] sm:$0xff]
    %v3138 = vld [vmem:[%s3120 + $0x88] sm:$0xff]
    %v3139 = vld [vmem:[%s3120 + $0x90] sm:$0xff]
    %v3140 = vld [vmem:[%s3120 + $0x98] sm:$0xff]
    %v3141 = vld [vmem:[%s3120 + $0xa0] sm:$0xff]
    %v3142 = vld [vmem:[%s3120 + $0xa8] sm:$0xff]
    %v3143 = vld [vmem:[%s3120 + $0xb0] sm:$0xff]
    %v3144 = vld [vmem:[%s3120 + $0xb8] sm:$0xff]
    %v3145 = vld [vmem:[%s3120 + $0xc0] sm:$0xff]
    %v3146 = vld [vmem:[%s3120 + $0xc8] sm:$0xff]
    %v3147 = vld [vmem:[%s3120 + $0xd0] sm:$0xff]
    %v3148 = vld [vmem:[%s3120 + $0xd8] sm:$0xff]
    %v3149 = vld [vmem:[%s3120 + $0xe0] sm:$0xff]
    %v3150 = vld [vmem:[%s3120 + $0xe8] sm:$0xff]
    %v3151 = vld [vmem:[%s3120 + $0xf0] sm:$0xff]
    %v3152 = vld [vmem:[%s3120 + $0xf8] sm:$0xff]
    %v3153 = vld [vmem:[%s3120 + $0x100] sm:$0xff]
    %v3154 = vld [vmem:[%s3120 + $0x108] sm:$0xff]
    %v3155 = vld [vmem:[%s3120 + $0x110] sm:$0xff]
    %v3156 = vld [vmem:[%s3120 + $0x118] sm:$0xff]
    %v3157 = vld [vmem:[%s3120 + $0x120] sm:$0xff]
    %v3158 = vld [vmem:[%s3120 + $0x128] sm:$0xff]
    %v3159 = vld [vmem:[%s3120 + $0x130] sm:$0xff]
    %v3160 = vld [vmem:[%s3120 + $0x138] sm:$0xff]
    %v3161 = vld [vmem:[%s3120 + $0x140] sm:$0xff]
    %v3162 = vld [vmem:[%s3120 + $0x148] sm:$0xff]
    %v3163 = vld [vmem:[%s3120 + $0x150] sm:$0xff]
    %v3164 = vld [vmem:[%s3120 + $0x158] sm:$0xff]
    %v3165 = vld [vmem:[%s3120 + $0x160] sm:$0xff]
    %v3166 = vld [vmem:[%s3120 + $0x168] sm:$0xff]
    %v3167 = vld [vmem:[%s3120 + $0x170] sm:$0xff]
    %v3168 = vld [vmem:[%s3120 + $0x178] sm:$0xff]
    %v3169 = vld [vmem:[%s3120 + $0x180] sm:$0xff]
    %v3170 = vld [vmem:[%s3120 + $0x188] sm:$0xff]
    %v3171 = vld [vmem:[%s3120 + $0x190] sm:$0xff]
    %v3172 = vld [vmem:[%s3120 + $0x198] sm:$0xff]
    %v3173 = vld [vmem:[%s3120 + $0x1a0] sm:$0xff]
    %v3174 = vld [vmem:[%s3120 + $0x1a8] sm:$0xff]
    %v3175 = vld [vmem:[%s3120 + $0x1b0] sm:$0xff]
    %v3176 = vld [vmem:[%s3120 + $0x1b8] sm:$0xff]
    %v3177 = vld [vmem:[%s3120 + $0x1c0] sm:$0xff]
    %v3178 = vld [vmem:[%s3120 + $0x1c8] sm:$0xff]
    %v3179 = vld [vmem:[%s3120 + $0x1d0] sm:$0xff]
    %v3180 = vld [vmem:[%s3120 + $0x1d8] sm:$0xff]
    %v3181 = vld [vmem:[%s3120 + $0x1e0] sm:$0xff]
    %v3182 = vld [vmem:[%s3120 + $0x1e8] sm:$0xff]
    %v3183 = vld [vmem:[%s3120 + $0x1f0] sm:$0xff]
    %v3184 = vld [vmem:[%s3120 + $0x1f8] sm:$0xff]
    %v3185 = vld [vmem:[%s3120 + $0x200] sm:$0xff]
    %v3186 = vld [vmem:[%s3120 + $0x208] sm:$0xff]
    %v3187 = vld [vmem:[%s3120 + $0x210] sm:$0xff]
    %v3188 = vld [vmem:[%s3120 + $0x218] sm:$0xff]
    %v3189 = vld [vmem:[%s3120 + $0x220] sm:$0xff]
    %v3190 = vld [vmem:[%s3120 + $0x228] sm:$0xff]
    %v3191 = vld [vmem:[%s3120 + $0x230] sm:$0xff]
    %v3192 = vld [vmem:[%s3120 + $0x238] sm:$0xff]
    %v3193 = vld [vmem:[%s3120 + $0x240] sm:$0xff]
    %v3194 = vld [vmem:[%s3120 + $0x248] sm:$0xff]
    %v3195 = vld [vmem:[%s3120 + $0x250] sm:$0xff]
    %v3196 = vld [vmem:[%s3120 + $0x258] sm:$0xff]
    %v3197 = vld [vmem:[%s3120 + $0x260] sm:$0xff]
    %v3198 = vld [vmem:[%s3120 + $0x268] sm:$0xff]
    %v3199 = vld [vmem:[%s3120 + $0x270] sm:$0xff]
    %v3200 = vld [vmem:[%s3120 + $0x278] sm:$0xff]
    %v3201 = vld [vmem:[%s3120 + $0x280] sm:$0xff]
    %v3202 = vld [vmem:[%s3120 + $0x288] sm:$0xff]
    %v3203 = vld [vmem:[%s3120 + $0x290] sm:$0xff]
    %v3204 = vld [vmem:[%s3120 + $0x298] sm:$0xff]
    %v3205 = vld [vmem:[%s3120 + $0x2a0] sm:$0xff]
    %v3206 = vld [vmem:[%s3120 + $0x2a8] sm:$0xff]
    %v3207 = vld [vmem:[%s3120 + $0x2b0] sm:$0xff]
    %v3208 = vld [vmem:[%s3120 + $0x2b8] sm:$0xff]
    %v3209 = vld [vmem:[%s3120 + $0x2c0] sm:$0xff]
    %v3210 = vld [vmem:[%s3120 + $0x2c8] sm:$0xff]
    %v3211 = vld [vmem:[%s3120 + $0x2d0] sm:$0xff]
    %v3212 = vld [vmem:[%s3120 + $0x2d8] sm:$0xff]
    %v3213 = vld [vmem:[%s3120 + $0x2e0] sm:$0xff]
    %v3214 = vld [vmem:[%s3120 + $0x2e8] sm:$0xff]
    %v3215 = vld [vmem:[%s3120 + $0x2f0] sm:$0xff]
    %v3216 = vld [vmem:[%s3120 + $0x2f8] sm:$0xff]
    %v3217 = vld [vmem:[%s3120 + $0x300] sm:$0xff]
    %v3218 = vld [vmem:[%s3120 + $0x308] sm:$0xff]
    %v3219 = vld [vmem:[%s3120 + $0x310] sm:$0xff]
    %v3220 = vld [vmem:[%s3120 + $0x318] sm:$0xff]
    %v3221 = vld [vmem:[%s3120 + $0x320] sm:$0xff]
    %v3222 = vld [vmem:[%s3120 + $0x328] sm:$0xff]
    %v3223 = vld [vmem:[%s3120 + $0x330] sm:$0xff]
    %v3224 = vld [vmem:[%s3120 + $0x338] sm:$0xff]
    %v3225 = vld [vmem:[%s3120 + $0x340] sm:$0xff]
    %v3226 = vld [vmem:[%s3120 + $0x348] sm:$0xff]
    %v3227 = vld [vmem:[%s3120 + $0x350] sm:$0xff]
    %v3228 = vld [vmem:[%s3120 + $0x358] sm:$0xff]
    %v3229 = vld [vmem:[%s3120 + $0x360] sm:$0xff]
    %v3230 = vld [vmem:[%s3120 + $0x368] sm:$0xff]
    %v3231 = vld [vmem:[%s3120 + $0x370] sm:$0xff]
    %v3232 = vld [vmem:[%s3120 + $0x378] sm:$0xff]
    %v3233 = vld [vmem:[%s3120 + $0x380] sm:$0xff]
    %v3234 = vld [vmem:[%s3120 + $0x388] sm:$0xff]
    %v3235 = vld [vmem:[%s3120 + $0x390] sm:$0xff]
    %v3236 = vld [vmem:[%s3120 + $0x398] sm:$0xff]
    %v3237 = vld [vmem:[%s3120 + $0x3a0] sm:$0xff]
    %v3238 = vld [vmem:[%s3120 + $0x3a8] sm:$0xff]
    %v3239 = vld [vmem:[%s3120 + $0x3b0] sm:$0xff]
    %v3240 = vld [vmem:[%s3120 + $0x3b8] sm:$0xff]
    %v3241 = vld [vmem:[%s3120 + $0x3c0] sm:$0xff]
    %v3242 = vld [vmem:[%s3120 + $0x3c8] sm:$0xff]
    %v3243 = vld [vmem:[%s3120 + $0x3d0] sm:$0xff]
    %v3244 = vld [vmem:[%s3120 + $0x3d8] sm:$0xff]
    %v3245 = vld [vmem:[%s3120 + $0x3e0] sm:$0xff]
    %v3246 = vld [vmem:[%s3120 + $0x3e8] sm:$0xff]
    %v3247 = vld [vmem:[%s3120 + $0x3f0] sm:$0xff]
    %v3248 = vld [vmem:[%s3120 + $0x3f8] sm:$0xff]
    %v3249 = vld [vmem:[%s3120 + $0x400] sm:$0xff]
    %v3250 = vld [vmem:[%s3120 + $0x408] sm:$0xff]
    %v3251 = vld [vmem:[%s3120 + $0x410] sm:$0xff]
    %v3252 = vld [vmem:[%s3120 + $0x418] sm:$0xff]
    %v3253 = vld [vmem:[%s3120 + $0x420] sm:$0xff]
    %v3254 = vld [vmem:[%s3120 + $0x428] sm:$0xff]
    %v3255 = vld [vmem:[%s3120 + $0x430] sm:$0xff]
    %v3256 = vld [vmem:[%s3120 + $0x438] sm:$0xff]
    %v3257 = vld [vmem:[%s3120 + $0x440] sm:$0xff]
    %v3258 = vld [vmem:[%s3120 + $0x448] sm:$0xff]
    %v3259 = vld [vmem:[%s3120 + $0x450] sm:$0xff]
    %v3260 = vld [vmem:[%s3120 + $0x458] sm:$0xff]
    %v3261 = vld [vmem:[%s3120 + $0x460] sm:$0xff]
    %v3262 = vld [vmem:[%s3120 + $0x468] sm:$0xff]
    %v3263 = vld [vmem:[%s3120 + $0x470] sm:$0xff]
    %v3264 = vld [vmem:[%s3120 + $0x478] sm:$0xff]
    %v3265 = vld [vmem:[%s3120 + $0x480] sm:$0xff]
    %v3266 = vld [vmem:[%s3120 + $0x488] sm:$0xff]
    %v3267 = vld [vmem:[%s3120 + $0x490] sm:$0xff]
    %v3268 = vld [vmem:[%s3120 + $0x498] sm:$0xff]
    %v3269 = vld [vmem:[%s3120 + $0x4a0] sm:$0xff]
    %v3270 = vld [vmem:[%s3120 + $0x4a8] sm:$0xff]
    %v3271 = vld [vmem:[%s3120 + $0x4b0] sm:$0xff]
    %v3272 = vld [vmem:[%s3120 + $0x4b8] sm:$0xff]
    %v3273 = vld [vmem:[%s3120 + $0x4c0] sm:$0xff]
    %v3274 = vld [vmem:[%s3120 + $0x4c8] sm:$0xff]
    %v3275 = vld [vmem:[%s3120 + $0x4d0] sm:$0xff]
    %v3276 = vld [vmem:[%s3120 + $0x4d8] sm:$0xff]
    %v3277 = vld [vmem:[%s3120 + $0x4e0] sm:$0xff]
    %v3278 = vld [vmem:[%s3120 + $0x4e8] sm:$0xff]
    %v3279 = vld [vmem:[%s3120 + $0x4f0] sm:$0xff]
    %v3280 = vld [vmem:[%s3120 + $0x4f8] sm:$0xff]
    %v3281 = vld [vmem:[%s3120 + $0x500] sm:$0xff]
    %v3282 = vld [vmem:[%s3120 + $0x508] sm:$0xff]
    %v3283 = vld [vmem:[%s3120 + $0x510] sm:$0xff]
    %v3284 = vld [vmem:[%s3120 + $0x518] sm:$0xff]
    %v3285 = vld [vmem:[%s3120 + $0x520] sm:$0xff]
    %v3286 = vld [vmem:[%s3120 + $0x528] sm:$0xff]
    %v3287 = vld [vmem:[%s3120 + $0x530] sm:$0xff]
    %v3288 = vld [vmem:[%s3120 + $0x538] sm:$0xff]
    %v3289 = vld [vmem:[%s3120 + $0x540] sm:$0xff]
    %v3290 = vld [vmem:[%s3120 + $0x548] sm:$0xff]
    %v3291 = vld [vmem:[%s3120 + $0x550] sm:$0xff]
    %v3292 = vld [vmem:[%s3120 + $0x558] sm:$0xff]
    %v3293 = vld [vmem:[%s3120 + $0x560] sm:$0xff]
    %v3294 = vld [vmem:[%s3120 + $0x568] sm:$0xff]
    %v3295 = vld [vmem:[%s3120 + $0x570] sm:$0xff]
    %v3296 = vld [vmem:[%s3120 + $0x578] sm:$0xff]
    %v3297 = vld [vmem:[%s3120 + $0x580] sm:$0xff]
    %v3298 = vld [vmem:[%s3120 + $0x588] sm:$0xff]
    %v3299 = vld [vmem:[%s3120 + $0x590] sm:$0xff]
    %v3300 = vld [vmem:[%s3120 + $0x598] sm:$0xff]
    %v3301 = vld [vmem:[%s3120 + $0x5a0] sm:$0xff]
    %v3302 = vld [vmem:[%s3120 + $0x5a8] sm:$0xff]
    %v3303 = vld [vmem:[%s3120 + $0x5b0] sm:$0xff]
    %v3304 = vld [vmem:[%s3120 + $0x5b8] sm:$0xff]
    %v3305 = vld [vmem:[%s3120 + $0x5c0] sm:$0xff]
    %v3306 = vld [vmem:[%s3120 + $0x5c8] sm:$0xff]
    %v3307 = vld [vmem:[%s3120 + $0x5d0] sm:$0xff]
    %v3308 = vld [vmem:[%s3120 + $0x5d8] sm:$0xff]
    %v3309 = vld [vmem:[%s3120 + $0x5e0] sm:$0xff]
    %v3310 = vld [vmem:[%s3120 + $0x5e8] sm:$0xff]
    %v3311 = vld [vmem:[%s3120 + $0x5f0] sm:$0xff]
    %v3312 = vld [vmem:[%s3120 + $0x5f8] sm:$0xff]
    %v3505 = vunpack.c.l.b16 %v3121
    %v3506 = vunpack.c.h.b16 %v3121
    %v3507 = vunpack.c.l.b16 %v3122
    %v3508 = vunpack.c.h.b16 %v3122
    %v3509 = vunpack.c.l.b16 %v3123
    %v3510 = vunpack.c.h.b16 %v3123
    %v3511 = vunpack.c.l.b16 %v3124
    %v3512 = vunpack.c.h.b16 %v3124
    %v3513 = vunpack.c.l.b16 %v3125
    %v3514 = vunpack.c.h.b16 %v3125
    %v3515 = vunpack.c.l.b16 %v3126
    %v3516 = vunpack.c.h.b16 %v3126
    %v3517 = vunpack.c.l.b16 %v3127
    %v3518 = vunpack.c.h.b16 %v3127
    %v3519 = vunpack.c.l.b16 %v3128
    %v3520 = vunpack.c.h.b16 %v3128
    %v3521 = vunpack.c.l.b16 %v3129
    %v3522 = vunpack.c.h.b16 %v3129
    %v3523 = vunpack.c.l.b16 %v3130
    %v3524 = vunpack.c.h.b16 %v3130
    %v3525 = vunpack.c.l.b16 %v3131
    %v3526 = vunpack.c.h.b16 %v3131
    %v3527 = vunpack.c.l.b16 %v3132
    %v3528 = vunpack.c.h.b16 %v3132
    %v3529 = vunpack.c.l.b16 %v3133
    %v3530 = vunpack.c.h.b16 %v3133
    %v3531 = vunpack.c.l.b16 %v3134
    %v3532 = vunpack.c.h.b16 %v3134
    %v3533 = vunpack.c.l.b16 %v3135
    %v3534 = vunpack.c.h.b16 %v3135
    %v3535 = vunpack.c.l.b16 %v3136
    %v3536 = vunpack.c.h.b16 %v3136
    %v3537 = vunpack.c.l.b16 %v3137
    %v3538 = vunpack.c.h.b16 %v3137
    %v3539 = vunpack.c.l.b16 %v3138
    %v3540 = vunpack.c.h.b16 %v3138
    %v3541 = vunpack.c.l.b16 %v3139
    %v3542 = vunpack.c.h.b16 %v3139
    %v3543 = vunpack.c.l.b16 %v3140
    %v3544 = vunpack.c.h.b16 %v3140
    %v3545 = vunpack.c.l.b16 %v3141
    %v3546 = vunpack.c.h.b16 %v3141
    %v3547 = vunpack.c.l.b16 %v3142
    %v3548 = vunpack.c.h.b16 %v3142
    %v3549 = vunpack.c.l.b16 %v3143
    %v3550 = vunpack.c.h.b16 %v3143
    %v3551 = vunpack.c.l.b16 %v3144
    %v3552 = vunpack.c.h.b16 %v3144
    %v3553 = vunpack.c.l.b16 %v3145
    %v3554 = vunpack.c.h.b16 %v3145
    %v3555 = vunpack.c.l.b16 %v3146
    %v3556 = vunpack.c.h.b16 %v3146
    %v3557 = vunpack.c.l.b16 %v3147
    %v3558 = vunpack.c.h.b16 %v3147
    %v3559 = vunpack.c.l.b16 %v3148
    %v3560 = vunpack.c.h.b16 %v3148
    %v3561 = vunpack.c.l.b16 %v3149
    %v3562 = vunpack.c.h.b16 %v3149
    %v3563 = vunpack.c.l.b16 %v3150
    %v3564 = vunpack.c.h.b16 %v3150
    %v3565 = vunpack.c.l.b16 %v3151
    %v3566 = vunpack.c.h.b16 %v3151
    %v3567 = vunpack.c.l.b16 %v3152
    %v3568 = vunpack.c.h.b16 %v3152
    %v3569 = vunpack.c.l.b16 %v3153
    %v3570 = vunpack.c.h.b16 %v3153
    %v3571 = vunpack.c.l.b16 %v3154
    %v3572 = vunpack.c.h.b16 %v3154
    %v3573 = vunpack.c.l.b16 %v3155
    %v3574 = vunpack.c.h.b16 %v3155
    %v3575 = vunpack.c.l.b16 %v3156
    %v3576 = vunpack.c.h.b16 %v3156
    %v3577 = vunpack.c.l.b16 %v3157
    %v3578 = vunpack.c.h.b16 %v3157
    %v3579 = vunpack.c.l.b16 %v3158
    %v3580 = vunpack.c.h.b16 %v3158
    %v3581 = vunpack.c.l.b16 %v3159
    %v3582 = vunpack.c.h.b16 %v3159
    %v3583 = vunpack.c.l.b16 %v3160
    %v3584 = vunpack.c.h.b16 %v3160
    %v3585 = vunpack.c.l.b16 %v3161
    %v3586 = vunpack.c.h.b16 %v3161
    %v3587 = vunpack.c.l.b16 %v3162
    %v3588 = vunpack.c.h.b16 %v3162
    %v3589 = vunpack.c.l.b16 %v3163
    %v3590 = vunpack.c.h.b16 %v3163
    %v3591 = vunpack.c.l.b16 %v3164
    %v3592 = vunpack.c.h.b16 %v3164
    %v3593 = vunpack.c.l.b16 %v3165
    %v3594 = vunpack.c.h.b16 %v3165
    %v3595 = vunpack.c.l.b16 %v3166
    %v3596 = vunpack.c.h.b16 %v3166
    %v3597 = vunpack.c.l.b16 %v3167
    %v3598 = vunpack.c.h.b16 %v3167
    %v3599 = vunpack.c.l.b16 %v3168
    %v3600 = vunpack.c.h.b16 %v3168
    %v3601 = vunpack.c.l.b16 %v3169
    %v3602 = vunpack.c.h.b16 %v3169
    %v3603 = vunpack.c.l.b16 %v3170
    %v3604 = vunpack.c.h.b16 %v3170
    %v3605 = vunpack.c.l.b16 %v3171
    %v3606 = vunpack.c.h.b16 %v3171
    %v3607 = vunpack.c.l.b16 %v3172
    %v3608 = vunpack.c.h.b16 %v3172
    %v3609 = vunpack.c.l.b16 %v3173
    %v3610 = vunpack.c.h.b16 %v3173
    %v3611 = vunpack.c.l.b16 %v3174
    %v3612 = vunpack.c.h.b16 %v3174
    %v3613 = vunpack.c.l.b16 %v3175
    %v3614 = vunpack.c.h.b16 %v3175
    %v3615 = vunpack.c.l.b16 %v3176
    %v3616 = vunpack.c.h.b16 %v3176
    %v3617 = vunpack.c.l.b16 %v3177
    %v3618 = vunpack.c.h.b16 %v3177
    %v3619 = vunpack.c.l.b16 %v3178
    %v3620 = vunpack.c.h.b16 %v3178
    %v3621 = vunpack.c.l.b16 %v3179
    %v3622 = vunpack.c.h.b16 %v3179
    %v3623 = vunpack.c.l.b16 %v3180
    %v3624 = vunpack.c.h.b16 %v3180
    %v3625 = vunpack.c.l.b16 %v3181
    %v3626 = vunpack.c.h.b16 %v3181
    %v3627 = vunpack.c.l.b16 %v3182
    %v3628 = vunpack.c.h.b16 %v3182
    %v3629 = vunpack.c.l.b16 %v3183
    %v3630 = vunpack.c.h.b16 %v3183
    %v3631 = vunpack.c.l.b16 %v3184
    %v3632 = vunpack.c.h.b16 %v3184
    %v3633 = vunpack.c.l.b16 %v3185
    %v3634 = vunpack.c.h.b16 %v3185
    %v3635 = vunpack.c.l.b16 %v3186
    %v3636 = vunpack.c.h.b16 %v3186
    %v3637 = vunpack.c.l.b16 %v3187
    %v3638 = vunpack.c.h.b16 %v3187
    %v3639 = vunpack.c.l.b16 %v3188
    %v3640 = vunpack.c.h.b16 %v3188
    %v3641 = vunpack.c.l.b16 %v3189
    %v3642 = vunpack.c.h.b16 %v3189
    %v3643 = vunpack.c.l.b16 %v3190
    %v3644 = vunpack.c.h.b16 %v3190
    %v3645 = vunpack.c.l.b16 %v3191
    %v3646 = vunpack.c.h.b16 %v3191
    %v3647 = vunpack.c.l.b16 %v3192
    %v3648 = vunpack.c.h.b16 %v3192
    %v3649 = vunpack.c.l.b16 %v3193
    %v3650 = vunpack.c.h.b16 %v3193
    %v3651 = vunpack.c.l.b16 %v3194
    %v3652 = vunpack.c.h.b16 %v3194
    %v3653 = vunpack.c.l.b16 %v3195
    %v3654 = vunpack.c.h.b16 %v3195
    %v3655 = vunpack.c.l.b16 %v3196
    %v3656 = vunpack.c.h.b16 %v3196
    %v3657 = vunpack.c.l.b16 %v3197
    %v3658 = vunpack.c.h.b16 %v3197
    %v3659 = vunpack.c.l.b16 %v3198
    %v3660 = vunpack.c.h.b16 %v3198
    %v3661 = vunpack.c.l.b16 %v3199
    %v3662 = vunpack.c.h.b16 %v3199
    %v3663 = vunpack.c.l.b16 %v3200
    %v3664 = vunpack.c.h.b16 %v3200
    %v3665 = vunpack.c.l.b16 %v3201
    %v3666 = vunpack.c.h.b16 %v3201
    %v3667 = vunpack.c.l.b16 %v3202
    %v3668 = vunpack.c.h.b16 %v3202
    %v3669 = vunpack.c.l.b16 %v3203
    %v3670 = vunpack.c.h.b16 %v3203
    %v3671 = vunpack.c.l.b16 %v3204
    %v3672 = vunpack.c.h.b16 %v3204
    %v3673 = vunpack.c.l.b16 %v3205
    %v3674 = vunpack.c.h.b16 %v3205
    %v3675 = vunpack.c.l.b16 %v3206
    %v3676 = vunpack.c.h.b16 %v3206
    %v3677 = vunpack.c.l.b16 %v3207
    %v3678 = vunpack.c.h.b16 %v3207
    %v3679 = vunpack.c.l.b16 %v3208
    %v3680 = vunpack.c.h.b16 %v3208
    %v3681 = vunpack.c.l.b16 %v3209
    %v3682 = vunpack.c.h.b16 %v3209
    %v3683 = vunpack.c.l.b16 %v3210
    %v3684 = vunpack.c.h.b16 %v3210
    %v3685 = vunpack.c.l.b16 %v3211
    %v3686 = vunpack.c.h.b16 %v3211
    %v3687 = vunpack.c.l.b16 %v3212
    %v3688 = vunpack.c.h.b16 %v3212
    %v3689 = vunpack.c.l.b16 %v3213
    %v3690 = vunpack.c.h.b16 %v3213
    %v3691 = vunpack.c.l.b16 %v3214
    %v3692 = vunpack.c.h.b16 %v3214
    %v3693 = vunpack.c.l.b16 %v3215
    %v3694 = vunpack.c.h.b16 %v3215
    %v3695 = vunpack.c.l.b16 %v3216
    %v3696 = vunpack.c.h.b16 %v3216
    %v3697 = vunpack.c.l.b16 %v3217
    %v3698 = vunpack.c.h.b16 %v3217
    %v3699 = vunpack.c.l.b16 %v3218
    %v3700 = vunpack.c.h.b16 %v3218
    %v3701 = vunpack.c.l.b16 %v3219
    %v3702 = vunpack.c.h.b16 %v3219
    %v3703 = vunpack.c.l.b16 %v3220
    %v3704 = vunpack.c.h.b16 %v3220
    %v3705 = vunpack.c.l.b16 %v3221
    %v3706 = vunpack.c.h.b16 %v3221
    %v3707 = vunpack.c.l.b16 %v3222
    %v3708 = vunpack.c.h.b16 %v3222
    %v3709 = vunpack.c.l.b16 %v3223
    %v3710 = vunpack.c.h.b16 %v3223
    %v3711 = vunpack.c.l.b16 %v3224
    %v3712 = vunpack.c.h.b16 %v3224
    %v3713 = vunpack.c.l.b16 %v3225
    %v3714 = vunpack.c.h.b16 %v3225
    %v3715 = vunpack.c.l.b16 %v3226
    %v3716 = vunpack.c.h.b16 %v3226
    %v3717 = vunpack.c.l.b16 %v3227
    %v3718 = vunpack.c.h.b16 %v3227
    %v3719 = vunpack.c.l.b16 %v3228
    %v3720 = vunpack.c.h.b16 %v3228
    %v3721 = vunpack.c.l.b16 %v3229
    %v3722 = vunpack.c.h.b16 %v3229
    %v3723 = vunpack.c.l.b16 %v3230
    %v3724 = vunpack.c.h.b16 %v3230
    %v3725 = vunpack.c.l.b16 %v3231
    %v3726 = vunpack.c.h.b16 %v3231
    %v3727 = vunpack.c.l.b16 %v3232
    %v3728 = vunpack.c.h.b16 %v3232
    %v3729 = vunpack.c.l.b16 %v3233
    %v3730 = vunpack.c.h.b16 %v3233
    %v3731 = vunpack.c.l.b16 %v3234
    %v3732 = vunpack.c.h.b16 %v3234
    %v3733 = vunpack.c.l.b16 %v3235
    %v3734 = vunpack.c.h.b16 %v3235
    %v3735 = vunpack.c.l.b16 %v3236
    %v3736 = vunpack.c.h.b16 %v3236
    %v3737 = vunpack.c.l.b16 %v3237
    %v3738 = vunpack.c.h.b16 %v3237
    %v3739 = vunpack.c.l.b16 %v3238
    %v3740 = vunpack.c.h.b16 %v3238
    %v3741 = vunpack.c.l.b16 %v3239
    %v3742 = vunpack.c.h.b16 %v3239
    %v3743 = vunpack.c.l.b16 %v3240
    %v3744 = vunpack.c.h.b16 %v3240
    %v3745 = vunpack.c.l.b16 %v3241
    %v3746 = vunpack.c.h.b16 %v3241
    %v3747 = vunpack.c.l.b16 %v3242
    %v3748 = vunpack.c.h.b16 %v3242
    %v3749 = vunpack.c.l.b16 %v3243
    %v3750 = vunpack.c.h.b16 %v3243
    %v3751 = vunpack.c.l.b16 %v3244
    %v3752 = vunpack.c.h.b16 %v3244
    %v3753 = vunpack.c.l.b16 %v3245
    %v3754 = vunpack.c.h.b16 %v3245
    %v3755 = vunpack.c.l.b16 %v3246
    %v3756 = vunpack.c.h.b16 %v3246
    %v3757 = vunpack.c.l.b16 %v3247
    %v3758 = vunpack.c.h.b16 %v3247
    %v3759 = vunpack.c.l.b16 %v3248
    %v3760 = vunpack.c.h.b16 %v3248
    %v3761 = vunpack.c.l.b16 %v3249
    %v3762 = vunpack.c.h.b16 %v3249
    %v3763 = vunpack.c.l.b16 %v3250
    %v3764 = vunpack.c.h.b16 %v3250
    %v3765 = vunpack.c.l.b16 %v3251
    %v3766 = vunpack.c.h.b16 %v3251
    %v3767 = vunpack.c.l.b16 %v3252
    %v3768 = vunpack.c.h.b16 %v3252
    %v3769 = vunpack.c.l.b16 %v3253
    %v3770 = vunpack.c.h.b16 %v3253
    %v3771 = vunpack.c.l.b16 %v3254
    %v3772 = vunpack.c.h.b16 %v3254
    %v3773 = vunpack.c.l.b16 %v3255
    %v3774 = vunpack.c.h.b16 %v3255
    %v3775 = vunpack.c.l.b16 %v3256
    %v3776 = vunpack.c.h.b16 %v3256
    %v3777 = vunpack.c.l.b16 %v3257
    %v3778 = vunpack.c.h.b16 %v3257
    %v3779 = vunpack.c.l.b16 %v3258
    %v3780 = vunpack.c.h.b16 %v3258
    %v3781 = vunpack.c.l.b16 %v3259
    %v3782 = vunpack.c.h.b16 %v3259
    %v3783 = vunpack.c.l.b16 %v3260
    %v3784 = vunpack.c.h.b16 %v3260
    %v3785 = vunpack.c.l.b16 %v3261
    %v3786 = vunpack.c.h.b16 %v3261
    %v3787 = vunpack.c.l.b16 %v3262
    %v3788 = vunpack.c.h.b16 %v3262
    %v3789 = vunpack.c.l.b16 %v3263
    %v3790 = vunpack.c.h.b16 %v3263
    %v3791 = vunpack.c.l.b16 %v3264
    %v3792 = vunpack.c.h.b16 %v3264
    %v3793 = vunpack.c.l.b16 %v3265
    %v3794 = vunpack.c.h.b16 %v3265
    %v3795 = vunpack.c.l.b16 %v3266
    %v3796 = vunpack.c.h.b16 %v3266
    %v3797 = vunpack.c.l.b16 %v3267
    %v3798 = vunpack.c.h.b16 %v3267
    %v3799 = vunpack.c.l.b16 %v3268
    %v3800 = vunpack.c.h.b16 %v3268
    %v3801 = vunpack.c.l.b16 %v3269
    %v3802 = vunpack.c.h.b16 %v3269
    %v3803 = vunpack.c.l.b16 %v3270
    %v3804 = vunpack.c.h.b16 %v3270
    %v3805 = vunpack.c.l.b16 %v3271
    %v3806 = vunpack.c.h.b16 %v3271
    %v3807 = vunpack.c.l.b16 %v3272
    %v3808 = vunpack.c.h.b16 %v3272
    %v3809 = vunpack.c.l.b16 %v3273
    %v3810 = vunpack.c.h.b16 %v3273
    %v3811 = vunpack.c.l.b16 %v3274
    %v3812 = vunpack.c.h.b16 %v3274
    %v3813 = vunpack.c.l.b16 %v3275
    %v3814 = vunpack.c.h.b16 %v3275
    %v3815 = vunpack.c.l.b16 %v3276
    %v3816 = vunpack.c.h.b16 %v3276
    %v3817 = vunpack.c.l.b16 %v3277
    %v3818 = vunpack.c.h.b16 %v3277
    %v3819 = vunpack.c.l.b16 %v3278
    %v3820 = vunpack.c.h.b16 %v3278
    %v3821 = vunpack.c.l.b16 %v3279
    %v3822 = vunpack.c.h.b16 %v3279
    %v3823 = vunpack.c.l.b16 %v3280
    %v3824 = vunpack.c.h.b16 %v3280
    %v3825 = vunpack.c.l.b16 %v3281
    %v3826 = vunpack.c.h.b16 %v3281
    %v3827 = vunpack.c.l.b16 %v3282
    %v3828 = vunpack.c.h.b16 %v3282
    %v3829 = vunpack.c.l.b16 %v3283
    %v3830 = vunpack.c.h.b16 %v3283
    %v3831 = vunpack.c.l.b16 %v3284
    %v3832 = vunpack.c.h.b16 %v3284
    %v3833 = vunpack.c.l.b16 %v3285
    %v3834 = vunpack.c.h.b16 %v3285
    %v3835 = vunpack.c.l.b16 %v3286
    %v3836 = vunpack.c.h.b16 %v3286
    %v3837 = vunpack.c.l.b16 %v3287
    %v3838 = vunpack.c.h.b16 %v3287
    %v3839 = vunpack.c.l.b16 %v3288
    %v3840 = vunpack.c.h.b16 %v3288
    %v3841 = vunpack.c.l.b16 %v3289
    %v3842 = vunpack.c.h.b16 %v3289
    %v3843 = vunpack.c.l.b16 %v3290
    %v3844 = vunpack.c.h.b16 %v3290
    %v3845 = vunpack.c.l.b16 %v3291
    %v3846 = vunpack.c.h.b16 %v3291
    %v3847 = vunpack.c.l.b16 %v3292
    %v3848 = vunpack.c.h.b16 %v3292
    %v3849 = vunpack.c.l.b16 %v3293
    %v3850 = vunpack.c.h.b16 %v3293
    %v3851 = vunpack.c.l.b16 %v3294
    %v3852 = vunpack.c.h.b16 %v3294
    %v3853 = vunpack.c.l.b16 %v3295
    %v3854 = vunpack.c.h.b16 %v3295
    %v3855 = vunpack.c.l.b16 %v3296
    %v3856 = vunpack.c.h.b16 %v3296
    %v3857 = vunpack.c.l.b16 %v3297
    %v3858 = vunpack.c.h.b16 %v3297
    %v3859 = vunpack.c.l.b16 %v3298
    %v3860 = vunpack.c.h.b16 %v3298
    %v3861 = vunpack.c.l.b16 %v3299
    %v3862 = vunpack.c.h.b16 %v3299
    %v3863 = vunpack.c.l.b16 %v3300
    %v3864 = vunpack.c.h.b16 %v3300
    %v3865 = vunpack.c.l.b16 %v3301
    %v3866 = vunpack.c.h.b16 %v3301
    %v3867 = vunpack.c.l.b16 %v3302
    %v3868 = vunpack.c.h.b16 %v3302
    %v3869 = vunpack.c.l.b16 %v3303
    %v3870 = vunpack.c.h.b16 %v3303
    %v3871 = vunpack.c.l.b16 %v3304
    %v3872 = vunpack.c.h.b16 %v3304
    %v3873 = vunpack.c.l.b16 %v3305
    %v3874 = vunpack.c.h.b16 %v3305
    %v3875 = vunpack.c.l.b16 %v3306
    %v3876 = vunpack.c.h.b16 %v3306
    %v3877 = vunpack.c.l.b16 %v3307
    %v3878 = vunpack.c.h.b16 %v3307
    %v3879 = vunpack.c.l.b16 %v3308
    %v3880 = vunpack.c.h.b16 %v3308
    %v3881 = vunpack.c.l.b16 %v3309
    %v3882 = vunpack.c.h.b16 %v3309
    %v3883 = vunpack.c.l.b16 %v3310
    %v3884 = vunpack.c.h.b16 %v3310
    %v3885 = vunpack.c.l.b16 %v3311
    %v3886 = vunpack.c.h.b16 %v3311
    %v3887 = vunpack.c.l.b16 %v3312
    %v3888 = vunpack.c.h.b16 %v3312
    %v3889 = vpack.c.b16 %v3511, %v3505
    %v3890 = vpack.c.b16 %v3512, %v3506
    %v3891 = vpack.c.b16 %v3513, %v3507
    %v3892 = vpack.c.b16 %v3514, %v3508
    %v3893 = vpack.c.b16 %v3515, %v3509
    %v3894 = vpack.c.b16 %v3516, %v3510
    %v3895 = vpack.c.b16 %v3523, %v3517
    %v3896 = vpack.c.b16 %v3524, %v3518
    %v3897 = vpack.c.b16 %v3525, %v3519
    %v3898 = vpack.c.b16 %v3526, %v3520
    %v3899 = vpack.c.b16 %v3527, %v3521
    %v3900 = vpack.c.b16 %v3528, %v3522
    %v3901 = vpack.c.b16 %v3535, %v3529
    %v3902 = vpack.c.b16 %v3536, %v3530
    %v3903 = vpack.c.b16 %v3537, %v3531
    %v3904 = vpack.c.b16 %v3538, %v3532
    %v3905 = vpack.c.b16 %v3539, %v3533
    %v3906 = vpack.c.b16 %v3540, %v3534
    %v3907 = vpack.c.b16 %v3547, %v3541
    %v3908 = vpack.c.b16 %v3548, %v3542
    %v3909 = vpack.c.b16 %v3549, %v3543
    %v3910 = vpack.c.b16 %v3550, %v3544
    %v3911 = vpack.c.b16 %v3551, %v3545
    %v3912 = vpack.c.b16 %v3552, %v3546
    %v3913 = vpack.c.b16 %v3559, %v3553
    %v3914 = vpack.c.b16 %v3560, %v3554
    %v3915 = vpack.c.b16 %v3561, %v3555
    %v3916 = vpack.c.b16 %v3562, %v3556
    %v3917 = vpack.c.b16 %v3563, %v3557
    %v3918 = vpack.c.b16 %v3564, %v3558
    %v3919 = vpack.c.b16 %v3571, %v3565
    %v3920 = vpack.c.b16 %v3572, %v3566
    %v3921 = vpack.c.b16 %v3573, %v3567
    %v3922 = vpack.c.b16 %v3574, %v3568
    %v3923 = vpack.c.b16 %v3575, %v3569
    %v3924 = vpack.c.b16 %v3576, %v3570
    %v3925 = vpack.c.b16 %v3583, %v3577
    %v3926 = vpack.c.b16 %v3584, %v3578
    %v3927 = vpack.c.b16 %v3585, %v3579
    %v3928 = vpack.c.b16 %v3586, %v3580
    %v3929 = vpack.c.b16 %v3587, %v3581
    %v3930 = vpack.c.b16 %v3588, %v3582
    %v3931 = vpack.c.b16 %v3595, %v3589
    %v3932 = vpack.c.b16 %v3596, %v3590
    %v3933 = vpack.c.b16 %v3597, %v3591
    %v3934 = vpack.c.b16 %v3598, %v3592
    %v3935 = vpack.c.b16 %v3599, %v3593
    %v3936 = vpack.c.b16 %v3600, %v3594
    %v3937 = vpack.c.b16 %v3607, %v3601
    %v3938 = vpack.c.b16 %v3608, %v3602
    %v3939 = vpack.c.b16 %v3609, %v3603
    %v3940 = vpack.c.b16 %v3610, %v3604
    %v3941 = vpack.c.b16 %v3611, %v3605
    %v3942 = vpack.c.b16 %v3612, %v3606
    %v3943 = vpack.c.b16 %v3619, %v3613
    %v3944 = vpack.c.b16 %v3620, %v3614
    %v3945 = vpack.c.b16 %v3621, %v3615
    %v3946 = vpack.c.b16 %v3622, %v3616
    %v3947 = vpack.c.b16 %v3623, %v3617
    %v3948 = vpack.c.b16 %v3624, %v3618
    %v3949 = vpack.c.b16 %v3631, %v3625
    %v3950 = vpack.c.b16 %v3632, %v3626
    %v3951 = vpack.c.b16 %v3633, %v3627
    %v3952 = vpack.c.b16 %v3634, %v3628
    %v3953 = vpack.c.b16 %v3635, %v3629
    %v3954 = vpack.c.b16 %v3636, %v3630
    %v3955 = vpack.c.b16 %v3643, %v3637
    %v3956 = vpack.c.b16 %v3644, %v3638
    %v3957 = vpack.c.b16 %v3645, %v3639
    %v3958 = vpack.c.b16 %v3646, %v3640
    %v3959 = vpack.c.b16 %v3647, %v3641
    %v3960 = vpack.c.b16 %v3648, %v3642
    %v3961 = vpack.c.b16 %v3655, %v3649
    %v3962 = vpack.c.b16 %v3656, %v3650
    %v3963 = vpack.c.b16 %v3657, %v3651
    %v3964 = vpack.c.b16 %v3658, %v3652
    %v3965 = vpack.c.b16 %v3659, %v3653
    %v3966 = vpack.c.b16 %v3660, %v3654
    %v3967 = vpack.c.b16 %v3667, %v3661
    %v3968 = vpack.c.b16 %v3668, %v3662
    %v3969 = vpack.c.b16 %v3669, %v3663
    %v3970 = vpack.c.b16 %v3670, %v3664
    %v3971 = vpack.c.b16 %v3671, %v3665
    %v3972 = vpack.c.b16 %v3672, %v3666
    %v3973 = vpack.c.b16 %v3679, %v3673
    %v3974 = vpack.c.b16 %v3680, %v3674
    %v3975 = vpack.c.b16 %v3681, %v3675
    %v3976 = vpack.c.b16 %v3682, %v3676
    %v3977 = vpack.c.b16 %v3683, %v3677
    %v3978 = vpack.c.b16 %v3684, %v3678
    %v3979 = vpack.c.b16 %v3691, %v3685
    %v3980 = vpack.c.b16 %v3692, %v3686
    %v3981 = vpack.c.b16 %v3693, %v3687
    %v3982 = vpack.c.b16 %v3694, %v3688
    %v3983 = vpack.c.b16 %v3695, %v3689
    %v3984 = vpack.c.b16 %v3696, %v3690
    %v3985 = vpack.c.b16 %v3703, %v3697
    %v3986 = vpack.c.b16 %v3704, %v3698
    %v3987 = vpack.c.b16 %v3705, %v3699
    %v3988 = vpack.c.b16 %v3706, %v3700
    %v3989 = vpack.c.b16 %v3707, %v3701
    %v3990 = vpack.c.b16 %v3708, %v3702
    %v3991 = vpack.c.b16 %v3715, %v3709
    %v3992 = vpack.c.b16 %v3716, %v3710
    %v3993 = vpack.c.b16 %v3717, %v3711
    %v3994 = vpack.c.b16 %v3718, %v3712
    %v3995 = vpack.c.b16 %v3719, %v3713
    %v3996 = vpack.c.b16 %v3720, %v3714
    %v3997 = vpack.c.b16 %v3727, %v3721
    %v3998 = vpack.c.b16 %v3728, %v3722
    %v3999 = vpack.c.b16 %v3729, %v3723
    %v4000 = vpack.c.b16 %v3730, %v3724
    %v4001 = vpack.c.b16 %v3731, %v3725
    %v4002 = vpack.c.b16 %v3732, %v3726
    %v4003 = vpack.c.b16 %v3739, %v3733
    %v4004 = vpack.c.b16 %v3740, %v3734
    %v4005 = vpack.c.b16 %v3741, %v3735
    %v4006 = vpack.c.b16 %v3742, %v3736
    %v4007 = vpack.c.b16 %v3743, %v3737
    %v4008 = vpack.c.b16 %v3744, %v3738
    %v4009 = vpack.c.b16 %v3751, %v3745
    %v4010 = vpack.c.b16 %v3752, %v3746
    %v4011 = vpack.c.b16 %v3753, %v3747
    %v4012 = vpack.c.b16 %v3754, %v3748
    %v4013 = vpack.c.b16 %v3755, %v3749
    %v4014 = vpack.c.b16 %v3756, %v3750
    %v4015 = vpack.c.b16 %v3763, %v3757
    %v4016 = vpack.c.b16 %v3764, %v3758
    %v4017 = vpack.c.b16 %v3765, %v3759
    %v4018 = vpack.c.b16 %v3766, %v3760
    %v4019 = vpack.c.b16 %v3767, %v3761
    %v4020 = vpack.c.b16 %v3768, %v3762
    %v4021 = vpack.c.b16 %v3775, %v3769
    %v4022 = vpack.c.b16 %v3776, %v3770
    %v4023 = vpack.c.b16 %v3777, %v3771
    %v4024 = vpack.c.b16 %v3778, %v3772
    %v4025 = vpack.c.b16 %v3779, %v3773
    %v4026 = vpack.c.b16 %v3780, %v3774
    %v4027 = vpack.c.b16 %v3787, %v3781
    %v4028 = vpack.c.b16 %v3788, %v3782
    %v4029 = vpack.c.b16 %v3789, %v3783
    %v4030 = vpack.c.b16 %v3790, %v3784
    %v4031 = vpack.c.b16 %v3791, %v3785
    %v4032 = vpack.c.b16 %v3792, %v3786
    %v4033 = vpack.c.b16 %v3799, %v3793
    %v4034 = vpack.c.b16 %v3800, %v3794
    %v4035 = vpack.c.b16 %v3801, %v3795
    %v4036 = vpack.c.b16 %v3802, %v3796
    %v4037 = vpack.c.b16 %v3803, %v3797
    %v4038 = vpack.c.b16 %v3804, %v3798
    %v4039 = vpack.c.b16 %v3811, %v3805
    %v4040 = vpack.c.b16 %v3812, %v3806
    %v4041 = vpack.c.b16 %v3813, %v3807
    %v4042 = vpack.c.b16 %v3814, %v3808
    %v4043 = vpack.c.b16 %v3815, %v3809
    %v4044 = vpack.c.b16 %v3816, %v3810
    %v4045 = vpack.c.b16 %v3823, %v3817
    %v4046 = vpack.c.b16 %v3824, %v3818
    %v4047 = vpack.c.b16 %v3825, %v3819
    %v4048 = vpack.c.b16 %v3826, %v3820
    %v4049 = vpack.c.b16 %v3827, %v3821
    %v4050 = vpack.c.b16 %v3828, %v3822
    %v4051 = vpack.c.b16 %v3835, %v3829
    %v4052 = vpack.c.b16 %v3836, %v3830
    %v4053 = vpack.c.b16 %v3837, %v3831
    %v4054 = vpack.c.b16 %v3838, %v3832
    %v4055 = vpack.c.b16 %v3839, %v3833
    %v4056 = vpack.c.b16 %v3840, %v3834
    %v4057 = vpack.c.b16 %v3847, %v3841
    %v4058 = vpack.c.b16 %v3848, %v3842
    %v4059 = vpack.c.b16 %v3849, %v3843
    %v4060 = vpack.c.b16 %v3850, %v3844
    %v4061 = vpack.c.b16 %v3851, %v3845
    %v4062 = vpack.c.b16 %v3852, %v3846
    %v4063 = vpack.c.b16 %v3859, %v3853
    %v4064 = vpack.c.b16 %v3860, %v3854
    %v4065 = vpack.c.b16 %v3861, %v3855
    %v4066 = vpack.c.b16 %v3862, %v3856
    %v4067 = vpack.c.b16 %v3863, %v3857
    %v4068 = vpack.c.b16 %v3864, %v3858
    %v4069 = vpack.c.b16 %v3871, %v3865
    %v4070 = vpack.c.b16 %v3872, %v3866
    %v4071 = vpack.c.b16 %v3873, %v3867
    %v4072 = vpack.c.b16 %v3874, %v3868
    %v4073 = vpack.c.b16 %v3875, %v3869
    %v4074 = vpack.c.b16 %v3876, %v3870
    %v4075 = vpack.c.b16 %v3883, %v3877
    %v4076 = vpack.c.b16 %v3884, %v3878
    %v4077 = vpack.c.b16 %v3885, %v3879
    %v4078 = vpack.c.b16 %v3886, %v3880
    %v4079 = vpack.c.b16 %v3887, %v3881
    %v4080 = vpack.c.b16 %v3888, %v3882
    %4273 = vmatpush.bf16.msra.mxu0 %v3931
    %4274 = vmatpush.bf16.msra.mxu0 %v3925
    %4275 = vmatpush.bf16.msra.mxu0 %v3919
    %4276 = vmatpush.bf16.msra.mxu0 %v3913
    %4277 = vmatpush.bf16.msra.mxu0 %v3907
    %4278 = vmatpush.bf16.msra.mxu0 %v3901
    %4279 = vmatpush.bf16.msra.mxu0 %v3895
    %4280 = vmatpush.bf16.msra.mxu0 %v3889
    %4281 = vmatmul.bf16.gmra.mxu0 %v254
    %v4282 = vpop.f32.mrf.mxu0
    %v4283 = vadd.f32 0.0, %v4282
    %v4284 = vpop.f32.mrf.mxu0
    %v4285 = vadd.f32 0.0, %v4284
    %4286 = vdwg.mxu0
    %4287 = vmatpush.bf16.msra.mxu0 %v3979
    %4288 = vmatpush.bf16.msra.mxu0 %v3973
    %4289 = vmatpush.bf16.msra.mxu0 %v3967
    %4290 = vmatpush.bf16.msra.mxu0 %v3961
    %4291 = vmatpush.bf16.msra.mxu0 %v3955
    %4292 = vmatpush.bf16.msra.mxu0 %v3949
    %4293 = vmatpush.bf16.msra.mxu0 %v3943
    %4294 = vmatpush.bf16.msra.mxu0 %v3937
    %4295 = vmatmul.bf16.gmra.mxu0 %v255
    %v4296 = vpop.f32.mrf.mxu0
    %v4297 = vadd.f32 %v4283, %v4296
    %v4298 = vpop.f32.mrf.mxu0
    %v4299 = vadd.f32 %v4285, %v4298
    %4300 = vdwg.mxu0
    %4301 = vmatpush.bf16.msra.mxu0 %v4027
    %4302 = vmatpush.bf16.msra.mxu0 %v4021
    %4303 = vmatpush.bf16.msra.mxu0 %v4015
    %4304 = vmatpush.bf16.msra.mxu0 %v4009
    %4305 = vmatpush.bf16.msra.mxu0 %v4003
    %4306 = vmatpush.bf16.msra.mxu0 %v3997
    %4307 = vmatpush.bf16.msra.mxu0 %v3991
    %4308 = vmatpush.bf16.msra.mxu0 %v3985
    %4309 = vmatmul.bf16.gmra.mxu0 %v256
    %v4310 = vpop.f32.mrf.mxu0
    %v4311 = vadd.f32 %v4297, %v4310
    %v4312 = vpop.f32.mrf.mxu0
    %v4313 = vadd.f32 %v4299, %v4312
    %4314 = vdwg.mxu0
    %4315 = vmatpush.bf16.msra.mxu0 %v4075
    %4316 = vmatpush.bf16.msra.mxu0 %v4069
    %4317 = vmatpush.bf16.msra.mxu0 %v4063
    %4318 = vmatpush.bf16.msra.mxu0 %v4057
    %4319 = vmatpush.bf16.msra.mxu0 %v4051
    %4320 = vmatpush.bf16.msra.mxu0 %v4045
    %4321 = vmatpush.bf16.msra.mxu0 %v4039
    %4322 = vmatpush.bf16.msra.mxu0 %v4033
    %4323 = vmatmul.bf16.gmra.mxu0 %v257
    %v4324 = vpop.f32.mrf.mxu0
    %v4325 = vadd.f32 %v4311, %v4324
    %v4326 = vpop.f32.mrf.mxu0
    %v4327 = vadd.f32 %v4313, %v4326
    %4328 = vdwg.mxu0
    %4329 = vmatpush.bf16.msra.mxu0 %v3932
    %4330 = vmatpush.bf16.msra.mxu0 %v3926
    %4331 = vmatpush.bf16.msra.mxu0 %v3920
    %4332 = vmatpush.bf16.msra.mxu0 %v3914
    %4333 = vmatpush.bf16.msra.mxu0 %v3908
    %4334 = vmatpush.bf16.msra.mxu0 %v3902
    %4335 = vmatpush.bf16.msra.mxu0 %v3896
    %4336 = vmatpush.bf16.msra.mxu0 %v3890
    %4337 = vmatmul.bf16.gmra.mxu0 %v254
    %v4338 = vpop.f32.mrf.mxu0
    %v4339 = vadd.f32 0.0, %v4338
    %v4340 = vpop.f32.mrf.mxu0
    %v4341 = vadd.f32 0.0, %v4340
    %4342 = vdwg.mxu0
    %4343 = vmatpush.bf16.msra.mxu0 %v3980
    %4344 = vmatpush.bf16.msra.mxu0 %v3974
    %4345 = vmatpush.bf16.msra.mxu0 %v3968
    %4346 = vmatpush.bf16.msra.mxu0 %v3962
    %4347 = vmatpush.bf16.msra.mxu0 %v3956
    %4348 = vmatpush.bf16.msra.mxu0 %v3950
    %4349 = vmatpush.bf16.msra.mxu0 %v3944
    %4350 = vmatpush.bf16.msra.mxu0 %v3938
    %4351 = vmatmul.bf16.gmra.mxu0 %v255
    %v4352 = vpop.f32.mrf.mxu0
    %v4353 = vadd.f32 %v4339, %v4352
    %v4354 = vpop.f32.mrf.mxu0
    %v4355 = vadd.f32 %v4341, %v4354
    %4356 = vdwg.mxu0
    %4357 = vmatpush.bf16.msra.mxu0 %v4028
    %4358 = vmatpush.bf16.msra.mxu0 %v4022
    %4359 = vmatpush.bf16.msra.mxu0 %v4016
    %4360 = vmatpush.bf16.msra.mxu0 %v4010
    %4361 = vmatpush.bf16.msra.mxu0 %v4004
    %4362 = vmatpush.bf16.msra.mxu0 %v3998
    %4363 = vmatpush.bf16.msra.mxu0 %v3992
    %4364 = vmatpush.bf16.msra.mxu0 %v3986
    %4365 = vmatmul.bf16.gmra.mxu0 %v256
    %v4366 = vpop.f32.mrf.mxu0
    %v4367 = vadd.f32 %v4353, %v4366
    %v4368 = vpop.f32.mrf.mxu0
    %v4369 = vadd.f32 %v4355, %v4368
    %4370 = vdwg.mxu0
    %4371 = vmatpush.bf16.msra.mxu0 %v4076
    %4372 = vmatpush.bf16.msra.mxu0 %v4070
    %4373 = vmatpush.bf16.msra.mxu0 %v4064
    %4374 = vmatpush.bf16.msra.mxu0 %v4058
    %4375 = vmatpush.bf16.msra.mxu0 %v4052
    %4376 = vmatpush.bf16.msra.mxu0 %v4046
    %4377 = vmatpush.bf16.msra.mxu0 %v4040
    %4378 = vmatpush.bf16.msra.mxu0 %v4034
    %4379 = vmatmul.bf16.gmra.mxu0 %v257
    %v4380 = vpop.f32.mrf.mxu0
    %v4381 = vadd.f32 %v4367, %v4380
    %v4382 = vpop.f32.mrf.mxu0
    %v4383 = vadd.f32 %v4369, %v4382
    %4384 = vdwg.mxu0
    %4385 = vmatpush.bf16.msra.mxu0 %v3933
    %4386 = vmatpush.bf16.msra.mxu0 %v3927
    %4387 = vmatpush.bf16.msra.mxu0 %v3921
    %4388 = vmatpush.bf16.msra.mxu0 %v3915
    %4389 = vmatpush.bf16.msra.mxu0 %v3909
    %4390 = vmatpush.bf16.msra.mxu0 %v3903
    %4391 = vmatpush.bf16.msra.mxu0 %v3897
    %4392 = vmatpush.bf16.msra.mxu0 %v3891
    %4393 = vmatmul.bf16.gmra.mxu0 %v254
    %v4394 = vpop.f32.mrf.mxu0
    %v4395 = vadd.f32 0.0, %v4394
    %v4396 = vpop.f32.mrf.mxu0
    %v4397 = vadd.f32 0.0, %v4396
    %4398 = vdwg.mxu0
    %4399 = vmatpush.bf16.msra.mxu0 %v3981
    %4400 = vmatpush.bf16.msra.mxu0 %v3975
    %4401 = vmatpush.bf16.msra.mxu0 %v3969
    %4402 = vmatpush.bf16.msra.mxu0 %v3963
    %4403 = vmatpush.bf16.msra.mxu0 %v3957
    %4404 = vmatpush.bf16.msra.mxu0 %v3951
    %4405 = vmatpush.bf16.msra.mxu0 %v3945
    %4406 = vmatpush.bf16.msra.mxu0 %v3939
    %4407 = vmatmul.bf16.gmra.mxu0 %v255
    %v4408 = vpop.f32.mrf.mxu0
    %v4409 = vadd.f32 %v4395, %v4408
    %v4410 = vpop.f32.mrf.mxu0
    %v4411 = vadd.f32 %v4397, %v4410
    %4412 = vdwg.mxu0
    %4413 = vmatpush.bf16.msra.mxu0 %v4029
    %4414 = vmatpush.bf16.msra.mxu0 %v4023
    %4415 = vmatpush.bf16.msra.mxu0 %v4017
    %4416 = vmatpush.bf16.msra.mxu0 %v4011
    %4417 = vmatpush.bf16.msra.mxu0 %v4005
    %4418 = vmatpush.bf16.msra.mxu0 %v3999
    %4419 = vmatpush.bf16.msra.mxu0 %v3993
    %4420 = vmatpush.bf16.msra.mxu0 %v3987
    %4421 = vmatmul.bf16.gmra.mxu0 %v256
    %v4422 = vpop.f32.mrf.mxu0
    %v4423 = vadd.f32 %v4409, %v4422
    %v4424 = vpop.f32.mrf.mxu0
    %v4425 = vadd.f32 %v4411, %v4424
    %4426 = vdwg.mxu0
    %4427 = vmatpush.bf16.msra.mxu0 %v4077
    %4428 = vmatpush.bf16.msra.mxu0 %v4071
    %4429 = vmatpush.bf16.msra.mxu0 %v4065
    %4430 = vmatpush.bf16.msra.mxu0 %v4059
    %4431 = vmatpush.bf16.msra.mxu0 %v4053
    %4432 = vmatpush.bf16.msra.mxu0 %v4047
    %4433 = vmatpush.bf16.msra.mxu0 %v4041
    %4434 = vmatpush.bf16.msra.mxu0 %v4035
    %4435 = vmatmul.bf16.gmra.mxu0 %v257
    %v4436 = vpop.f32.mrf.mxu0
    %v4437 = vadd.f32 %v4423, %v4436
    %v4438 = vpop.f32.mrf.mxu0
    %v4439 = vadd.f32 %v4425, %v4438
    %4440 = vdwg.mxu0
    %4441 = vmatpush.bf16.msra.mxu0 %v3934
    %4442 = vmatpush.bf16.msra.mxu0 %v3928
    %4443 = vmatpush.bf16.msra.mxu0 %v3922
    %4444 = vmatpush.bf16.msra.mxu0 %v3916
    %4445 = vmatpush.bf16.msra.mxu0 %v3910
    %4446 = vmatpush.bf16.msra.mxu0 %v3904
    %4447 = vmatpush.bf16.msra.mxu0 %v3898
    %4448 = vmatpush.bf16.msra.mxu0 %v3892
    %4449 = vmatmul.bf16.gmra.mxu0 %v254
    %v4450 = vpop.f32.mrf.mxu0
    %v4451 = vadd.f32 0.0, %v4450
    %v4452 = vpop.f32.mrf.mxu0
    %v4453 = vadd.f32 0.0, %v4452
    %4454 = vdwg.mxu0
    %4455 = vmatpush.bf16.msra.mxu0 %v3982
    %4456 = vmatpush.bf16.msra.mxu0 %v3976
    %4457 = vmatpush.bf16.msra.mxu0 %v3970
    %4458 = vmatpush.bf16.msra.mxu0 %v3964
    %4459 = vmatpush.bf16.msra.mxu0 %v3958
    %4460 = vmatpush.bf16.msra.mxu0 %v3952
    %4461 = vmatpush.bf16.msra.mxu0 %v3946
    %4462 = vmatpush.bf16.msra.mxu0 %v3940
    %4463 = vmatmul.bf16.gmra.mxu0 %v255
    %v4464 = vpop.f32.mrf.mxu0
    %v4465 = vadd.f32 %v4451, %v4464
    %v4466 = vpop.f32.mrf.mxu0
    %v4467 = vadd.f32 %v4453, %v4466
    %4468 = vdwg.mxu0
    %4469 = vmatpush.bf16.msra.mxu0 %v4030
    %4470 = vmatpush.bf16.msra.mxu0 %v4024
    %4471 = vmatpush.bf16.msra.mxu0 %v4018
    %4472 = vmatpush.bf16.msra.mxu0 %v4012
    %4473 = vmatpush.bf16.msra.mxu0 %v4006
    %4474 = vmatpush.bf16.msra.mxu0 %v4000
    %4475 = vmatpush.bf16.msra.mxu0 %v3994
    %4476 = vmatpush.bf16.msra.mxu0 %v3988
    %4477 = vmatmul.bf16.gmra.mxu0 %v256
    %v4478 = vpop.f32.mrf.mxu0
    %v4479 = vadd.f32 %v4465, %v4478
    %v4480 = vpop.f32.mrf.mxu0
    %v4481 = vadd.f32 %v4467, %v4480
    %4482 = vdwg.mxu0
    %4483 = vmatpush.bf16.msra.mxu0 %v4078
    %4484 = vmatpush.bf16.msra.mxu0 %v4072
    %4485 = vmatpush.bf16.msra.mxu0 %v4066
    %4486 = vmatpush.bf16.msra.mxu0 %v4060
    %4487 = vmatpush.bf16.msra.mxu0 %v4054
    %4488 = vmatpush.bf16.msra.mxu0 %v4048
    %4489 = vmatpush.bf16.msra.mxu0 %v4042
    %4490 = vmatpush.bf16.msra.mxu0 %v4036
    %4491 = vmatmul.bf16.gmra.mxu0 %v257
    %v4492 = vpop.f32.mrf.mxu0
    %v4493 = vadd.f32 %v4479, %v4492
    %v4494 = vpop.f32.mrf.mxu0
    %v4495 = vadd.f32 %v4481, %v4494
    %4496 = vdwg.mxu0
    %4497 = vmatpush.bf16.msra.mxu0 %v3935
    %4498 = vmatpush.bf16.msra.mxu0 %v3929
    %4499 = vmatpush.bf16.msra.mxu0 %v3923
    %4500 = vmatpush.bf16.msra.mxu0 %v3917
    %4501 = vmatpush.bf16.msra.mxu0 %v3911
    %4502 = vmatpush.bf16.msra.mxu0 %v3905
    %4503 = vmatpush.bf16.msra.mxu0 %v3899
    %4504 = vmatpush.bf16.msra.mxu0 %v3893
    %4505 = vmatmul.bf16.gmra.mxu0 %v254
    %v4506 = vpop.f32.mrf.mxu0
    %v4507 = vadd.f32 0.0, %v4506
    %v4508 = vpop.f32.mrf.mxu0
    %v4509 = vadd.f32 0.0, %v4508
    %4510 = vdwg.mxu0
    %4511 = vmatpush.bf16.msra.mxu0 %v3983
    %4512 = vmatpush.bf16.msra.mxu0 %v3977
    %4513 = vmatpush.bf16.msra.mxu0 %v3971
    %4514 = vmatpush.bf16.msra.mxu0 %v3965
    %4515 = vmatpush.bf16.msra.mxu0 %v3959
    %4516 = vmatpush.bf16.msra.mxu0 %v3953
    %4517 = vmatpush.bf16.msra.mxu0 %v3947
    %4518 = vmatpush.bf16.msra.mxu0 %v3941
    %4519 = vmatmul.bf16.gmra.mxu0 %v255
    %v4520 = vpop.f32.mrf.mxu0
    %v4521 = vadd.f32 %v4507, %v4520
    %v4522 = vpop.f32.mrf.mxu0
    %v4523 = vadd.f32 %v4509, %v4522
    %4524 = vdwg.mxu0
    %4525 = vmatpush.bf16.msra.mxu0 %v4031
    %4526 = vmatpush.bf16.msra.mxu0 %v4025
    %4527 = vmatpush.bf16.msra.mxu0 %v4019
    %4528 = vmatpush.bf16.msra.mxu0 %v4013
    %4529 = vmatpush.bf16.msra.mxu0 %v4007
    %4530 = vmatpush.bf16.msra.mxu0 %v4001
    %4531 = vmatpush.bf16.msra.mxu0 %v3995
    %4532 = vmatpush.bf16.msra.mxu0 %v3989
    %4533 = vmatmul.bf16.gmra.mxu0 %v256
    %v4534 = vpop.f32.mrf.mxu0
    %v4535 = vadd.f32 %v4521, %v4534
    %v4536 = vpop.f32.mrf.mxu0
    %v4537 = vadd.f32 %v4523, %v4536
    %4538 = vdwg.mxu0
    %4539 = vmatpush.bf16.msra.mxu0 %v4079
    %4540 = vmatpush.bf16.msra.mxu0 %v4073
    %4541 = vmatpush.bf16.msra.mxu0 %v4067
    %4542 = vmatpush.bf16.msra.mxu0 %v4061
    %4543 = vmatpush.bf16.msra.mxu0 %v4055
    %4544 = vmatpush.bf16.msra.mxu0 %v4049
    %4545 = vmatpush.bf16.msra.mxu0 %v4043
    %4546 = vmatpush.bf16.msra.mxu0 %v4037
    %4547 = vmatmul.bf16.gmra.mxu0 %v257
    %v4548 = vpop.f32.mrf.mxu0
    %v4549 = vadd.f32 %v4535, %v4548
    %v4550 = vpop.f32.mrf.mxu0
    %v4551 = vadd.f32 %v4537, %v4550
    %4552 = vdwg.mxu0
    %4553 = vmatpush.bf16.msra.mxu0 %v3936
    %4554 = vmatpush.bf16.msra.mxu0 %v3930
    %4555 = vmatpush.bf16.msra.mxu0 %v3924
    %4556 = vmatpush.bf16.msra.mxu0 %v3918
    %4557 = vmatpush.bf16.msra.mxu0 %v3912
    %4558 = vmatpush.bf16.msra.mxu0 %v3906
    %4559 = vmatpush.bf16.msra.mxu0 %v3900
    %4560 = vmatpush.bf16.msra.mxu0 %v3894
    %4561 = vmatmul.bf16.gmra.mxu0 %v254
    %v4562 = vpop.f32.mrf.mxu0
    %v4563 = vadd.f32 0.0, %v4562
    %v4564 = vpop.f32.mrf.mxu0
    %v4565 = vadd.f32 0.0, %v4564
    %4566 = vdwg.mxu0
    %4567 = vmatpush.bf16.msra.mxu0 %v3984
    %4568 = vmatpush.bf16.msra.mxu0 %v3978
    %4569 = vmatpush.bf16.msra.mxu0 %v3972
    %4570 = vmatpush.bf16.msra.mxu0 %v3966
    %4571 = vmatpush.bf16.msra.mxu0 %v3960
    %4572 = vmatpush.bf16.msra.mxu0 %v3954
    %4573 = vmatpush.bf16.msra.mxu0 %v3948
    %4574 = vmatpush.bf16.msra.mxu0 %v3942
    %4575 = vmatmul.bf16.gmra.mxu0 %v255
    %v4576 = vpop.f32.mrf.mxu0
    %v4577 = vadd.f32 %v4563, %v4576
    %v4578 = vpop.f32.mrf.mxu0
    %v4579 = vadd.f32 %v4565, %v4578
    %4580 = vdwg.mxu0
    %4581 = vmatpush.bf16.msra.mxu0 %v4032
    %4582 = vmatpush.bf16.msra.mxu0 %v4026
    %4583 = vmatpush.bf16.msra.mxu0 %v4020
    %4584 = vmatpush.bf16.msra.mxu0 %v4014
    %4585 = vmatpush.bf16.msra.mxu0 %v4008
    %4586 = vmatpush.bf16.msra.mxu0 %v4002
    %4587 = vmatpush.bf16.msra.mxu0 %v3996
    %4588 = vmatpush.bf16.msra.mxu0 %v3990
    %4589 = vmatmul.bf16.gmra.mxu0 %v256
    %v4590 = vpop.f32.mrf.mxu0
    %v4591 = vadd.f32 %v4577, %v4590
    %v4592 = vpop.f32.mrf.mxu0
    %v4593 = vadd.f32 %v4579, %v4592
    %4594 = vdwg.mxu0
    %4595 = vmatpush.bf16.msra.mxu0 %v4080
    %4596 = vmatpush.bf16.msra.mxu0 %v4074
    %4597 = vmatpush.bf16.msra.mxu0 %v4068
    %4598 = vmatpush.bf16.msra.mxu0 %v4062
    %4599 = vmatpush.bf16.msra.mxu0 %v4056
    %4600 = vmatpush.bf16.msra.mxu0 %v4050
    %4601 = vmatpush.bf16.msra.mxu0 %v4044
    %4602 = vmatpush.bf16.msra.mxu0 %v4038
    %4603 = vmatmul.bf16.gmra.mxu0 %v257
    %v4604 = vpop.f32.mrf.mxu0
    %v4605 = vadd.f32 %v4591, %v4604
    %v4606 = vpop.f32.mrf.mxu0
    %v4607 = vadd.f32 %v4593, %v4606
    %4608 = vdwg.mxu0
    %s4609 = scalar_lea.vmem %s1, 32
    %v4610 = vld [vmem:[%s4609] sm:$0xff]
    %v4611 = vld [vmem:[%s4609 + $0x8] sm:$0xff]
    %4613 = vset.pattern.permute.xlu0 0
    %4614 = vperm.xlu0 %4613, %v4610
    %v4615 = vpop.permute.xlu0 %4614
    %4618 = vset.pattern.permute.xlu0 0
    %4619 = vperm.xlu0 %4618, %v4611
    %v4620 = vpop.permute.xlu0 %4619
    %v4622 = vmul.f32 %v4615, %v4325
    %v4623 = vmul.f32 %v4615, %v4381
    %v4624 = vmul.f32 %v4615, %v4437
    %v4625 = vmul.f32 %v4615, %v4493
    %v4626 = vmul.f32 %v4615, %v4549
    %v4627 = vmul.f32 %v4615, %v4605
    %v4628 = vmul.f32 %v4620, %v4327
    %v4629 = vmul.f32 %v4620, %v4383
    %v4630 = vmul.f32 %v4620, %v4439
    %v4631 = vmul.f32 %v4620, %v4495
    %v4632 = vmul.f32 %v4620, %v4551
    %v4633 = vmul.f32 %v4620, %v4607
    %v4634 = vadd.f32 %v3108, %v4622
    %v4635 = vadd.f32 %v3109, %v4623
    %v4636 = vadd.f32 %v3110, %v4624
    %v4637 = vadd.f32 %v3111, %v4625
    %v4638 = vadd.f32 %v3112, %v4626
    %v4639 = vadd.f32 %v3113, %v4627
    %v4640 = vadd.f32 %v3114, %v4628
    %v4641 = vadd.f32 %v3115, %v4629
    %v4642 = vadd.f32 %v3116, %v4630
    %v4643 = vadd.f32 %v3117, %v4631
    %v4644 = vadd.f32 %v3118, %v4632
    %v4645 = vadd.f32 %v3119, %v4633
    %s4646 = scalar_lea.vmem [#allocation2], 4608
    %v4647 = vld [vmem:[%s4646] sm:$0xff]
    %v4648 = vld [vmem:[%s4646 + $0x8] sm:$0xff]
    %v4649 = vld [vmem:[%s4646 + $0x10] sm:$0xff]
    %v4650 = vld [vmem:[%s4646 + $0x18] sm:$0xff]
    %v4651 = vld [vmem:[%s4646 + $0x20] sm:$0xff]
    %v4652 = vld [vmem:[%s4646 + $0x28] sm:$0xff]
    %v4653 = vld [vmem:[%s4646 + $0x30] sm:$0xff]
    %v4654 = vld [vmem:[%s4646 + $0x38] sm:$0xff]
    %v4655 = vld [vmem:[%s4646 + $0x40] sm:$0xff]
    %v4656 = vld [vmem:[%s4646 + $0x48] sm:$0xff]
    %v4657 = vld [vmem:[%s4646 + $0x50] sm:$0xff]
    %v4658 = vld [vmem:[%s4646 + $0x58] sm:$0xff]
    %v4659 = vld [vmem:[%s4646 + $0x60] sm:$0xff]
    %v4660 = vld [vmem:[%s4646 + $0x68] sm:$0xff]
    %v4661 = vld [vmem:[%s4646 + $0x70] sm:$0xff]
    %v4662 = vld [vmem:[%s4646 + $0x78] sm:$0xff]
    %v4663 = vld [vmem:[%s4646 + $0x80] sm:$0xff]
    %v4664 = vld [vmem:[%s4646 + $0x88] sm:$0xff]
    %v4665 = vld [vmem:[%s4646 + $0x90] sm:$0xff]
    %v4666 = vld [vmem:[%s4646 + $0x98] sm:$0xff]
    %v4667 = vld [vmem:[%s4646 + $0xa0] sm:$0xff]
    %v4668 = vld [vmem:[%s4646 + $0xa8] sm:$0xff]
    %v4669 = vld [vmem:[%s4646 + $0xb0] sm:$0xff]
    %v4670 = vld [vmem:[%s4646 + $0xb8] sm:$0xff]
    %v4671 = vld [vmem:[%s4646 + $0xc0] sm:$0xff]
    %v4672 = vld [vmem:[%s4646 + $0xc8] sm:$0xff]
    %v4673 = vld [vmem:[%s4646 + $0xd0] sm:$0xff]
    %v4674 = vld [vmem:[%s4646 + $0xd8] sm:$0xff]
    %v4675 = vld [vmem:[%s4646 + $0xe0] sm:$0xff]
    %v4676 = vld [vmem:[%s4646 + $0xe8] sm:$0xff]
    %v4677 = vld [vmem:[%s4646 + $0xf0] sm:$0xff]
    %v4678 = vld [vmem:[%s4646 + $0xf8] sm:$0xff]
    %v4679 = vld [vmem:[%s4646 + $0x100] sm:$0xff]
    %v4680 = vld [vmem:[%s4646 + $0x108] sm:$0xff]
    %v4681 = vld [vmem:[%s4646 + $0x110] sm:$0xff]
    %v4682 = vld [vmem:[%s4646 + $0x118] sm:$0xff]
    %v4683 = vld [vmem:[%s4646 + $0x120] sm:$0xff]
    %v4684 = vld [vmem:[%s4646 + $0x128] sm:$0xff]
    %v4685 = vld [vmem:[%s4646 + $0x130] sm:$0xff]
    %v4686 = vld [vmem:[%s4646 + $0x138] sm:$0xff]
    %v4687 = vld [vmem:[%s4646 + $0x140] sm:$0xff]
    %v4688 = vld [vmem:[%s4646 + $0x148] sm:$0xff]
    %v4689 = vld [vmem:[%s4646 + $0x150] sm:$0xff]
    %v4690 = vld [vmem:[%s4646 + $0x158] sm:$0xff]
    %v4691 = vld [vmem:[%s4646 + $0x160] sm:$0xff]
    %v4692 = vld [vmem:[%s4646 + $0x168] sm:$0xff]
    %v4693 = vld [vmem:[%s4646 + $0x170] sm:$0xff]
    %v4694 = vld [vmem:[%s4646 + $0x178] sm:$0xff]
    %v4695 = vld [vmem:[%s4646 + $0x180] sm:$0xff]
    %v4696 = vld [vmem:[%s4646 + $0x188] sm:$0xff]
    %v4697 = vld [vmem:[%s4646 + $0x190] sm:$0xff]
    %v4698 = vld [vmem:[%s4646 + $0x198] sm:$0xff]
    %v4699 = vld [vmem:[%s4646 + $0x1a0] sm:$0xff]
    %v4700 = vld [vmem:[%s4646 + $0x1a8] sm:$0xff]
    %v4701 = vld [vmem:[%s4646 + $0x1b0] sm:$0xff]
    %v4702 = vld [vmem:[%s4646 + $0x1b8] sm:$0xff]
    %v4703 = vld [vmem:[%s4646 + $0x1c0] sm:$0xff]
    %v4704 = vld [vmem:[%s4646 + $0x1c8] sm:$0xff]
    %v4705 = vld [vmem:[%s4646 + $0x1d0] sm:$0xff]
    %v4706 = vld [vmem:[%s4646 + $0x1d8] sm:$0xff]
    %v4707 = vld [vmem:[%s4646 + $0x1e0] sm:$0xff]
    %v4708 = vld [vmem:[%s4646 + $0x1e8] sm:$0xff]
    %v4709 = vld [vmem:[%s4646 + $0x1f0] sm:$0xff]
    %v4710 = vld [vmem:[%s4646 + $0x1f8] sm:$0xff]
    %v4711 = vld [vmem:[%s4646 + $0x200] sm:$0xff]
    %v4712 = vld [vmem:[%s4646 + $0x208] sm:$0xff]
    %v4713 = vld [vmem:[%s4646 + $0x210] sm:$0xff]
    %v4714 = vld [vmem:[%s4646 + $0x218] sm:$0xff]
    %v4715 = vld [vmem:[%s4646 + $0x220] sm:$0xff]
    %v4716 = vld [vmem:[%s4646 + $0x228] sm:$0xff]
    %v4717 = vld [vmem:[%s4646 + $0x230] sm:$0xff]
    %v4718 = vld [vmem:[%s4646 + $0x238] sm:$0xff]
    %v4719 = vld [vmem:[%s4646 + $0x240] sm:$0xff]
    %v4720 = vld [vmem:[%s4646 + $0x248] sm:$0xff]
    %v4721 = vld [vmem:[%s4646 + $0x250] sm:$0xff]
    %v4722 = vld [vmem:[%s4646 + $0x258] sm:$0xff]
    %v4723 = vld [vmem:[%s4646 + $0x260] sm:$0xff]
    %v4724 = vld [vmem:[%s4646 + $0x268] sm:$0xff]
    %v4725 = vld [vmem:[%s4646 + $0x270] sm:$0xff]
    %v4726 = vld [vmem:[%s4646 + $0x278] sm:$0xff]
    %v4727 = vld [vmem:[%s4646 + $0x280] sm:$0xff]
    %v4728 = vld [vmem:[%s4646 + $0x288] sm:$0xff]
    %v4729 = vld [vmem:[%s4646 + $0x290] sm:$0xff]
    %v4730 = vld [vmem:[%s4646 + $0x298] sm:$0xff]
    %v4731 = vld [vmem:[%s4646 + $0x2a0] sm:$0xff]
    %v4732 = vld [vmem:[%s4646 + $0x2a8] sm:$0xff]
    %v4733 = vld [vmem:[%s4646 + $0x2b0] sm:$0xff]
    %v4734 = vld [vmem:[%s4646 + $0x2b8] sm:$0xff]
    %v4735 = vld [vmem:[%s4646 + $0x2c0] sm:$0xff]
    %v4736 = vld [vmem:[%s4646 + $0x2c8] sm:$0xff]
    %v4737 = vld [vmem:[%s4646 + $0x2d0] sm:$0xff]
    %v4738 = vld [vmem:[%s4646 + $0x2d8] sm:$0xff]
    %v4739 = vld [vmem:[%s4646 + $0x2e0] sm:$0xff]
    %v4740 = vld [vmem:[%s4646 + $0x2e8] sm:$0xff]
    %v4741 = vld [vmem:[%s4646 + $0x2f0] sm:$0xff]
    %v4742 = vld [vmem:[%s4646 + $0x2f8] sm:$0xff]
    %v4743 = vld [vmem:[%s4646 + $0x300] sm:$0xff]
    %v4744 = vld [vmem:[%s4646 + $0x308] sm:$0xff]
    %v4745 = vld [vmem:[%s4646 + $0x310] sm:$0xff]
    %v4746 = vld [vmem:[%s4646 + $0x318] sm:$0xff]
    %v4747 = vld [vmem:[%s4646 + $0x320] sm:$0xff]
    %v4748 = vld [vmem:[%s4646 + $0x328] sm:$0xff]
    %v4749 = vld [vmem:[%s4646 + $0x330] sm:$0xff]
    %v4750 = vld [vmem:[%s4646 + $0x338] sm:$0xff]
    %v4751 = vld [vmem:[%s4646 + $0x340] sm:$0xff]
    %v4752 = vld [vmem:[%s4646 + $0x348] sm:$0xff]
    %v4753 = vld [vmem:[%s4646 + $0x350] sm:$0xff]
    %v4754 = vld [vmem:[%s4646 + $0x358] sm:$0xff]
    %v4755 = vld [vmem:[%s4646 + $0x360] sm:$0xff]
    %v4756 = vld [vmem:[%s4646 + $0x368] sm:$0xff]
    %v4757 = vld [vmem:[%s4646 + $0x370] sm:$0xff]
    %v4758 = vld [vmem:[%s4646 + $0x378] sm:$0xff]
    %v4759 = vld [vmem:[%s4646 + $0x380] sm:$0xff]
    %v4760 = vld [vmem:[%s4646 + $0x388] sm:$0xff]
    %v4761 = vld [vmem:[%s4646 + $0x390] sm:$0xff]
    %v4762 = vld [vmem:[%s4646 + $0x398] sm:$0xff]
    %v4763 = vld [vmem:[%s4646 + $0x3a0] sm:$0xff]
    %v4764 = vld [vmem:[%s4646 + $0x3a8] sm:$0xff]
    %v4765 = vld [vmem:[%s4646 + $0x3b0] sm:$0xff]
    %v4766 = vld [vmem:[%s4646 + $0x3b8] sm:$0xff]
    %v4767 = vld [vmem:[%s4646 + $0x3c0] sm:$0xff]
    %v4768 = vld [vmem:[%s4646 + $0x3c8] sm:$0xff]
    %v4769 = vld [vmem:[%s4646 + $0x3d0] sm:$0xff]
    %v4770 = vld [vmem:[%s4646 + $0x3d8] sm:$0xff]
    %v4771 = vld [vmem:[%s4646 + $0x3e0] sm:$0xff]
    %v4772 = vld [vmem:[%s4646 + $0x3e8] sm:$0xff]
    %v4773 = vld [vmem:[%s4646 + $0x3f0] sm:$0xff]
    %v4774 = vld [vmem:[%s4646 + $0x3f8] sm:$0xff]
    %v4775 = vld [vmem:[%s4646 + $0x400] sm:$0xff]
    %v4776 = vld [vmem:[%s4646 + $0x408] sm:$0xff]
    %v4777 = vld [vmem:[%s4646 + $0x410] sm:$0xff]
    %v4778 = vld [vmem:[%s4646 + $0x418] sm:$0xff]
    %v4779 = vld [vmem:[%s4646 + $0x420] sm:$0xff]
    %v4780 = vld [vmem:[%s4646 + $0x428] sm:$0xff]
    %v4781 = vld [vmem:[%s4646 + $0x430] sm:$0xff]
    %v4782 = vld [vmem:[%s4646 + $0x438] sm:$0xff]
    %v4783 = vld [vmem:[%s4646 + $0x440] sm:$0xff]
    %v4784 = vld [vmem:[%s4646 + $0x448] sm:$0xff]
    %v4785 = vld [vmem:[%s4646 + $0x450] sm:$0xff]
    %v4786 = vld [vmem:[%s4646 + $0x458] sm:$0xff]
    %v4787 = vld [vmem:[%s4646 + $0x460] sm:$0xff]
    %v4788 = vld [vmem:[%s4646 + $0x468] sm:$0xff]
    %v4789 = vld [vmem:[%s4646 + $0x470] sm:$0xff]
    %v4790 = vld [vmem:[%s4646 + $0x478] sm:$0xff]
    %v4791 = vld [vmem:[%s4646 + $0x480] sm:$0xff]
    %v4792 = vld [vmem:[%s4646 + $0x488] sm:$0xff]
    %v4793 = vld [vmem:[%s4646 + $0x490] sm:$0xff]
    %v4794 = vld [vmem:[%s4646 + $0x498] sm:$0xff]
    %v4795 = vld [vmem:[%s4646 + $0x4a0] sm:$0xff]
    %v4796 = vld [vmem:[%s4646 + $0x4a8] sm:$0xff]
    %v4797 = vld [vmem:[%s4646 + $0x4b0] sm:$0xff]
    %v4798 = vld [vmem:[%s4646 + $0x4b8] sm:$0xff]
    %v4799 = vld [vmem:[%s4646 + $0x4c0] sm:$0xff]
    %v4800 = vld [vmem:[%s4646 + $0x4c8] sm:$0xff]
    %v4801 = vld [vmem:[%s4646 + $0x4d0] sm:$0xff]
    %v4802 = vld [vmem:[%s4646 + $0x4d8] sm:$0xff]
    %v4803 = vld [vmem:[%s4646 + $0x4e0] sm:$0xff]
    %v4804 = vld [vmem:[%s4646 + $0x4e8] sm:$0xff]
    %v4805 = vld [vmem:[%s4646 + $0x4f0] sm:$0xff]
    %v4806 = vld [vmem:[%s4646 + $0x4f8] sm:$0xff]
    %v4807 = vld [vmem:[%s4646 + $0x500] sm:$0xff]
    %v4808 = vld [vmem:[%s4646 + $0x508] sm:$0xff]
    %v4809 = vld [vmem:[%s4646 + $0x510] sm:$0xff]
    %v4810 = vld [vmem:[%s4646 + $0x518] sm:$0xff]
    %v4811 = vld [vmem:[%s4646 + $0x520] sm:$0xff]
    %v4812 = vld [vmem:[%s4646 + $0x528] sm:$0xff]
    %v4813 = vld [vmem:[%s4646 + $0x530] sm:$0xff]
    %v4814 = vld [vmem:[%s4646 + $0x538] sm:$0xff]
    %v4815 = vld [vmem:[%s4646 + $0x540] sm:$0xff]
    %v4816 = vld [vmem:[%s4646 + $0x548] sm:$0xff]
    %v4817 = vld [vmem:[%s4646 + $0x550] sm:$0xff]
    %v4818 = vld [vmem:[%s4646 + $0x558] sm:$0xff]
    %v4819 = vld [vmem:[%s4646 + $0x560] sm:$0xff]
    %v4820 = vld [vmem:[%s4646 + $0x568] sm:$0xff]
    %v4821 = vld [vmem:[%s4646 + $0x570] sm:$0xff]
    %v4822 = vld [vmem:[%s4646 + $0x578] sm:$0xff]
    %v4823 = vld [vmem:[%s4646 + $0x580] sm:$0xff]
    %v4824 = vld [vmem:[%s4646 + $0x588] sm:$0xff]
    %v4825 = vld [vmem:[%s4646 + $0x590] sm:$0xff]
    %v4826 = vld [vmem:[%s4646 + $0x598] sm:$0xff]
    %v4827 = vld [vmem:[%s4646 + $0x5a0] sm:$0xff]
    %v4828 = vld [vmem:[%s4646 + $0x5a8] sm:$0xff]
    %v4829 = vld [vmem:[%s4646 + $0x5b0] sm:$0xff]
    %v4830 = vld [vmem:[%s4646 + $0x5b8] sm:$0xff]
    %v4831 = vld [vmem:[%s4646 + $0x5c0] sm:$0xff]
    %v4832 = vld [vmem:[%s4646 + $0x5c8] sm:$0xff]
    %v4833 = vld [vmem:[%s4646 + $0x5d0] sm:$0xff]
    %v4834 = vld [vmem:[%s4646 + $0x5d8] sm:$0xff]
    %v4835 = vld [vmem:[%s4646 + $0x5e0] sm:$0xff]
    %v4836 = vld [vmem:[%s4646 + $0x5e8] sm:$0xff]
    %v4837 = vld [vmem:[%s4646 + $0x5f0] sm:$0xff]
    %v4838 = vld [vmem:[%s4646 + $0x5f8] sm:$0xff]
    %v5031 = vunpack.c.l.b16 %v4647
    %v5032 = vunpack.c.h.b16 %v4647
    %v5033 = vunpack.c.l.b16 %v4648
    %v5034 = vunpack.c.h.b16 %v4648
    %v5035 = vunpack.c.l.b16 %v4649
    %v5036 = vunpack.c.h.b16 %v4649
    %v5037 = vunpack.c.l.b16 %v4650
    %v5038 = vunpack.c.h.b16 %v4650
    %v5039 = vunpack.c.l.b16 %v4651
    %v5040 = vunpack.c.h.b16 %v4651
    %v5041 = vunpack.c.l.b16 %v4652
    %v5042 = vunpack.c.h.b16 %v4652
    %v5043 = vunpack.c.l.b16 %v4653
    %v5044 = vunpack.c.h.b16 %v4653
    %v5045 = vunpack.c.l.b16 %v4654
    %v5046 = vunpack.c.h.b16 %v4654
    %v5047 = vunpack.c.l.b16 %v4655
    %v5048 = vunpack.c.h.b16 %v4655
    %v5049 = vunpack.c.l.b16 %v4656
    %v5050 = vunpack.c.h.b16 %v4656
    %v5051 = vunpack.c.l.b16 %v4657
    %v5052 = vunpack.c.h.b16 %v4657
    %v5053 = vunpack.c.l.b16 %v4658
    %v5054 = vunpack.c.h.b16 %v4658
    %v5055 = vunpack.c.l.b16 %v4659
    %v5056 = vunpack.c.h.b16 %v4659
    %v5057 = vunpack.c.l.b16 %v4660
    %v5058 = vunpack.c.h.b16 %v4660
    %v5059 = vunpack.c.l.b16 %v4661
    %v5060 = vunpack.c.h.b16 %v4661
    %v5061 = vunpack.c.l.b16 %v4662
    %v5062 = vunpack.c.h.b16 %v4662
    %v5063 = vunpack.c.l.b16 %v4663
    %v5064 = vunpack.c.h.b16 %v4663
    %v5065 = vunpack.c.l.b16 %v4664
    %v5066 = vunpack.c.h.b16 %v4664
    %v5067 = vunpack.c.l.b16 %v4665
    %v5068 = vunpack.c.h.b16 %v4665
    %v5069 = vunpack.c.l.b16 %v4666
    %v5070 = vunpack.c.h.b16 %v4666
    %v5071 = vunpack.c.l.b16 %v4667
    %v5072 = vunpack.c.h.b16 %v4667
    %v5073 = vunpack.c.l.b16 %v4668
    %v5074 = vunpack.c.h.b16 %v4668
    %v5075 = vunpack.c.l.b16 %v4669
    %v5076 = vunpack.c.h.b16 %v4669
    %v5077 = vunpack.c.l.b16 %v4670
    %v5078 = vunpack.c.h.b16 %v4670
    %v5079 = vunpack.c.l.b16 %v4671
    %v5080 = vunpack.c.h.b16 %v4671
    %v5081 = vunpack.c.l.b16 %v4672
    %v5082 = vunpack.c.h.b16 %v4672
    %v5083 = vunpack.c.l.b16 %v4673
    %v5084 = vunpack.c.h.b16 %v4673
    %v5085 = vunpack.c.l.b16 %v4674
    %v5086 = vunpack.c.h.b16 %v4674
    %v5087 = vunpack.c.l.b16 %v4675
    %v5088 = vunpack.c.h.b16 %v4675
    %v5089 = vunpack.c.l.b16 %v4676
    %v5090 = vunpack.c.h.b16 %v4676
    %v5091 = vunpack.c.l.b16 %v4677
    %v5092 = vunpack.c.h.b16 %v4677
    %v5093 = vunpack.c.l.b16 %v4678
    %v5094 = vunpack.c.h.b16 %v4678
    %v5095 = vunpack.c.l.b16 %v4679
    %v5096 = vunpack.c.h.b16 %v4679
    %v5097 = vunpack.c.l.b16 %v4680
    %v5098 = vunpack.c.h.b16 %v4680
    %v5099 = vunpack.c.l.b16 %v4681
    %v5100 = vunpack.c.h.b16 %v4681
    %v5101 = vunpack.c.l.b16 %v4682
    %v5102 = vunpack.c.h.b16 %v4682
    %v5103 = vunpack.c.l.b16 %v4683
    %v5104 = vunpack.c.h.b16 %v4683
    %v5105 = vunpack.c.l.b16 %v4684
    %v5106 = vunpack.c.h.b16 %v4684
    %v5107 = vunpack.c.l.b16 %v4685
    %v5108 = vunpack.c.h.b16 %v4685
    %v5109 = vunpack.c.l.b16 %v4686
    %v5110 = vunpack.c.h.b16 %v4686
    %v5111 = vunpack.c.l.b16 %v4687
    %v5112 = vunpack.c.h.b16 %v4687
    %v5113 = vunpack.c.l.b16 %v4688
    %v5114 = vunpack.c.h.b16 %v4688
    %v5115 = vunpack.c.l.b16 %v4689
    %v5116 = vunpack.c.h.b16 %v4689
    %v5117 = vunpack.c.l.b16 %v4690
    %v5118 = vunpack.c.h.b16 %v4690
    %v5119 = vunpack.c.l.b16 %v4691
    %v5120 = vunpack.c.h.b16 %v4691
    %v5121 = vunpack.c.l.b16 %v4692
    %v5122 = vunpack.c.h.b16 %v4692
    %v5123 = vunpack.c.l.b16 %v4693
    %v5124 = vunpack.c.h.b16 %v4693
    %v5125 = vunpack.c.l.b16 %v4694
    %v5126 = vunpack.c.h.b16 %v4694
    %v5127 = vunpack.c.l.b16 %v4695
    %v5128 = vunpack.c.h.b16 %v4695
    %v5129 = vunpack.c.l.b16 %v4696
    %v5130 = vunpack.c.h.b16 %v4696
    %v5131 = vunpack.c.l.b16 %v4697
    %v5132 = vunpack.c.h.b16 %v4697
    %v5133 = vunpack.c.l.b16 %v4698
    %v5134 = vunpack.c.h.b16 %v4698
    %v5135 = vunpack.c.l.b16 %v4699
    %v5136 = vunpack.c.h.b16 %v4699
    %v5137 = vunpack.c.l.b16 %v4700
    %v5138 = vunpack.c.h.b16 %v4700
    %v5139 = vunpack.c.l.b16 %v4701
    %v5140 = vunpack.c.h.b16 %v4701
    %v5141 = vunpack.c.l.b16 %v4702
    %v5142 = vunpack.c.h.b16 %v4702
    %v5143 = vunpack.c.l.b16 %v4703
    %v5144 = vunpack.c.h.b16 %v4703
    %v5145 = vunpack.c.l.b16 %v4704
    %v5146 = vunpack.c.h.b16 %v4704
    %v5147 = vunpack.c.l.b16 %v4705
    %v5148 = vunpack.c.h.b16 %v4705
    %v5149 = vunpack.c.l.b16 %v4706
    %v5150 = vunpack.c.h.b16 %v4706
    %v5151 = vunpack.c.l.b16 %v4707
    %v5152 = vunpack.c.h.b16 %v4707
    %v5153 = vunpack.c.l.b16 %v4708
    %v5154 = vunpack.c.h.b16 %v4708
    %v5155 = vunpack.c.l.b16 %v4709
    %v5156 = vunpack.c.h.b16 %v4709
    %v5157 = vunpack.c.l.b16 %v4710
    %v5158 = vunpack.c.h.b16 %v4710
    %v5159 = vunpack.c.l.b16 %v4711
    %v5160 = vunpack.c.h.b16 %v4711
    %v5161 = vunpack.c.l.b16 %v4712
    %v5162 = vunpack.c.h.b16 %v4712
    %v5163 = vunpack.c.l.b16 %v4713
    %v5164 = vunpack.c.h.b16 %v4713
    %v5165 = vunpack.c.l.b16 %v4714
    %v5166 = vunpack.c.h.b16 %v4714
    %v5167 = vunpack.c.l.b16 %v4715
    %v5168 = vunpack.c.h.b16 %v4715
    %v5169 = vunpack.c.l.b16 %v4716
    %v5170 = vunpack.c.h.b16 %v4716
    %v5171 = vunpack.c.l.b16 %v4717
    %v5172 = vunpack.c.h.b16 %v4717
    %v5173 = vunpack.c.l.b16 %v4718
    %v5174 = vunpack.c.h.b16 %v4718
    %v5175 = vunpack.c.l.b16 %v4719
    %v5176 = vunpack.c.h.b16 %v4719
    %v5177 = vunpack.c.l.b16 %v4720
    %v5178 = vunpack.c.h.b16 %v4720
    %v5179 = vunpack.c.l.b16 %v4721
    %v5180 = vunpack.c.h.b16 %v4721
    %v5181 = vunpack.c.l.b16 %v4722
    %v5182 = vunpack.c.h.b16 %v4722
    %v5183 = vunpack.c.l.b16 %v4723
    %v5184 = vunpack.c.h.b16 %v4723
    %v5185 = vunpack.c.l.b16 %v4724
    %v5186 = vunpack.c.h.b16 %v4724
    %v5187 = vunpack.c.l.b16 %v4725
    %v5188 = vunpack.c.h.b16 %v4725
    %v5189 = vunpack.c.l.b16 %v4726
    %v5190 = vunpack.c.h.b16 %v4726
    %v5191 = vunpack.c.l.b16 %v4727
    %v5192 = vunpack.c.h.b16 %v4727
    %v5193 = vunpack.c.l.b16 %v4728
    %v5194 = vunpack.c.h.b16 %v4728
    %v5195 = vunpack.c.l.b16 %v4729
    %v5196 = vunpack.c.h.b16 %v4729
    %v5197 = vunpack.c.l.b16 %v4730
    %v5198 = vunpack.c.h.b16 %v4730
    %v5199 = vunpack.c.l.b16 %v4731
    %v5200 = vunpack.c.h.b16 %v4731
    %v5201 = vunpack.c.l.b16 %v4732
    %v5202 = vunpack.c.h.b16 %v4732
    %v5203 = vunpack.c.l.b16 %v4733
    %v5204 = vunpack.c.h.b16 %v4733
    %v5205 = vunpack.c.l.b16 %v4734
    %v5206 = vunpack.c.h.b16 %v4734
    %v5207 = vunpack.c.l.b16 %v4735
    %v5208 = vunpack.c.h.b16 %v4735
    %v5209 = vunpack.c.l.b16 %v4736
    %v5210 = vunpack.c.h.b16 %v4736
    %v5211 = vunpack.c.l.b16 %v4737
    %v5212 = vunpack.c.h.b16 %v4737
    %v5213 = vunpack.c.l.b16 %v4738
    %v5214 = vunpack.c.h.b16 %v4738
    %v5215 = vunpack.c.l.b16 %v4739
    %v5216 = vunpack.c.h.b16 %v4739
    %v5217 = vunpack.c.l.b16 %v4740
    %v5218 = vunpack.c.h.b16 %v4740
    %v5219 = vunpack.c.l.b16 %v4741
    %v5220 = vunpack.c.h.b16 %v4741
    %v5221 = vunpack.c.l.b16 %v4742
    %v5222 = vunpack.c.h.b16 %v4742
    %v5223 = vunpack.c.l.b16 %v4743
    %v5224 = vunpack.c.h.b16 %v4743
    %v5225 = vunpack.c.l.b16 %v4744
    %v5226 = vunpack.c.h.b16 %v4744
    %v5227 = vunpack.c.l.b16 %v4745
    %v5228 = vunpack.c.h.b16 %v4745
    %v5229 = vunpack.c.l.b16 %v4746
    %v5230 = vunpack.c.h.b16 %v4746
    %v5231 = vunpack.c.l.b16 %v4747
    %v5232 = vunpack.c.h.b16 %v4747
    %v5233 = vunpack.c.l.b16 %v4748
    %v5234 = vunpack.c.h.b16 %v4748
    %v5235 = vunpack.c.l.b16 %v4749
    %v5236 = vunpack.c.h.b16 %v4749
    %v5237 = vunpack.c.l.b16 %v4750
    %v5238 = vunpack.c.h.b16 %v4750
    %v5239 = vunpack.c.l.b16 %v4751
    %v5240 = vunpack.c.h.b16 %v4751
    %v5241 = vunpack.c.l.b16 %v4752
    %v5242 = vunpack.c.h.b16 %v4752
    %v5243 = vunpack.c.l.b16 %v4753
    %v5244 = vunpack.c.h.b16 %v4753
    %v5245 = vunpack.c.l.b16 %v4754
    %v5246 = vunpack.c.h.b16 %v4754
    %v5247 = vunpack.c.l.b16 %v4755
    %v5248 = vunpack.c.h.b16 %v4755
    %v5249 = vunpack.c.l.b16 %v4756
    %v5250 = vunpack.c.h.b16 %v4756
    %v5251 = vunpack.c.l.b16 %v4757
    %v5252 = vunpack.c.h.b16 %v4757
    %v5253 = vunpack.c.l.b16 %v4758
    %v5254 = vunpack.c.h.b16 %v4758
    %v5255 = vunpack.c.l.b16 %v4759
    %v5256 = vunpack.c.h.b16 %v4759
    %v5257 = vunpack.c.l.b16 %v4760
    %v5258 = vunpack.c.h.b16 %v4760
    %v5259 = vunpack.c.l.b16 %v4761
    %v5260 = vunpack.c.h.b16 %v4761
    %v5261 = vunpack.c.l.b16 %v4762
    %v5262 = vunpack.c.h.b16 %v4762
    %v5263 = vunpack.c.l.b16 %v4763
    %v5264 = vunpack.c.h.b16 %v4763
    %v5265 = vunpack.c.l.b16 %v4764
    %v5266 = vunpack.c.h.b16 %v4764
    %v5267 = vunpack.c.l.b16 %v4765
    %v5268 = vunpack.c.h.b16 %v4765
    %v5269 = vunpack.c.l.b16 %v4766
    %v5270 = vunpack.c.h.b16 %v4766
    %v5271 = vunpack.c.l.b16 %v4767
    %v5272 = vunpack.c.h.b16 %v4767
    %v5273 = vunpack.c.l.b16 %v4768
    %v5274 = vunpack.c.h.b16 %v4768
    %v5275 = vunpack.c.l.b16 %v4769
    %v5276 = vunpack.c.h.b16 %v4769
    %v5277 = vunpack.c.l.b16 %v4770
    %v5278 = vunpack.c.h.b16 %v4770
    %v5279 = vunpack.c.l.b16 %v4771
    %v5280 = vunpack.c.h.b16 %v4771
    %v5281 = vunpack.c.l.b16 %v4772
    %v5282 = vunpack.c.h.b16 %v4772
    %v5283 = vunpack.c.l.b16 %v4773
    %v5284 = vunpack.c.h.b16 %v4773
    %v5285 = vunpack.c.l.b16 %v4774
    %v5286 = vunpack.c.h.b16 %v4774
    %v5287 = vunpack.c.l.b16 %v4775
    %v5288 = vunpack.c.h.b16 %v4775
    %v5289 = vunpack.c.l.b16 %v4776
    %v5290 = vunpack.c.h.b16 %v4776
    %v5291 = vunpack.c.l.b16 %v4777
    %v5292 = vunpack.c.h.b16 %v4777
    %v5293 = vunpack.c.l.b16 %v4778
    %v5294 = vunpack.c.h.b16 %v4778
    %v5295 = vunpack.c.l.b16 %v4779
    %v5296 = vunpack.c.h.b16 %v4779
    %v5297 = vunpack.c.l.b16 %v4780
    %v5298 = vunpack.c.h.b16 %v4780
    %v5299 = vunpack.c.l.b16 %v4781
    %v5300 = vunpack.c.h.b16 %v4781
    %v5301 = vunpack.c.l.b16 %v4782
    %v5302 = vunpack.c.h.b16 %v4782
    %v5303 = vunpack.c.l.b16 %v4783
    %v5304 = vunpack.c.h.b16 %v4783
    %v5305 = vunpack.c.l.b16 %v4784
    %v5306 = vunpack.c.h.b16 %v4784
    %v5307 = vunpack.c.l.b16 %v4785
    %v5308 = vunpack.c.h.b16 %v4785
    %v5309 = vunpack.c.l.b16 %v4786
    %v5310 = vunpack.c.h.b16 %v4786
    %v5311 = vunpack.c.l.b16 %v4787
    %v5312 = vunpack.c.h.b16 %v4787
    %v5313 = vunpack.c.l.b16 %v4788
    %v5314 = vunpack.c.h.b16 %v4788
    %v5315 = vunpack.c.l.b16 %v4789
    %v5316 = vunpack.c.h.b16 %v4789
    %v5317 = vunpack.c.l.b16 %v4790
    %v5318 = vunpack.c.h.b16 %v4790
    %v5319 = vunpack.c.l.b16 %v4791
    %v5320 = vunpack.c.h.b16 %v4791
    %v5321 = vunpack.c.l.b16 %v4792
    %v5322 = vunpack.c.h.b16 %v4792
    %v5323 = vunpack.c.l.b16 %v4793
    %v5324 = vunpack.c.h.b16 %v4793
    %v5325 = vunpack.c.l.b16 %v4794
    %v5326 = vunpack.c.h.b16 %v4794
    %v5327 = vunpack.c.l.b16 %v4795
    %v5328 = vunpack.c.h.b16 %v4795
    %v5329 = vunpack.c.l.b16 %v4796
    %v5330 = vunpack.c.h.b16 %v4796
    %v5331 = vunpack.c.l.b16 %v4797
    %v5332 = vunpack.c.h.b16 %v4797
    %v5333 = vunpack.c.l.b16 %v4798
    %v5334 = vunpack.c.h.b16 %v4798
    %v5335 = vunpack.c.l.b16 %v4799
    %v5336 = vunpack.c.h.b16 %v4799
    %v5337 = vunpack.c.l.b16 %v4800
    %v5338 = vunpack.c.h.b16 %v4800
    %v5339 = vunpack.c.l.b16 %v4801
    %v5340 = vunpack.c.h.b16 %v4801
    %v5341 = vunpack.c.l.b16 %v4802
    %v5342 = vunpack.c.h.b16 %v4802
    %v5343 = vunpack.c.l.b16 %v4803
    %v5344 = vunpack.c.h.b16 %v4803
    %v5345 = vunpack.c.l.b16 %v4804
    %v5346 = vunpack.c.h.b16 %v4804
    %v5347 = vunpack.c.l.b16 %v4805
    %v5348 = vunpack.c.h.b16 %v4805
    %v5349 = vunpack.c.l.b16 %v4806
    %v5350 = vunpack.c.h.b16 %v4806
    %v5351 = vunpack.c.l.b16 %v4807
    %v5352 = vunpack.c.h.b16 %v4807
    %v5353 = vunpack.c.l.b16 %v4808
    %v5354 = vunpack.c.h.b16 %v4808
    %v5355 = vunpack.c.l.b16 %v4809
    %v5356 = vunpack.c.h.b16 %v4809
    %v5357 = vunpack.c.l.b16 %v4810
    %v5358 = vunpack.c.h.b16 %v4810
    %v5359 = vunpack.c.l.b16 %v4811
    %v5360 = vunpack.c.h.b16 %v4811
    %v5361 = vunpack.c.l.b16 %v4812
    %v5362 = vunpack.c.h.b16 %v4812
    %v5363 = vunpack.c.l.b16 %v4813
    %v5364 = vunpack.c.h.b16 %v4813
    %v5365 = vunpack.c.l.b16 %v4814
    %v5366 = vunpack.c.h.b16 %v4814
    %v5367 = vunpack.c.l.b16 %v4815
    %v5368 = vunpack.c.h.b16 %v4815
    %v5369 = vunpack.c.l.b16 %v4816
    %v5370 = vunpack.c.h.b16 %v4816
    %v5371 = vunpack.c.l.b16 %v4817
    %v5372 = vunpack.c.h.b16 %v4817
    %v5373 = vunpack.c.l.b16 %v4818
    %v5374 = vunpack.c.h.b16 %v4818
    %v5375 = vunpack.c.l.b16 %v4819
    %v5376 = vunpack.c.h.b16 %v4819
    %v5377 = vunpack.c.l.b16 %v4820
    %v5378 = vunpack.c.h.b16 %v4820
    %v5379 = vunpack.c.l.b16 %v4821
    %v5380 = vunpack.c.h.b16 %v4821
    %v5381 = vunpack.c.l.b16 %v4822
    %v5382 = vunpack.c.h.b16 %v4822
    %v5383 = vunpack.c.l.b16 %v4823
    %v5384 = vunpack.c.h.b16 %v4823
    %v5385 = vunpack.c.l.b16 %v4824
    %v5386 = vunpack.c.h.b16 %v4824
    %v5387 = vunpack.c.l.b16 %v4825
    %v5388 = vunpack.c.h.b16 %v4825
    %v5389 = vunpack.c.l.b16 %v4826
    %v5390 = vunpack.c.h.b16 %v4826
    %v5391 = vunpack.c.l.b16 %v4827
    %v5392 = vunpack.c.h.b16 %v4827
    %v5393 = vunpack.c.l.b16 %v4828
    %v5394 = vunpack.c.h.b16 %v4828
    %v5395 = vunpack.c.l.b16 %v4829
    %v5396 = vunpack.c.h.b16 %v4829
    %v5397 = vunpack.c.l.b16 %v4830
    %v5398 = vunpack.c.h.b16 %v4830
    %v5399 = vunpack.c.l.b16 %v4831
    %v5400 = vunpack.c.h.b16 %v4831
    %v5401 = vunpack.c.l.b16 %v4832
    %v5402 = vunpack.c.h.b16 %v4832
    %v5403 = vunpack.c.l.b16 %v4833
    %v5404 = vunpack.c.h.b16 %v4833
    %v5405 = vunpack.c.l.b16 %v4834
    %v5406 = vunpack.c.h.b16 %v4834
    %v5407 = vunpack.c.l.b16 %v4835
    %v5408 = vunpack.c.h.b16 %v4835
    %v5409 = vunpack.c.l.b16 %v4836
    %v5410 = vunpack.c.h.b16 %v4836
    %v5411 = vunpack.c.l.b16 %v4837
    %v5412 = vunpack.c.h.b16 %v4837
    %v5413 = vunpack.c.l.b16 %v4838
    %v5414 = vunpack.c.h.b16 %v4838
    %v5415 = vpack.c.b16 %v5037, %v5031
    %v5416 = vpack.c.b16 %v5038, %v5032
    %v5417 = vpack.c.b16 %v5039, %v5033
    %v5418 = vpack.c.b16 %v5040, %v5034
    %v5419 = vpack.c.b16 %v5041, %v5035
    %v5420 = vpack.c.b16 %v5042, %v5036
    %v5421 = vpack.c.b16 %v5049, %v5043
    %v5422 = vpack.c.b16 %v5050, %v5044
    %v5423 = vpack.c.b16 %v5051, %v5045
    %v5424 = vpack.c.b16 %v5052, %v5046
    %v5425 = vpack.c.b16 %v5053, %v5047
    %v5426 = vpack.c.b16 %v5054, %v5048
    %v5427 = vpack.c.b16 %v5061, %v5055
    %v5428 = vpack.c.b16 %v5062, %v5056
    %v5429 = vpack.c.b16 %v5063, %v5057
    %v5430 = vpack.c.b16 %v5064, %v5058
    %v5431 = vpack.c.b16 %v5065, %v5059
    %v5432 = vpack.c.b16 %v5066, %v5060
    %v5433 = vpack.c.b16 %v5073, %v5067
    %v5434 = vpack.c.b16 %v5074, %v5068
    %v5435 = vpack.c.b16 %v5075, %v5069
    %v5436 = vpack.c.b16 %v5076, %v5070
    %v5437 = vpack.c.b16 %v5077, %v5071
    %v5438 = vpack.c.b16 %v5078, %v5072
    %v5439 = vpack.c.b16 %v5085, %v5079
    %v5440 = vpack.c.b16 %v5086, %v5080
    %v5441 = vpack.c.b16 %v5087, %v5081
    %v5442 = vpack.c.b16 %v5088, %v5082
    %v5443 = vpack.c.b16 %v5089, %v5083
    %v5444 = vpack.c.b16 %v5090, %v5084
    %v5445 = vpack.c.b16 %v5097, %v5091
    %v5446 = vpack.c.b16 %v5098, %v5092
    %v5447 = vpack.c.b16 %v5099, %v5093
    %v5448 = vpack.c.b16 %v5100, %v5094
    %v5449 = vpack.c.b16 %v5101, %v5095
    %v5450 = vpack.c.b16 %v5102, %v5096
    %v5451 = vpack.c.b16 %v5109, %v5103
    %v5452 = vpack.c.b16 %v5110, %v5104
    %v5453 = vpack.c.b16 %v5111, %v5105
    %v5454 = vpack.c.b16 %v5112, %v5106
    %v5455 = vpack.c.b16 %v5113, %v5107
    %v5456 = vpack.c.b16 %v5114, %v5108
    %v5457 = vpack.c.b16 %v5121, %v5115
    %v5458 = vpack.c.b16 %v5122, %v5116
    %v5459 = vpack.c.b16 %v5123, %v5117
    %v5460 = vpack.c.b16 %v5124, %v5118
    %v5461 = vpack.c.b16 %v5125, %v5119
    %v5462 = vpack.c.b16 %v5126, %v5120
    %v5463 = vpack.c.b16 %v5133, %v5127
    %v5464 = vpack.c.b16 %v5134, %v5128
    %v5465 = vpack.c.b16 %v5135, %v5129
    %v5466 = vpack.c.b16 %v5136, %v5130
    %v5467 = vpack.c.b16 %v5137, %v5131
    %v5468 = vpack.c.b16 %v5138, %v5132
    %v5469 = vpack.c.b16 %v5145, %v5139
    %v5470 = vpack.c.b16 %v5146, %v5140
    %v5471 = vpack.c.b16 %v5147, %v5141
    %v5472 = vpack.c.b16 %v5148, %v5142
    %v5473 = vpack.c.b16 %v5149, %v5143
    %v5474 = vpack.c.b16 %v5150, %v5144
    %v5475 = vpack.c.b16 %v5157, %v5151
    %v5476 = vpack.c.b16 %v5158, %v5152
    %v5477 = vpack.c.b16 %v5159, %v5153
    %v5478 = vpack.c.b16 %v5160, %v5154
    %v5479 = vpack.c.b16 %v5161, %v5155
    %v5480 = vpack.c.b16 %v5162, %v5156
    %v5481 = vpack.c.b16 %v5169, %v5163
    %v5482 = vpack.c.b16 %v5170, %v5164
    %v5483 = vpack.c.b16 %v5171, %v5165
    %v5484 = vpack.c.b16 %v5172, %v5166
    %v5485 = vpack.c.b16 %v5173, %v5167
    %v5486 = vpack.c.b16 %v5174, %v5168
    %v5487 = vpack.c.b16 %v5181, %v5175
    %v5488 = vpack.c.b16 %v5182, %v5176
    %v5489 = vpack.c.b16 %v5183, %v5177
    %v5490 = vpack.c.b16 %v5184, %v5178
    %v5491 = vpack.c.b16 %v5185, %v5179
    %v5492 = vpack.c.b16 %v5186, %v5180
    %v5493 = vpack.c.b16 %v5193, %v5187
    %v5494 = vpack.c.b16 %v5194, %v5188
    %v5495 = vpack.c.b16 %v5195, %v5189
    %v5496 = vpack.c.b16 %v5196, %v5190
    %v5497 = vpack.c.b16 %v5197, %v5191
    %v5498 = vpack.c.b16 %v5198, %v5192
    %v5499 = vpack.c.b16 %v5205, %v5199
    %v5500 = vpack.c.b16 %v5206, %v5200
    %v5501 = vpack.c.b16 %v5207, %v5201
    %v5502 = vpack.c.b16 %v5208, %v5202
    %v5503 = vpack.c.b16 %v5209, %v5203
    %v5504 = vpack.c.b16 %v5210, %v5204
    %v5505 = vpack.c.b16 %v5217, %v5211
    %v5506 = vpack.c.b16 %v5218, %v5212
    %v5507 = vpack.c.b16 %v5219, %v5213
    %v5508 = vpack.c.b16 %v5220, %v5214
    %v5509 = vpack.c.b16 %v5221, %v5215
    %v5510 = vpack.c.b16 %v5222, %v5216
    %v5511 = vpack.c.b16 %v5229, %v5223
    %v5512 = vpack.c.b16 %v5230, %v5224
    %v5513 = vpack.c.b16 %v5231, %v5225
    %v5514 = vpack.c.b16 %v5232, %v5226
    %v5515 = vpack.c.b16 %v5233, %v5227
    %v5516 = vpack.c.b16 %v5234, %v5228
    %v5517 = vpack.c.b16 %v5241, %v5235
    %v5518 = vpack.c.b16 %v5242, %v5236
    %v5519 = vpack.c.b16 %v5243, %v5237
    %v5520 = vpack.c.b16 %v5244, %v5238
    %v5521 = vpack.c.b16 %v5245, %v5239
    %v5522 = vpack.c.b16 %v5246, %v5240
    %v5523 = vpack.c.b16 %v5253, %v5247
    %v5524 = vpack.c.b16 %v5254, %v5248
    %v5525 = vpack.c.b16 %v5255, %v5249
    %v5526 = vpack.c.b16 %v5256, %v5250
    %v5527 = vpack.c.b16 %v5257, %v5251
    %v5528 = vpack.c.b16 %v5258, %v5252
    %v5529 = vpack.c.b16 %v5265, %v5259
    %v5530 = vpack.c.b16 %v5266, %v5260
    %v5531 = vpack.c.b16 %v5267, %v5261
    %v5532 = vpack.c.b16 %v5268, %v5262
    %v5533 = vpack.c.b16 %v5269, %v5263
    %v5534 = vpack.c.b16 %v5270, %v5264
    %v5535 = vpack.c.b16 %v5277, %v5271
    %v5536 = vpack.c.b16 %v5278, %v5272
    %v5537 = vpack.c.b16 %v5279, %v5273
    %v5538 = vpack.c.b16 %v5280, %v5274
    %v5539 = vpack.c.b16 %v5281, %v5275
    %v5540 = vpack.c.b16 %v5282, %v5276
    %v5541 = vpack.c.b16 %v5289, %v5283
    %v5542 = vpack.c.b16 %v5290, %v5284
    %v5543 = vpack.c.b16 %v5291, %v5285
    %v5544 = vpack.c.b16 %v5292, %v5286
    %v5545 = vpack.c.b16 %v5293, %v5287
    %v5546 = vpack.c.b16 %v5294, %v5288
    %v5547 = vpack.c.b16 %v5301, %v5295
    %v5548 = vpack.c.b16 %v5302, %v5296
    %v5549 = vpack.c.b16 %v5303, %v5297
    %v5550 = vpack.c.b16 %v5304, %v5298
    %v5551 = vpack.c.b16 %v5305, %v5299
    %v5552 = vpack.c.b16 %v5306, %v5300
    %v5553 = vpack.c.b16 %v5313, %v5307
    %v5554 = vpack.c.b16 %v5314, %v5308
    %v5555 = vpack.c.b16 %v5315, %v5309
    %v5556 = vpack.c.b16 %v5316, %v5310
    %v5557 = vpack.c.b16 %v5317, %v5311
    %v5558 = vpack.c.b16 %v5318, %v5312
    %v5559 = vpack.c.b16 %v5325, %v5319
    %v5560 = vpack.c.b16 %v5326, %v5320
    %v5561 = vpack.c.b16 %v5327, %v5321
    %v5562 = vpack.c.b16 %v5328, %v5322
    %v5563 = vpack.c.b16 %v5329, %v5323
    %v5564 = vpack.c.b16 %v5330, %v5324
    %v5565 = vpack.c.b16 %v5337, %v5331
    %v5566 = vpack.c.b16 %v5338, %v5332
    %v5567 = vpack.c.b16 %v5339, %v5333
    %v5568 = vpack.c.b16 %v5340, %v5334
    %v5569 = vpack.c.b16 %v5341, %v5335
    %v5570 = vpack.c.b16 %v5342, %v5336
    %v5571 = vpack.c.b16 %v5349, %v5343
    %v5572 = vpack.c.b16 %v5350, %v5344
    %v5573 = vpack.c.b16 %v5351, %v5345
    %v5574 = vpack.c.b16 %v5352, %v5346
    %v5575 = vpack.c.b16 %v5353, %v5347
    %v5576 = vpack.c.b16 %v5354, %v5348
    %v5577 = vpack.c.b16 %v5361, %v5355
    %v5578 = vpack.c.b16 %v5362, %v5356
    %v5579 = vpack.c.b16 %v5363, %v5357
    %v5580 = vpack.c.b16 %v5364, %v5358
    %v5581 = vpack.c.b16 %v5365, %v5359
    %v5582 = vpack.c.b16 %v5366, %v5360
    %v5583 = vpack.c.b16 %v5373, %v5367
    %v5584 = vpack.c.b16 %v5374, %v5368
    %v5585 = vpack.c.b16 %v5375, %v5369
    %v5586 = vpack.c.b16 %v5376, %v5370
    %v5587 = vpack.c.b16 %v5377, %v5371
    %v5588 = vpack.c.b16 %v5378, %v5372
    %v5589 = vpack.c.b16 %v5385, %v5379
    %v5590 = vpack.c.b16 %v5386, %v5380
    %v5591 = vpack.c.b16 %v5387, %v5381
    %v5592 = vpack.c.b16 %v5388, %v5382
    %v5593 = vpack.c.b16 %v5389, %v5383
    %v5594 = vpack.c.b16 %v5390, %v5384
    %v5595 = vpack.c.b16 %v5397, %v5391
    %v5596 = vpack.c.b16 %v5398, %v5392
    %v5597 = vpack.c.b16 %v5399, %v5393
    %v5598 = vpack.c.b16 %v5400, %v5394
    %v5599 = vpack.c.b16 %v5401, %v5395
    %v5600 = vpack.c.b16 %v5402, %v5396
    %v5601 = vpack.c.b16 %v5409, %v5403
    %v5602 = vpack.c.b16 %v5410, %v5404
    %v5603 = vpack.c.b16 %v5411, %v5405
    %v5604 = vpack.c.b16 %v5412, %v5406
    %v5605 = vpack.c.b16 %v5413, %v5407
    %v5606 = vpack.c.b16 %v5414, %v5408
    %5799 = vmatpush.bf16.msra.mxu0 %v5457
    %5800 = vmatpush.bf16.msra.mxu0 %v5451
    %5801 = vmatpush.bf16.msra.mxu0 %v5445
    %5802 = vmatpush.bf16.msra.mxu0 %v5439
    %5803 = vmatpush.bf16.msra.mxu0 %v5433
    %5804 = vmatpush.bf16.msra.mxu0 %v5427
    %5805 = vmatpush.bf16.msra.mxu0 %v5421
    %5806 = vmatpush.bf16.msra.mxu0 %v5415
    %5807 = vmatmul.bf16.gmra.mxu0 %v254
    %v5808 = vpop.f32.mrf.mxu0
    %v5809 = vadd.f32 0.0, %v5808
    %v5810 = vpop.f32.mrf.mxu0
    %v5811 = vadd.f32 0.0, %v5810
    %5812 = vdwg.mxu0
    %5813 = vmatpush.bf16.msra.mxu0 %v5505
    %5814 = vmatpush.bf16.msra.mxu0 %v5499
    %5815 = vmatpush.bf16.msra.mxu0 %v5493
    %5816 = vmatpush.bf16.msra.mxu0 %v5487
    %5817 = vmatpush.bf16.msra.mxu0 %v5481
    %5818 = vmatpush.bf16.msra.mxu0 %v5475
    %5819 = vmatpush.bf16.msra.mxu0 %v5469
    %5820 = vmatpush.bf16.msra.mxu0 %v5463
    %5821 = vmatmul.bf16.gmra.mxu0 %v255
    %v5822 = vpop.f32.mrf.mxu0
    %v5823 = vadd.f32 %v5809, %v5822
    %v5824 = vpop.f32.mrf.mxu0
    %v5825 = vadd.f32 %v5811, %v5824
    %5826 = vdwg.mxu0
    %5827 = vmatpush.bf16.msra.mxu0 %v5553
    %5828 = vmatpush.bf16.msra.mxu0 %v5547
    %5829 = vmatpush.bf16.msra.mxu0 %v5541
    %5830 = vmatpush.bf16.msra.mxu0 %v5535
    %5831 = vmatpush.bf16.msra.mxu0 %v5529
    %5832 = vmatpush.bf16.msra.mxu0 %v5523
    %5833 = vmatpush.bf16.msra.mxu0 %v5517
    %5834 = vmatpush.bf16.msra.mxu0 %v5511
    %5835 = vmatmul.bf16.gmra.mxu0 %v256
    %v5836 = vpop.f32.mrf.mxu0
    %v5837 = vadd.f32 %v5823, %v5836
    %v5838 = vpop.f32.mrf.mxu0
    %v5839 = vadd.f32 %v5825, %v5838
    %5840 = vdwg.mxu0
    %5841 = vmatpush.bf16.msra.mxu0 %v5601
    %5842 = vmatpush.bf16.msra.mxu0 %v5595
    %5843 = vmatpush.bf16.msra.mxu0 %v5589
    %5844 = vmatpush.bf16.msra.mxu0 %v5583
    %5845 = vmatpush.bf16.msra.mxu0 %v5577
    %5846 = vmatpush.bf16.msra.mxu0 %v5571
    %5847 = vmatpush.bf16.msra.mxu0 %v5565
    %5848 = vmatpush.bf16.msra.mxu0 %v5559
    %5849 = vmatmul.bf16.gmra.mxu0 %v257
    %v5850 = vpop.f32.mrf.mxu0
    %v5851 = vadd.f32 %v5837, %v5850
    %v5852 = vpop.f32.mrf.mxu0
    %v5853 = vadd.f32 %v5839, %v5852
    %5854 = vdwg.mxu0
    %5855 = vmatpush.bf16.msra.mxu0 %v5458
    %5856 = vmatpush.bf16.msra.mxu0 %v5452
    %5857 = vmatpush.bf16.msra.mxu0 %v5446
    %5858 = vmatpush.bf16.msra.mxu0 %v5440
    %5859 = vmatpush.bf16.msra.mxu0 %v5434
    %5860 = vmatpush.bf16.msra.mxu0 %v5428
    %5861 = vmatpush.bf16.msra.mxu0 %v5422
    %5862 = vmatpush.bf16.msra.mxu0 %v5416
    %5863 = vmatmul.bf16.gmra.mxu0 %v254
    %v5864 = vpop.f32.mrf.mxu0
    %v5865 = vadd.f32 0.0, %v5864
    %v5866 = vpop.f32.mrf.mxu0
    %v5867 = vadd.f32 0.0, %v5866
    %5868 = vdwg.mxu0
    %5869 = vmatpush.bf16.msra.mxu0 %v5506
    %5870 = vmatpush.bf16.msra.mxu0 %v5500
    %5871 = vmatpush.bf16.msra.mxu0 %v5494
    %5872 = vmatpush.bf16.msra.mxu0 %v5488
    %5873 = vmatpush.bf16.msra.mxu0 %v5482
    %5874 = vmatpush.bf16.msra.mxu0 %v5476
    %5875 = vmatpush.bf16.msra.mxu0 %v5470
    %5876 = vmatpush.bf16.msra.mxu0 %v5464
    %5877 = vmatmul.bf16.gmra.mxu0 %v255
    %v5878 = vpop.f32.mrf.mxu0
    %v5879 = vadd.f32 %v5865, %v5878
    %v5880 = vpop.f32.mrf.mxu0
    %v5881 = vadd.f32 %v5867, %v5880
    %5882 = vdwg.mxu0
    %5883 = vmatpush.bf16.msra.mxu0 %v5554
    %5884 = vmatpush.bf16.msra.mxu0 %v5548
    %5885 = vmatpush.bf16.msra.mxu0 %v5542
    %5886 = vmatpush.bf16.msra.mxu0 %v5536
    %5887 = vmatpush.bf16.msra.mxu0 %v5530
    %5888 = vmatpush.bf16.msra.mxu0 %v5524
    %5889 = vmatpush.bf16.msra.mxu0 %v5518
    %5890 = vmatpush.bf16.msra.mxu0 %v5512
    %5891 = vmatmul.bf16.gmra.mxu0 %v256
    %v5892 = vpop.f32.mrf.mxu0
    %v5893 = vadd.f32 %v5879, %v5892
    %v5894 = vpop.f32.mrf.mxu0
    %v5895 = vadd.f32 %v5881, %v5894
    %5896 = vdwg.mxu0
    %5897 = vmatpush.bf16.msra.mxu0 %v5602
    %5898 = vmatpush.bf16.msra.mxu0 %v5596
    %5899 = vmatpush.bf16.msra.mxu0 %v5590
    %5900 = vmatpush.bf16.msra.mxu0 %v5584
    %5901 = vmatpush.bf16.msra.mxu0 %v5578
    %5902 = vmatpush.bf16.msra.mxu0 %v5572
    %5903 = vmatpush.bf16.msra.mxu0 %v5566
    %5904 = vmatpush.bf16.msra.mxu0 %v5560
    %5905 = vmatmul.bf16.gmra.mxu0 %v257
    %v5906 = vpop.f32.mrf.mxu0
    %v5907 = vadd.f32 %v5893, %v5906
    %v5908 = vpop.f32.mrf.mxu0
    %v5909 = vadd.f32 %v5895, %v5908
    %5910 = vdwg.mxu0
    %5911 = vmatpush.bf16.msra.mxu0 %v5459
    %5912 = vmatpush.bf16.msra.mxu0 %v5453
    %5913 = vmatpush.bf16.msra.mxu0 %v5447
    %5914 = vmatpush.bf16.msra.mxu0 %v5441
    %5915 = vmatpush.bf16.msra.mxu0 %v5435
    %5916 = vmatpush.bf16.msra.mxu0 %v5429
    %5917 = vmatpush.bf16.msra.mxu0 %v5423
    %5918 = vmatpush.bf16.msra.mxu0 %v5417
    %5919 = vmatmul.bf16.gmra.mxu0 %v254
    %v5920 = vpop.f32.mrf.mxu0
    %v5921 = vadd.f32 0.0, %v5920
    %v5922 = vpop.f32.mrf.mxu0
    %v5923 = vadd.f32 0.0, %v5922
    %5924 = vdwg.mxu0
    %5925 = vmatpush.bf16.msra.mxu0 %v5507
    %5926 = vmatpush.bf16.msra.mxu0 %v5501
    %5927 = vmatpush.bf16.msra.mxu0 %v5495
    %5928 = vmatpush.bf16.msra.mxu0 %v5489
    %5929 = vmatpush.bf16.msra.mxu0 %v5483
    %5930 = vmatpush.bf16.msra.mxu0 %v5477
    %5931 = vmatpush.bf16.msra.mxu0 %v5471
    %5932 = vmatpush.bf16.msra.mxu0 %v5465
    %5933 = vmatmul.bf16.gmra.mxu0 %v255
    %v5934 = vpop.f32.mrf.mxu0
    %v5935 = vadd.f32 %v5921, %v5934
    %v5936 = vpop.f32.mrf.mxu0
    %v5937 = vadd.f32 %v5923, %v5936
    %5938 = vdwg.mxu0
    %5939 = vmatpush.bf16.msra.mxu0 %v5555
    %5940 = vmatpush.bf16.msra.mxu0 %v5549
    %5941 = vmatpush.bf16.msra.mxu0 %v5543
    %5942 = vmatpush.bf16.msra.mxu0 %v5537
    %5943 = vmatpush.bf16.msra.mxu0 %v5531
    %5944 = vmatpush.bf16.msra.mxu0 %v5525
    %5945 = vmatpush.bf16.msra.mxu0 %v5519
    %5946 = vmatpush.bf16.msra.mxu0 %v5513
    %5947 = vmatmul.bf16.gmra.mxu0 %v256
    %v5948 = vpop.f32.mrf.mxu0
    %v5949 = vadd.f32 %v5935, %v5948
    %v5950 = vpop.f32.mrf.mxu0
    %v5951 = vadd.f32 %v5937, %v5950
    %5952 = vdwg.mxu0
    %5953 = vmatpush.bf16.msra.mxu0 %v5603
    %5954 = vmatpush.bf16.msra.mxu0 %v5597
    %5955 = vmatpush.bf16.msra.mxu0 %v5591
    %5956 = vmatpush.bf16.msra.mxu0 %v5585
    %5957 = vmatpush.bf16.msra.mxu0 %v5579
    %5958 = vmatpush.bf16.msra.mxu0 %v5573
    %5959 = vmatpush.bf16.msra.mxu0 %v5567
    %5960 = vmatpush.bf16.msra.mxu0 %v5561
    %5961 = vmatmul.bf16.gmra.mxu0 %v257
    %v5962 = vpop.f32.mrf.mxu0
    %v5963 = vadd.f32 %v5949, %v5962
    %v5964 = vpop.f32.mrf.mxu0
    %v5965 = vadd.f32 %v5951, %v5964
    %5966 = vdwg.mxu0
    %5967 = vmatpush.bf16.msra.mxu0 %v5460
    %5968 = vmatpush.bf16.msra.mxu0 %v5454
    %5969 = vmatpush.bf16.msra.mxu0 %v5448
    %5970 = vmatpush.bf16.msra.mxu0 %v5442
    %5971 = vmatpush.bf16.msra.mxu0 %v5436
    %5972 = vmatpush.bf16.msra.mxu0 %v5430
    %5973 = vmatpush.bf16.msra.mxu0 %v5424
    %5974 = vmatpush.bf16.msra.mxu0 %v5418
    %5975 = vmatmul.bf16.gmra.mxu0 %v254
    %v5976 = vpop.f32.mrf.mxu0
    %v5977 = vadd.f32 0.0, %v5976
    %v5978 = vpop.f32.mrf.mxu0
    %v5979 = vadd.f32 0.0, %v5978
    %5980 = vdwg.mxu0
    %5981 = vmatpush.bf16.msra.mxu0 %v5508
    %5982 = vmatpush.bf16.msra.mxu0 %v5502
    %5983 = vmatpush.bf16.msra.mxu0 %v5496
    %5984 = vmatpush.bf16.msra.mxu0 %v5490
    %5985 = vmatpush.bf16.msra.mxu0 %v5484
    %5986 = vmatpush.bf16.msra.mxu0 %v5478
    %5987 = vmatpush.bf16.msra.mxu0 %v5472
    %5988 = vmatpush.bf16.msra.mxu0 %v5466
    %5989 = vmatmul.bf16.gmra.mxu0 %v255
    %v5990 = vpop.f32.mrf.mxu0
    %v5991 = vadd.f32 %v5977, %v5990
    %v5992 = vpop.f32.mrf.mxu0
    %v5993 = vadd.f32 %v5979, %v5992
    %5994 = vdwg.mxu0
    %5995 = vmatpush.bf16.msra.mxu0 %v5556
    %5996 = vmatpush.bf16.msra.mxu0 %v5550
    %5997 = vmatpush.bf16.msra.mxu0 %v5544
    %5998 = vmatpush.bf16.msra.mxu0 %v5538
    %5999 = vmatpush.bf16.msra.mxu0 %v5532
    %6000 = vmatpush.bf16.msra.mxu0 %v5526
    %6001 = vmatpush.bf16.msra.mxu0 %v5520
    %6002 = vmatpush.bf16.msra.mxu0 %v5514
    %6003 = vmatmul.bf16.gmra.mxu0 %v256
    %v6004 = vpop.f32.mrf.mxu0
    %v6005 = vadd.f32 %v5991, %v6004
    %v6006 = vpop.f32.mrf.mxu0
    %v6007 = vadd.f32 %v5993, %v6006
    %6008 = vdwg.mxu0
    %6009 = vmatpush.bf16.msra.mxu0 %v5604
    %6010 = vmatpush.bf16.msra.mxu0 %v5598
    %6011 = vmatpush.bf16.msra.mxu0 %v5592
    %6012 = vmatpush.bf16.msra.mxu0 %v5586
    %6013 = vmatpush.bf16.msra.mxu0 %v5580
    %6014 = vmatpush.bf16.msra.mxu0 %v5574
    %6015 = vmatpush.bf16.msra.mxu0 %v5568
    %6016 = vmatpush.bf16.msra.mxu0 %v5562
    %6017 = vmatmul.bf16.gmra.mxu0 %v257
    %v6018 = vpop.f32.mrf.mxu0
    %v6019 = vadd.f32 %v6005, %v6018
    %v6020 = vpop.f32.mrf.mxu0
    %v6021 = vadd.f32 %v6007, %v6020
    %6022 = vdwg.mxu0
    %6023 = vmatpush.bf16.msra.mxu0 %v5461
    %6024 = vmatpush.bf16.msra.mxu0 %v5455
    %6025 = vmatpush.bf16.msra.mxu0 %v5449
    %6026 = vmatpush.bf16.msra.mxu0 %v5443
    %6027 = vmatpush.bf16.msra.mxu0 %v5437
    %6028 = vmatpush.bf16.msra.mxu0 %v5431
    %6029 = vmatpush.bf16.msra.mxu0 %v5425
    %6030 = vmatpush.bf16.msra.mxu0 %v5419
    %6031 = vmatmul.bf16.gmra.mxu0 %v254
    %v6032 = vpop.f32.mrf.mxu0
    %v6033 = vadd.f32 0.0, %v6032
    %v6034 = vpop.f32.mrf.mxu0
    %v6035 = vadd.f32 0.0, %v6034
    %6036 = vdwg.mxu0
    %6037 = vmatpush.bf16.msra.mxu0 %v5509
    %6038 = vmatpush.bf16.msra.mxu0 %v5503
    %6039 = vmatpush.bf16.msra.mxu0 %v5497
    %6040 = vmatpush.bf16.msra.mxu0 %v5491
    %6041 = vmatpush.bf16.msra.mxu0 %v5485
    %6042 = vmatpush.bf16.msra.mxu0 %v5479
    %6043 = vmatpush.bf16.msra.mxu0 %v5473
    %6044 = vmatpush.bf16.msra.mxu0 %v5467
    %6045 = vmatmul.bf16.gmra.mxu0 %v255
    %v6046 = vpop.f32.mrf.mxu0
    %v6047 = vadd.f32 %v6033, %v6046
    %v6048 = vpop.f32.mrf.mxu0
    %v6049 = vadd.f32 %v6035, %v6048
    %6050 = vdwg.mxu0
    %6051 = vmatpush.bf16.msra.mxu0 %v5557
    %6052 = vmatpush.bf16.msra.mxu0 %v5551
    %6053 = vmatpush.bf16.msra.mxu0 %v5545
    %6054 = vmatpush.bf16.msra.mxu0 %v5539
    %6055 = vmatpush.bf16.msra.mxu0 %v5533
    %6056 = vmatpush.bf16.msra.mxu0 %v5527
    %6057 = vmatpush.bf16.msra.mxu0 %v5521
    %6058 = vmatpush.bf16.msra.mxu0 %v5515
    %6059 = vmatmul.bf16.gmra.mxu0 %v256
    %v6060 = vpop.f32.mrf.mxu0
    %v6061 = vadd.f32 %v6047, %v6060
    %v6062 = vpop.f32.mrf.mxu0
    %v6063 = vadd.f32 %v6049, %v6062
    %6064 = vdwg.mxu0
    %6065 = vmatpush.bf16.msra.mxu0 %v5605
    %6066 = vmatpush.bf16.msra.mxu0 %v5599
    %6067 = vmatpush.bf16.msra.mxu0 %v5593
    %6068 = vmatpush.bf16.msra.mxu0 %v5587
    %6069 = vmatpush.bf16.msra.mxu0 %v5581
    %6070 = vmatpush.bf16.msra.mxu0 %v5575
    %6071 = vmatpush.bf16.msra.mxu0 %v5569
    %6072 = vmatpush.bf16.msra.mxu0 %v5563
    %6073 = vmatmul.bf16.gmra.mxu0 %v257
    %v6074 = vpop.f32.mrf.mxu0
    %v6075 = vadd.f32 %v6061, %v6074
    %v6076 = vpop.f32.mrf.mxu0
    %v6077 = vadd.f32 %v6063, %v6076
    %6078 = vdwg.mxu0
    %6079 = vmatpush.bf16.msra.mxu0 %v5462
    %6080 = vmatpush.bf16.msra.mxu0 %v5456
    %6081 = vmatpush.bf16.msra.mxu0 %v5450
    %6082 = vmatpush.bf16.msra.mxu0 %v5444
    %6083 = vmatpush.bf16.msra.mxu0 %v5438
    %6084 = vmatpush.bf16.msra.mxu0 %v5432
    %6085 = vmatpush.bf16.msra.mxu0 %v5426
    %6086 = vmatpush.bf16.msra.mxu0 %v5420
    %6087 = vmatmul.bf16.gmra.mxu0 %v254
    %v6088 = vpop.f32.mrf.mxu0
    %v6089 = vadd.f32 0.0, %v6088
    %v6090 = vpop.f32.mrf.mxu0
    %v6091 = vadd.f32 0.0, %v6090
    %6092 = vdwg.mxu0
    %6093 = vmatpush.bf16.msra.mxu0 %v5510
    %6094 = vmatpush.bf16.msra.mxu0 %v5504
    %6095 = vmatpush.bf16.msra.mxu0 %v5498
    %6096 = vmatpush.bf16.msra.mxu0 %v5492
    %6097 = vmatpush.bf16.msra.mxu0 %v5486
    %6098 = vmatpush.bf16.msra.mxu0 %v5480
    %6099 = vmatpush.bf16.msra.mxu0 %v5474
    %6100 = vmatpush.bf16.msra.mxu0 %v5468
    %6101 = vmatmul.bf16.gmra.mxu0 %v255
    %v6102 = vpop.f32.mrf.mxu0
    %v6103 = vadd.f32 %v6089, %v6102
    %v6104 = vpop.f32.mrf.mxu0
    %v6105 = vadd.f32 %v6091, %v6104
    %6106 = vdwg.mxu0
    %6107 = vmatpush.bf16.msra.mxu0 %v5558
    %6108 = vmatpush.bf16.msra.mxu0 %v5552
    %6109 = vmatpush.bf16.msra.mxu0 %v5546
    %6110 = vmatpush.bf16.msra.mxu0 %v5540
    %6111 = vmatpush.bf16.msra.mxu0 %v5534
    %6112 = vmatpush.bf16.msra.mxu0 %v5528
    %6113 = vmatpush.bf16.msra.mxu0 %v5522
    %6114 = vmatpush.bf16.msra.mxu0 %v5516
    %6115 = vmatmul.bf16.gmra.mxu0 %v256
    %v6116 = vpop.f32.mrf.mxu0
    %v6117 = vadd.f32 %v6103, %v6116
    %v6118 = vpop.f32.mrf.mxu0
    %v6119 = vadd.f32 %v6105, %v6118
    %6120 = vdwg.mxu0
    %6121 = vmatpush.bf16.msra.mxu0 %v5606
    %6122 = vmatpush.bf16.msra.mxu0 %v5600
    %6123 = vmatpush.bf16.msra.mxu0 %v5594
    %6124 = vmatpush.bf16.msra.mxu0 %v5588
    %6125 = vmatpush.bf16.msra.mxu0 %v5582
    %6126 = vmatpush.bf16.msra.mxu0 %v5576
    %6127 = vmatpush.bf16.msra.mxu0 %v5570
    %6128 = vmatpush.bf16.msra.mxu0 %v5564
    %6129 = vmatmul.bf16.gmra.mxu0 %v257
    %v6130 = vpop.f32.mrf.mxu0
    %v6131 = vadd.f32 %v6117, %v6130
    %v6132 = vpop.f32.mrf.mxu0
    %v6133 = vadd.f32 %v6119, %v6132
    %6134 = vdwg.mxu0
    %s6135 = scalar_lea.vmem %s1, 48
    %v6136 = vld [vmem:[%s6135] sm:$0xff]
    %v6137 = vld [vmem:[%s6135 + $0x8] sm:$0xff]
    %6139 = vset.pattern.permute.xlu0 0
    %6140 = vperm.xlu0 %6139, %v6136
    %v6141 = vpop.permute.xlu0 %6140
    %6144 = vset.pattern.permute.xlu0 0
    %6145 = vperm.xlu0 %6144, %v6137
    %v6146 = vpop.permute.xlu0 %6145
    %v6148 = vmul.f32 %v6141, %v5851
    %v6149 = vmul.f32 %v6141, %v5907
    %v6150 = vmul.f32 %v6141, %v5963
    %v6151 = vmul.f32 %v6141, %v6019
    %v6152 = vmul.f32 %v6141, %v6075
    %v6153 = vmul.f32 %v6141, %v6131
    %v6154 = vmul.f32 %v6146, %v5853
    %v6155 = vmul.f32 %v6146, %v5909
    %v6156 = vmul.f32 %v6146, %v5965
    %v6157 = vmul.f32 %v6146, %v6021
    %v6158 = vmul.f32 %v6146, %v6077
    %v6159 = vmul.f32 %v6146, %v6133
    %v6160 = vadd.f32 %v4634, %v6148
    %v6161 = vadd.f32 %v4635, %v6149
    %v6162 = vadd.f32 %v4636, %v6150
    %v6163 = vadd.f32 %v4637, %v6151
    %v6164 = vadd.f32 %v4638, %v6152
    %v6165 = vadd.f32 %v4639, %v6153
    %v6166 = vadd.f32 %v4640, %v6154
    %v6167 = vadd.f32 %v4641, %v6155
    %v6168 = vadd.f32 %v4642, %v6156
    %v6169 = vadd.f32 %v4643, %v6157
    %v6170 = vadd.f32 %v4644, %v6158
    %v6171 = vadd.f32 %v4645, %v6159
    %v6172 = vld [vmem:[%s3] sm:$0xff]
    %v6173 = vld [vmem:[%s3 + $0x8] sm:$0xff]
    %v6174 = vld [vmem:[%s3 + $0x10] sm:$0xff]
    %v6175 = vld [vmem:[%s3 + $0x18] sm:$0xff]
    %v6176 = vld [vmem:[%s3 + $0x20] sm:$0xff]
    %v6177 = vld [vmem:[%s3 + $0x28] sm:$0xff]
    %v6178 = vld [vmem:[%s3 + $0x30] sm:$0xff]
    %v6179 = vld [vmem:[%s3 + $0x38] sm:$0xff]
    %v6180 = vld [vmem:[%s3 + $0x40] sm:$0xff]
    %v6181 = vld [vmem:[%s3 + $0x48] sm:$0xff]
    %v6182 = vld [vmem:[%s3 + $0x50] sm:$0xff]
    %v6183 = vld [vmem:[%s3 + $0x58] sm:$0xff]
    %v6184 = vadd.f32 %v6172, %v6160
    %v6185 = vadd.f32 %v6173, %v6161
    %v6186 = vadd.f32 %v6174, %v6162
    %v6187 = vadd.f32 %v6175, %v6163
    %v6188 = vadd.f32 %v6176, %v6164
    %v6189 = vadd.f32 %v6177, %v6165
    %v6190 = vadd.f32 %v6178, %v6166
    %v6191 = vadd.f32 %v6179, %v6167
    %v6192 = vadd.f32 %v6180, %v6168
    %v6193 = vadd.f32 %v6181, %v6169
    %v6194 = vadd.f32 %v6182, %v6170
    %v6195 = vadd.f32 %v6183, %v6171
    %6196 = vst [vmem:[%s3] sm:$0xff] %v6184
    %6197 = vst [vmem:[%s3 + $0x8] sm:$0xff] %v6185
    %6198 = vst [vmem:[%s3 + $0x10] sm:$0xff] %v6186
    %6199 = vst [vmem:[%s3 + $0x18] sm:$0xff] %v6187
    %6200 = vst [vmem:[%s3 + $0x20] sm:$0xff] %v6188
    %6201 = vst [vmem:[%s3 + $0x28] sm:$0xff] %v6189
    %6202 = vst [vmem:[%s3 + $0x30] sm:$0xff] %v6190
    %6203 = vst [vmem:[%s3 + $0x38] sm:$0xff] %v6191
    %6204 = vst [vmem:[%s3 + $0x40] sm:$0xff] %v6192
    %6205 = vst [vmem:[%s3 + $0x48] sm:$0xff] %v6193
    %6206 = vst [vmem:[%s3 + $0x50] sm:$0xff] %v6194
    %6207 = vst [vmem:[%s3 + $0x58] sm:$0xff] %v6195
    // Predicated region
    $region22: #{moe_forward_pallas.3} parent=1 // pred_check
      _
    $region23: #{moe_forward_pallas.3} parent=1 // pred_check_branch
      %6209 = sbr.rel (0) target = $region25
    $region24: #{moe_forward_pallas.3} parent=1 // pred_region
      _
    $region25: #{moe_forward_pallas.3} parent=1 // pred_fallthru
      _
    // Predicated region
    $region26: #{moe_forward_pallas.3} parent=1 // pred_check
      _
    $region27: #{moe_forward_pallas.3} parent=1 // pred_check_branch
      %6211 = sbr.rel (0) target = $region29
    $region28: #{moe_forward_pallas.3} parent=1 // pred_region
      _
    $region29: #{moe_forward_pallas.3} parent=1 // pred_fallthru
      _
    %6212 = vsyncpa [#allocation3], 1

</llo_original>
